<compile_context>
chip_gen: v7x
topology: tpu7x:2x2x1
jax: 0.10.0
libtpu: 0.0.40
codegen_flags: <defaults>
</compile_context>

<pallas_src>
import numpy as np

import jax
import jax.numpy as jnp
from jax.experimental import pallas as pl
from jax.experimental.pallas import tpu as pltpu


# ----------------------------------------------------------------------------
# Structural / weight matrix builders (host-side numpy, run once at setup).
# ----------------------------------------------------------------------------
def _conv_pool_mats(w, b, hh, ww, nb, out_order):
    """3x3 pad-1 conv + ReLU + 2x2 max-pool acting on a batched (nb*hh, ww*cin) slab.

    Returns:
      R    (3*2*NO, nb*hh)     0/1 row-gather matrix (ky-major, then pool-row parity,
                               then `out_order`); zero rows encode the conv padding.
      M    (3, ww*cin, ww*cout) per-ky banded conv weights; output columns permuted so
                               even pool-columns occupy the first lane half.
      brow (1, ww*cout)        bias row (same column permutation).
    """
    cout, cin = int(w.shape[0]), int(w.shape[1])
    no = len(out_order)
    half = (ww // 2) * cout

    R = np.zeros((3, 2, no, nb * hh), np.float32)
    for ky in range(3):
        for par in range(2):
            for o, (n, j) in enumerate(out_order):
                r = 2 * j + par + ky - 1
                if 0 <= r < hh:
                    R[ky, par, o, n * hh + r] = 1.0
    R = R.reshape(3 * 2 * no, nb * hh)

    M = np.zeros((3, ww * cin, ww * cout), np.float32)
    brow = np.zeros((1, ww * cout), np.float32)
    for ox in range(ww):
        c0 = (ox % 2) * half + (ox // 2) * cout
        brow[0, c0:c0 + cout] = b
        for ky in range(3):
            for kx in range(3):
                sx = ox + kx - 1
                if 0 <= sx < ww:
                    M[ky, sx * cin:(sx + 1) * cin, c0:c0 + cout] = w[:, :, ky, kx].T
    return R, M, brow


def _decoder_mats(wt1, bt1, wt2, bt2, W, rg):
    """tconv1 (2x2 s2) + ReLU + tconv2 (2x2 s2) acting on lane-packed groups of `rg`
    quarter-resolution rows, producing a lane-dense (rg*4*W*co)-wide output row."""
    c2, c1 = int(wt1.shape[0]), int(wt1.shape[1])
    co = int(wt2.shape[1])
    w4, w2 = W // 4, W // 2

    # quarter-res row `a` of a group -> half-res rows (2a, 2a+1), packed on lanes.
    T1 = np.zeros((rg, w4 * c2, 2 * rg * w2 * c1), np.float32)
    for a in range(rg):
        for x4 in range(w4):
            for dy in range(2):
                for dx in range(2):
                    r0 = x4 * c2
                    c0 = (2 * a + dy) * (w2 * c1) + (2 * x4 + dx) * c1
                    T1[a, r0:r0 + c2, c0:c0 + c1] = wt1[:, :, dy, dx]
    bt1row = np.tile(bt1, 2 * rg * w2).reshape(1, 2 * rg * w2 * c1)

    # half-res row `m` of a group -> full-res rows (2m, 2m+1), row-major on lanes.
    T2 = np.zeros((2 * rg * w2 * c1, 4 * rg * W * co), np.float32)
    for m in range(2 * rg):
        for x2 in range(w2):
            for dy in range(2):
                for dx in range(2):
                    r0 = m * (w2 * c1) + x2 * c1
                    c0 = (2 * m + dy) * (W * co) + (2 * x2 + dx) * co
                    T2[r0:r0 + c1, c0:c0 + co] = wt2[:, :, dy, dx]
    bt2row = np.tile(bt2, 4 * rg * W).reshape(1, 4 * rg * W * co)
    return T1, bt1row, T2, bt2row


# ----------------------------------------------------------------------------
# Build the fused forward (single pallas_call), returns a jitted x -> y function.
# ----------------------------------------------------------------------------
def make_forward(params, *, batch, in_planes, planes, H, W, nb=None):
    assert H % 4 == 0 and W % 4 == 0 and planes % 2 == 0
    N, Ci = batch, in_planes

    # Batching: nb images per grid step; prefer an even grid (v7x has 2 TensorCores).
    if nb is None:
        divs = [d for d in (8, 4, 2, 1) if N % d == 0]
        even = [d for d in divs if (N // d) % 2 == 0]
        nb = (even or divs)[0]
    assert N % nb == 0
    grid_len = N // nb

    # Decoder lane packing: group `rg` quarter-res rows per output slab row so the
    # final store width is a multiple of 128 lanes whenever possible.
    h4 = H // 4
    rg = next((g for g in range(1, h4 + 1)
               if h4 % g == 0 and (g * 4 * W * Ci) % 128 == 0), h4)
    ng = h4 // rg                      # output slab rows per image
    out_lanes = rg * 4 * W * Ci

    p = {k: np.asarray(v, np.float32) for k, v in params.items()}

    order1 = [(n, j) for n in range(nb) for j in range(H // 2)]
    r1, m1, b1 = _conv_pool_mats(p["conv1_w"], p["conv1_b"], H, W, nb, order1)
    # conv2 rows are emitted pre-ordered for the decoder: block a holds quarter-res
    # row (g*rg + a) of every (image, group) -> the decoder only needs static slices.
    order2 = [(n, g * rg + a) for a in range(rg) for n in range(nb) for g in range(ng)]
    r2, m2, b2 = _conv_pool_mats(p["conv2_w"], p["conv2_b"], H // 2, W // 2, nb, order2)
    t1, bt1, t2, bt2 = _decoder_mats(p["tconv1_w"], p["tconv1_b"],
                                     p["tconv2_w"], p["tconv2_b"], W, rg)

    weights = tuple(jnp.asarray(a) for a in (r1, m1, b1, r2, m2, b2, t1, bt1, t2, bt2))

    def kernel(x_ref, r1_ref, m1_ref, b1_ref, r2_ref, m2_ref, b2_ref,
               t1_ref, bt1_ref, t2_ref, bt2_ref, o_ref):
        f32 = jnp.float32

        def conv_relu_pool(inp, r_ref, m_ref, b_ref):
            # One matmul gathers all 3 (ky) x 2 (pool-row parity) row sets of every
            # image in the block (zero rows of r_ref encode the zero padding).
            g = jnp.dot(r_ref[...], inp, preferred_element_type=f32)
            rows = g.shape[0] // 3
            y = jnp.dot(g[0:rows], m_ref[0], preferred_element_type=f32)
            for ky in range(1, 3):                       # static unroll, MXU accumulate
                y = y + jnp.dot(g[ky * rows:(ky + 1) * rows], m_ref[ky],
                                preferred_element_type=f32)
            y = jnp.maximum(y + b_ref[...], 0.0)         # bias (once) + ReLU
            h = y.shape[0] // 2
            y = jnp.maximum(y[:h], y[h:])                # 2x2 pool rows: parity max (VPU)
            c = y.shape[1] // 2
            return jnp.maximum(y[:, :c], y[:, c:])       # 2x2 pool cols: lane-half max

        x = x_ref[...]                                           # (nb*H, W*Ci)
        p1 = conv_relu_pool(x, r1_ref, m1_ref, b1_ref)           # (nb*H/2, (W/2)*C1)
        p2 = conv_relu_pool(p1, r2_ref, m2_ref, b2_ref)          # (nb*H/4, (W/4)*C2)

        # Decoder: tconv1 + ReLU, tconv2 + sigmoid; each output row packs rg*4 image
        # rows on the lane axis -> single lane-dense (>=128) HBM store.
        qrows = p2.shape[0] // rg
        u = jnp.dot(p2[0:qrows], t1_ref[0], preferred_element_type=f32)
        for a in range(1, rg):
            u = u + jnp.dot(p2[a * qrows:(a + 1) * qrows], t1_ref[a],
                            preferred_element_type=f32)
        u = jnp.maximum(u + bt1_ref[...], 0.0)
        z = jax.nn.sigmoid(jnp.dot(u, t2_ref[...], preferred_element_type=f32)
                           + bt2_ref[...])
        o_ref[...] = z.astype(o_ref.dtype)

    def const_spec(a):
        zeros = (0,) * a.ndim
        return pl.BlockSpec(a.shape, lambda i, _z=zeros: _z)

    call = pl.pallas_call(
        kernel,
        out_shape=jax.ShapeDtypeStruct((N * ng, out_lanes), jnp.float32),
        grid=(grid_len,),
        in_specs=[pl.BlockSpec((nb * H, W * Ci), lambda i: (i, 0))]
                 + [const_spec(a) for a in weights],
        out_specs=pl.BlockSpec((nb * ng, out_lanes), lambda i: (i, 0)),
        compiler_params=pltpu.CompilerParams(
            dimension_semantics=("parallel",),
            vmem_limit_bytes=32 * 1024 * 1024),
    )

    @jax.jit
    def forward(x_nchw):
        assert x_nchw.shape == (N, Ci, H, W)
        x2d = jnp.transpose(x_nchw, (0, 2, 3, 1)).reshape(N * H, W * Ci)
        z = call(x2d, *weights)
        # slab row (img*ng + g) holds image rows [4*rg*g, 4*rg*(g+1)) row-major.
        out_nhwc = z.reshape(N, H, W, Ci)
        return jnp.transpose(out_nhwc, (0, 3, 1, 2))

    return forward


# ----------------------------------------------------------------------------
# Pure-JAX reference (independent code path) for validation.
# ----------------------------------------------------------------------------
def _ref_forward(x_nchw, params):
    x = jnp.transpose(x_nchw, (0, 2, 3, 1))

    def conv(x, w, b):
        k = jnp.transpose(w, (2, 3, 1, 0))
        y = jax.lax.conv_general_dilated(
            x, k, (1, 1), "SAME", dimension_numbers=("NHWC", "HWIO", "NHWC"))
        return jax.nn.relu(y + b)

    def pool(x):
        n, h, w, c = x.shape
        return jnp.max(x.reshape(n, h // 2, 2, w // 2, 2, c), axis=(2, 4))

    def tconv(x, w, b, act):
        n, hi, wi, cin = x.shape
        cout = w.shape[1]
        out = jnp.zeros((n, 2 * hi, 2 * wi, cout), jnp.float32)
        for dy in range(2):
            for dx in range(2):
                out = out.at[:, dy::2, dx::2, :].set(
                    jnp.einsum("nijc,co->nijo", x, w[:, :, dy, dx]))
        return act(out + b)

    x = pool(conv(x, params["conv1_w"], params["conv1_b"]))
    x = pool(conv(x, params["conv2_w"], params["conv2_b"]))
    x = tconv(x, params["tconv1_w"], params["tconv1_b"], jax.nn.relu)
    x = tconv(x, params["tconv2_w"], params["tconv2_b"], jax.nn.sigmoid)
    return jnp.transpose(x, (0, 3, 1, 2))


# ----------------------------------------------------------------------------
# Deterministic parameter init + driver
# ----------------------------------------------------------------------------
def init_params(key, in_planes=1, planes=16):
    ks = jax.random.split(key, 8)
    return {
        "conv1_w": 0.2 * jax.random.normal(ks[0], (planes, in_planes, 3, 3), jnp.float32),
        "conv1_b": 0.1 * jax.random.normal(ks[1], (planes,), jnp.float32),
        "conv2_w": 0.2 * jax.random.normal(ks[2], (planes // 2, planes, 3, 3), jnp.float32),
        "conv2_b": 0.1 * jax.random.normal(ks[3], (planes // 2,), jnp.float32),
        "tconv1_w": 0.2 * jax.random.normal(ks[4], (planes // 2, planes, 2, 2), jnp.float32),
        "tconv1_b": 0.1 * jax.random.normal(ks[5], (planes,), jnp.float32),
        "tconv2_w": 0.2 * jax.random.normal(ks[6], (planes, in_planes, 2, 2), jnp.float32),
        "tconv2_b": 0.1 * jax.random.normal(ks[7], (in_planes,), jnp.float32),
    }


if __name__ == "__main__":
    key = jax.random.PRNGKey(0)
    kx, kp = jax.random.split(key)

    in_planes, planes = 1, 16
    batch, H, W = 16, 16, 16                       # nb=8 per step -> grid=2 (even)
    x = jax.random.normal(kx, (batch, in_planes, H, W), jnp.float32)   # NCHW like PyTorch
    params = init_params(kp, in_planes=in_planes, planes=planes)

    fwd = make_forward(params, batch=batch, in_planes=in_planes, planes=planes, H=H, W=W)
    out = jax.block_until_ready(fwd(x))
    assert out.shape == (batch, in_planes, H, W), out.shape

    ref = jax.block_until_ready(_ref_forward(x, params))
    err = float(jnp.max(jnp.abs(out - ref)))
    if not jnp.allclose(out, ref, atol=2e-4, rtol=2e-4):
        raise AssertionError(f"Pallas output mismatch vs reference, max err {err}")

    print("KERNEL_OK")
</pallas_src>

<mosaic_0001>
module attributes {stable_mosaic.version = 11 : i64} {
  func.func @kernel(%arg0: i32, %arg1: memref<128x16xf32, #tpu.memory_space<vmem>>, %arg2: memref<384x128xf32, #tpu.memory_space<vmem>>, %arg3: memref<3x16x256xf32, #tpu.memory_space<vmem>>, %arg4: memref<1x256xf32, #tpu.memory_space<vmem>>, %arg5: memref<192x64xf32, #tpu.memory_space<vmem>>, %arg6: memref<3x128x64xf32, #tpu.memory_space<vmem>>, %arg7: memref<1x64xf32, #tpu.memory_space<vmem>>, %arg8: memref<2x32x512xf32, #tpu.memory_space<vmem>>, %arg9: memref<1x512xf32, #tpu.memory_space<vmem>>, %arg10: memref<512x128xf32, #tpu.memory_space<vmem>>, %arg11: memref<1x128xf32, #tpu.memory_space<vmem>>, %arg12: memref<16x128xf32, #tpu.memory_space<vmem>>) attributes {dimension_semantics = [#tpu.dimension_semantics<parallel>], iteration_bounds = array<i64: 2>, scalar_prefetch = 0 : i64, scratch_operands = 0 : i64, tpu.core_type = #tpu.core_type<tc>, window_params = [{transform_indices = @transform_0, window_bounds = array<i64: 128, 16>}, {pipeline_mode = #tpu.pipeline_mode<synchronous>, transform_indices = @transform_1, window_bounds = array<i64: 384, 128>}, {pipeline_mode = #tpu.pipeline_mode<synchronous>, transform_indices = @transform_2, window_bounds = array<i64: 3, 16, 256>}, {pipeline_mode = #tpu.pipeline_mode<synchronous>, transform_indices = @transform_3, window_bounds = array<i64: 1, 256>}, {pipeline_mode = #tpu.pipeline_mode<synchronous>, transform_indices = @transform_4, window_bounds = array<i64: 192, 64>}, {pipeline_mode = #tpu.pipeline_mode<synchronous>, transform_indices = @transform_5, window_bounds = array<i64: 3, 128, 64>}, {pipeline_mode = #tpu.pipeline_mode<synchronous>, transform_indices = @transform_6, window_bounds = array<i64: 1, 64>}, {pipeline_mode = #tpu.pipeline_mode<synchronous>, transform_indices = @transform_7, window_bounds = array<i64: 2, 32, 512>}, {pipeline_mode = #tpu.pipeline_mode<synchronous>, transform_indices = @transform_8, window_bounds = array<i64: 1, 512>}, {pipeline_mode = #tpu.pipeline_mode<synchronous>, transform_indices = @transform_9, window_bounds = array<i64: 512, 128>}, {pipeline_mode = #tpu.pipeline_mode<synchronous>, transform_indices = @transform_10, window_bounds = array<i64: 1, 128>}, {transform_indices = @transform_11, window_bounds = array<i64: 16, 128>}]} {
    %c0 = arith.constant 0 : index
    %c0_0 = arith.constant 0 : index
    %0 = vector.load %arg1[%c0, %c0_0] : memref<128x16xf32, #tpu.memory_space<vmem>>, vector<128x16xf32>
    %c0_1 = arith.constant 0 : index
    %c0_2 = arith.constant 0 : index
    %1 = vector.load %arg2[%c0_1, %c0_2] : memref<384x128xf32, #tpu.memory_space<vmem>>, vector<384x128xf32>
    %cst = arith.constant dense<0.000000e+00> : vector<384x16xf32>
    %2 = tpu.matmul %1, %0, %cst {dimension_numbers = #tpu.dot_dimension_numbers<[1], [0], [0], [1], [0, 0, 1, 1], [], []>} : vector<384x128xf32>, vector<128x16xf32>, vector<384x16xf32> -> vector<384x16xf32>
    %3 = vector.extract_strided_slice %2 {offsets = [0, 0], sizes = [128, 16], strides = [1, 1]} : vector<384x16xf32> to vector<128x16xf32>
    %c0_3 = arith.constant 0 : index
    %c0_4 = arith.constant 0 : index
    %c0_5 = arith.constant 0 : index
    %4 = vector.load %arg3[%c0_3, %c0_4, %c0_5] : memref<3x16x256xf32, #tpu.memory_space<vmem>>, vector<1x16x256xf32>
    %5 = vector.shape_cast %4 : vector<1x16x256xf32> to vector<16x256xf32>
    %cst_6 = arith.constant dense<0.000000e+00> : vector<128x256xf32>
    %6 = tpu.matmul %3, %5, %cst_6 {dimension_numbers = #tpu.dot_dimension_numbers<[1], [0], [0], [1], [0, 0, 1, 1], [], []>} : vector<128x16xf32>, vector<16x256xf32>, vector<128x256xf32> -> vector<128x256xf32>
    %7 = vector.extract_strided_slice %2 {offsets = [128, 0], sizes = [128, 16], strides = [1, 1]} : vector<384x16xf32> to vector<128x16xf32>
    %c1 = arith.constant 1 : index
    %c0_7 = arith.constant 0 : index
    %c0_8 = arith.constant 0 : index
    %8 = vector.load %arg3[%c1, %c0_7, %c0_8] : memref<3x16x256xf32, #tpu.memory_space<vmem>>, vector<1x16x256xf32>
    %9 = vector.shape_cast %8 : vector<1x16x256xf32> to vector<16x256xf32>
    %cst_9 = arith.constant dense<0.000000e+00> : vector<128x256xf32>
    %10 = tpu.matmul %7, %9, %cst_9 {dimension_numbers = #tpu.dot_dimension_numbers<[1], [0], [0], [1], [0, 0, 1, 1], [], []>} : vector<128x16xf32>, vector<16x256xf32>, vector<128x256xf32> -> vector<128x256xf32>
    %11 = arith.addf %6, %10 : vector<128x256xf32>
    %12 = vector.extract_strided_slice %2 {offsets = [256, 0], sizes = [128, 16], strides = [1, 1]} : vector<384x16xf32> to vector<128x16xf32>
    %c2 = arith.constant 2 : index
    %c0_10 = arith.constant 0 : index
    %c0_11 = arith.constant 0 : index
    %13 = vector.load %arg3[%c2, %c0_10, %c0_11] : memref<3x16x256xf32, #tpu.memory_space<vmem>>, vector<1x16x256xf32>
    %14 = vector.shape_cast %13 : vector<1x16x256xf32> to vector<16x256xf32>
    %cst_12 = arith.constant dense<0.000000e+00> : vector<128x256xf32>
    %15 = tpu.matmul %12, %14, %cst_12 {dimension_numbers = #tpu.dot_dimension_numbers<[1], [0], [0], [1], [0, 0, 1, 1], [], []>} : vector<128x16xf32>, vector<16x256xf32>, vector<128x256xf32> -> vector<128x256xf32>
    %16 = arith.addf %11, %15 : vector<128x256xf32>
    %c0_13 = arith.constant 0 : index
    %c0_14 = arith.constant 0 : index
    %17 = vector.load %arg4[%c0_13, %c0_14] : memref<1x256xf32, #tpu.memory_space<vmem>>, vector<1x256xf32>
    %18 = vector.broadcast %17 : vector<1x256xf32> to vector<128x256xf32>
    %19 = arith.addf %16, %18 : vector<128x256xf32>
    %cst_15 = arith.constant 0.000000e+00 : f32
    %20 = vector.broadcast %cst_15 : f32 to vector<128x256xf32>
    %21 = arith.maximumf %19, %20 : vector<128x256xf32>
    %22 = vector.extract_strided_slice %21 {offsets = [0, 0], sizes = [64, 256], strides = [1, 1]} : vector<128x256xf32> to vector<64x256xf32>
    %23 = vector.extract_strided_slice %21 {offsets = [64, 0], sizes = [64, 256], strides = [1, 1]} : vector<128x256xf32> to vector<64x256xf32>
    %24 = arith.maximumf %22, %23 : vector<64x256xf32>
    %25 = vector.extract_strided_slice %24 {offsets = [0, 0], sizes = [64, 128], strides = [1, 1]} : vector<64x256xf32> to vector<64x128xf32>
    %26 = vector.extract_strided_slice %24 {offsets = [0, 128], sizes = [64, 128], strides = [1, 1]} : vector<64x256xf32> to vector<64x128xf32>
    %27 = arith.maximumf %25, %26 : vector<64x128xf32>
    %c0_16 = arith.constant 0 : index
    %c0_17 = arith.constant 0 : index
    %28 = vector.load %arg5[%c0_16, %c0_17] : memref<192x64xf32, #tpu.memory_space<vmem>>, vector<192x64xf32>
    %cst_18 = arith.constant dense<0.000000e+00> : vector<192x128xf32>
    %29 = tpu.matmul %28, %27, %cst_18 {dimension_numbers = #tpu.dot_dimension_numbers<[1], [0], [0], [1], [0, 0, 1, 1], [], []>} : vector<192x64xf32>, vector<64x128xf32>, vector<192x128xf32> -> vector<192x128xf32>
    %30 = vector.extract_strided_slice %29 {offsets = [0, 0], sizes = [64, 128], strides = [1, 1]} : vector<192x128xf32> to vector<64x128xf32>
    %c0_19 = arith.constant 0 : index
    %c0_20 = arith.constant 0 : index
    %c0_21 = arith.constant 0 : index
    %31 = vector.load %arg6[%c0_19, %c0_20, %c0_21] : memref<3x128x64xf32, #tpu.memory_space<vmem>>, vector<1x128x64xf32>
    %32 = vector.shape_cast %31 : vector<1x128x64xf32> to vector<128x64xf32>
    %cst_22 = arith.constant dense<0.000000e+00> : vector<64x64xf32>
    %33 = tpu.matmul %30, %32, %cst_22 {dimension_numbers = #tpu.dot_dimension_numbers<[1], [0], [0], [1], [0, 0, 1, 1], [], []>} : vector<64x128xf32>, vector<128x64xf32>, vector<64x64xf32> -> vector<64x64xf32>
    %34 = vector.extract_strided_slice %29 {offsets = [64, 0], sizes = [64, 128], strides = [1, 1]} : vector<192x128xf32> to vector<64x128xf32>
    %c1_23 = arith.constant 1 : index
    %c0_24 = arith.constant 0 : index
    %c0_25 = arith.constant 0 : index
    %35 = vector.load %arg6[%c1_23, %c0_24, %c0_25] : memref<3x128x64xf32, #tpu.memory_space<vmem>>, vector<1x128x64xf32>
    %36 = vector.shape_cast %35 : vector<1x128x64xf32> to vector<128x64xf32>
    %cst_26 = arith.constant dense<0.000000e+00> : vector<64x64xf32>
    %37 = tpu.matmul %34, %36, %cst_26 {dimension_numbers = #tpu.dot_dimension_numbers<[1], [0], [0], [1], [0, 0, 1, 1], [], []>} : vector<64x128xf32>, vector<128x64xf32>, vector<64x64xf32> -> vector<64x64xf32>
    %38 = arith.addf %33, %37 : vector<64x64xf32>
    %39 = vector.extract_strided_slice %29 {offsets = [128, 0], sizes = [64, 128], strides = [1, 1]} : vector<192x128xf32> to vector<64x128xf32>
    %c2_27 = arith.constant 2 : index
    %c0_28 = arith.constant 0 : index
    %c0_29 = arith.constant 0 : index
    %40 = vector.load %arg6[%c2_27, %c0_28, %c0_29] : memref<3x128x64xf32, #tpu.memory_space<vmem>>, vector<1x128x64xf32>
    %41 = vector.shape_cast %40 : vector<1x128x64xf32> to vector<128x64xf32>
    %cst_30 = arith.constant dense<0.000000e+00> : vector<64x64xf32>
    %42 = tpu.matmul %39, %41, %cst_30 {dimension_numbers = #tpu.dot_dimension_numbers<[1], [0], [0], [1], [0, 0, 1, 1], [], []>} : vector<64x128xf32>, vector<128x64xf32>, vector<64x64xf32> -> vector<64x64xf32>
    %43 = arith.addf %38, %42 : vector<64x64xf32>
    %c0_31 = arith.constant 0 : index
    %c0_32 = arith.constant 0 : index
    %44 = vector.load %arg7[%c0_31, %c0_32] : memref<1x64xf32, #tpu.memory_space<vmem>>, vector<1x64xf32>
    %45 = vector.broadcast %44 : vector<1x64xf32> to vector<64x64xf32>
    %46 = arith.addf %43, %45 : vector<64x64xf32>
    %cst_33 = arith.constant 0.000000e+00 : f32
    %47 = vector.broadcast %cst_33 : f32 to vector<64x64xf32>
    %48 = arith.maximumf %46, %47 : vector<64x64xf32>
    %49 = vector.extract_strided_slice %48 {offsets = [0, 0], sizes = [32, 64], strides = [1, 1]} : vector<64x64xf32> to vector<32x64xf32>
    %50 = vector.extract_strided_slice %48 {offsets = [32, 0], sizes = [32, 64], strides = [1, 1]} : vector<64x64xf32> to vector<32x64xf32>
    %51 = arith.maximumf %49, %50 : vector<32x64xf32>
    %52 = vector.extract_strided_slice %51 {offsets = [0, 0], sizes = [32, 32], strides = [1, 1]} : vector<32x64xf32> to vector<32x32xf32>
    %53 = vector.extract_strided_slice %51 {offsets = [0, 32], sizes = [32, 32], strides = [1, 1]} : vector<32x64xf32> to vector<32x32xf32>
    %54 = arith.maximumf %52, %53 : vector<32x32xf32>
    %55 = vector.extract_strided_slice %54 {offsets = [0, 0], sizes = [16, 32], strides = [1, 1]} : vector<32x32xf32> to vector<16x32xf32>
    %c0_34 = arith.constant 0 : index
    %c0_35 = arith.constant 0 : index
    %c0_36 = arith.constant 0 : index
    %56 = vector.load %arg8[%c0_34, %c0_35, %c0_36] : memref<2x32x512xf32, #tpu.memory_space<vmem>>, vector<1x32x512xf32>
    %57 = vector.shape_cast %56 : vector<1x32x512xf32> to vector<32x512xf32>
    %cst_37 = arith.constant dense<0.000000e+00> : vector<16x512xf32>
    %58 = tpu.matmul %55, %57, %cst_37 {dimension_numbers = #tpu.dot_dimension_numbers<[1], [0], [0], [1], [0, 0, 1, 1], [], []>} : vector<16x32xf32>, vector<32x512xf32>, vector<16x512xf32> -> vector<16x512xf32>
    %59 = vector.extract_strided_slice %54 {offsets = [16, 0], sizes = [16, 32], strides = [1, 1]} : vector<32x32xf32> to vector<16x32xf32>
    %c1_38 = arith.constant 1 : index
    %c0_39 = arith.constant 0 : index
    %c0_40 = arith.constant 0 : index
    %60 = vector.load %arg8[%c1_38, %c0_39, %c0_40] : memref<2x32x512xf32, #tpu.memory_space<vmem>>, vector<1x32x512xf32>
    %61 = vector.shape_cast %60 : vector<1x32x512xf32> to vector<32x512xf32>
    %cst_41 = arith.constant dense<0.000000e+00> : vector<16x512xf32>
    %62 = tpu.matmul %59, %61, %cst_41 {dimension_numbers = #tpu.dot_dimension_numbers<[1], [0], [0], [1], [0, 0, 1, 1], [], []>} : vector<16x32xf32>, vector<32x512xf32>, vector<16x512xf32> -> vector<16x512xf32>
    %63 = arith.addf %58, %62 : vector<16x512xf32>
    %c0_42 = arith.constant 0 : index
    %c0_43 = arith.constant 0 : index
    %64 = vector.load %arg9[%c0_42, %c0_43] : memref<1x512xf32, #tpu.memory_space<vmem>>, vector<1x512xf32>
    %65 = vector.broadcast %64 : vector<1x512xf32> to vector<16x512xf32>
    %66 = arith.addf %63, %65 : vector<16x512xf32>
    %cst_44 = arith.constant 0.000000e+00 : f32
    %67 = vector.broadcast %cst_44 : f32 to vector<16x512xf32>
    %68 = arith.maximumf %66, %67 : vector<16x512xf32>
    %c0_45 = arith.constant 0 : index
    %c0_46 = arith.constant 0 : index
    %69 = vector.load %arg10[%c0_45, %c0_46] : memref<512x128xf32, #tpu.memory_space<vmem>>, vector<512x128xf32>
    %cst_47 = arith.constant dense<0.000000e+00> : vector<16x128xf32>
    %70 = tpu.matmul %68, %69, %cst_47 {dimension_numbers = #tpu.dot_dimension_numbers<[1], [0], [0], [1], [0, 0, 1, 1], [], []>} : vector<16x512xf32>, vector<512x128xf32>, vector<16x128xf32> -> vector<16x128xf32>
    %c0_48 = arith.constant 0 : index
    %c0_49 = arith.constant 0 : index
    %71 = vector.load %arg11[%c0_48, %c0_49] : memref<1x128xf32, #tpu.memory_space<vmem>>, vector<1x128xf32>
    %72 = vector.broadcast %71 : vector<1x128xf32> to vector<16x128xf32>
    %73 = arith.addf %70, %72 : vector<16x128xf32>
    %74 = arith.negf %73 : vector<16x128xf32>
    %75 = math.exp %74 : vector<16x128xf32>
    %cst_50 = arith.constant 1.000000e+00 : f32
    %76 = vector.broadcast %cst_50 : f32 to vector<16x128xf32>
    %77 = arith.addf %76, %75 : vector<16x128xf32>
    %78 = arith.divf %76, %77 : vector<16x128xf32>
    %c0_51 = arith.constant 0 : index
    %c0_52 = arith.constant 0 : index
    %79 = vector.load %arg12[%c0_51, %c0_52] : memref<16x128xf32, #tpu.memory_space<vmem>>, vector<16x128xf32>
    tpu.vector_store %arg12[%c0_51, %c0_52], %78 {strides = array<i32>} : memref<16x128xf32, #tpu.memory_space<vmem>>, vector<16x128xf32>,
    return
  }
  func.func @transform_0(%arg0: i32) -> (i32, i32) {
    %c0_i32 = arith.constant 0 : i32
    %c0_i32_0 = arith.constant 0 : i32
    return %arg0, %c0_i32 : i32, i32
  }
  func.func @transform_1(%arg0: i32) -> (i32, i32) {
    %c0_i32 = arith.constant 0 : i32
    %c0_i32_0 = arith.constant 0 : i32
    %c0_i32_1 = arith.constant 0 : i32
    return %c0_i32, %c0_i32_0 : i32, i32
  }
  func.func @transform_2(%arg0: i32) -> (i32, i32, i32) {
    %c0_i32 = arith.constant 0 : i32
    %c0_i32_0 = arith.constant 0 : i32
    %c0_i32_1 = arith.constant 0 : i32
    %c0_i32_2 = arith.constant 0 : i32
    return %c0_i32, %c0_i32_0, %c0_i32_1 : i32, i32, i32
  }
  func.func @transform_3(%arg0: i32) -> (i32, i32) {
    %c0_i32 = arith.constant 0 : i32
    %c0_i32_0 = arith.constant 0 : i32
    %c0_i32_1 = arith.constant 0 : i32
    return %c0_i32, %c0_i32_0 : i32, i32
  }
  func.func @transform_4(%arg0: i32) -> (i32, i32) {
    %c0_i32 = arith.constant 0 : i32
    %c0_i32_0 = arith.constant 0 : i32
    %c0_i32_1 = arith.constant 0 : i32
    return %c0_i32, %c0_i32_0 : i32, i32
  }
  func.func @transform_5(%arg0: i32) -> (i32, i32, i32) {
    %c0_i32 = arith.constant 0 : i32
    %c0_i32_0 = arith.constant 0 : i32
    %c0_i32_1 = arith.constant 0 : i32
    %c0_i32_2 = arith.constant 0 : i32
    return %c0_i32, %c0_i32_0, %c0_i32_1 : i32, i32, i32
  }
  func.func @transform_6(%arg0: i32) -> (i32, i32) {
    %c0_i32 = arith.constant 0 : i32
    %c0_i32_0 = arith.constant 0 : i32
    %c0_i32_1 = arith.constant 0 : i32
    return %c0_i32, %c0_i32_0 : i32, i32
  }
  func.func @transform_7(%arg0: i32) -> (i32, i32, i32) {
    %c0_i32 = arith.constant 0 : i32
    %c0_i32_0 = arith.constant 0 : i32
    %c0_i32_1 = arith.constant 0 : i32
    %c0_i32_2 = arith.constant 0 : i32
    return %c0_i32, %c0_i32_0, %c0_i32_1 : i32, i32, i32
  }
  func.func @transform_8(%arg0: i32) -> (i32, i32) {
    %c0_i32 = arith.constant 0 : i32
    %c0_i32_0 = arith.constant 0 : i32
    %c0_i32_1 = arith.constant 0 : i32
    return %c0_i32, %c0_i32_0 : i32, i32
  }
  func.func @transform_9(%arg0: i32) -> (i32, i32) {
    %c0_i32 = arith.constant 0 : i32
    %c0_i32_0 = arith.constant 0 : i32
    %c0_i32_1 = arith.constant 0 : i32
    return %c0_i32, %c0_i32_0 : i32, i32
  }
  func.func @transform_10(%arg0: i32) -> (i32, i32) {
    %c0_i32 = arith.constant 0 : i32
    %c0_i32_0 = arith.constant 0 : i32
    %c0_i32_1 = arith.constant 0 : i32
    return %c0_i32, %c0_i32_0 : i32, i32
  }
  func.func @transform_11(%arg0: i32) -> (i32, i32) {
    %c0_i32 = arith.constant 0 : i32
    %c0_i32_0 = arith.constant 0 : i32
    return %arg0, %c0_i32 : i32, i32
  }
}

</mosaic_0001>

<llo_original>
// kernel: forward.1
$region0: #{forward.1}
  #allocation0 [shape = 'u32[]', space=smem, size = 0x4, offset = 0x4, fixed_abs, tag = 'smem constant byte address 0x4 - core index']
  #allocation1 [shape = 'u32[144,128]{1,0:T(1,128)}', space=vmem, size = 0x12000, scoped, tag = 'internal scratch']
  %s0 = inlined_call_operand.hbm [shape: f32[256,16], index: 0, kind: input, shape index: {}]
  %s1 = inlined_call_operand.hbm [shape: f32[384,128], index: 1, kind: input, shape index: {}]
  %s2 = inlined_call_operand.hbm [shape: f32[3,16,256], index: 2, kind: input, shape index: {}]
  %s3 = inlined_call_operand.vmem [shape: f32[1,256], index: 3, kind: input, shape index: {}]
  %s4 = inlined_call_operand.hbm [shape: f32[192,64], index: 4, kind: input, shape index: {}]
  %s5 = inlined_call_operand.hbm [shape: f32[3,128,64], index: 5, kind: input, shape index: {}]
  %s6 = inlined_call_operand.vmem [shape: f32[1,64], index: 6, kind: input, shape index: {}]
  %s7 = inlined_call_operand.hbm [shape: f32[2,32,512], index: 7, kind: input, shape index: {}]
  %s8 = inlined_call_operand.vmem [shape: f32[1,512], index: 8, kind: input, shape index: {}]
  %s9 = inlined_call_operand.hbm [shape: f32[512,128], index: 9, kind: input, shape index: {}]
  %s10 = inlined_call_operand.vmem [shape: f32[1,128], index: 10, kind: input, shape index: {}]
  %s11 = inlined_call_operand.vmem [shape: f32[32,128], index: 11, kind: output, shape index: {}]
  %s12 = sld [smem:[#allocation0]]
  $region105: #{forward.1} parent=0
    _
  %s14 = ssub.s32 1, %s12
  %s15 = scalar_select 0, %s14, %s12
  $region1: #{forward.1} parent=0
    #allocation2 [shape = 'u8[131072]{0}', space=vmem, size = 0x20000, scoped, tag = 'input window, operand 0']
    #allocation3 [shape = 's32[2]{0}', space=sflag, size = 0x8, scoped, tag = 'scoped memory for forward.1']
    #allocation4 [shape = 'u8[196608]{0}', space=vmem, size = 0x30000, scoped, tag = 'input window, operand 1, single buffered']
    #allocation5 [shape = 's32[1]{0}', space=sflag, size = 0x4, scoped, tag = 'scoped memory for forward.1']
    #allocation6 [shape = 'u8[49152]{0}', space=vmem, size = 0xc000, scoped, tag = 'input window, operand 2, single buffered']
    #allocation7 [shape = 'u8[98304]{0}', space=vmem, size = 0x18000, scoped, tag = 'input window, operand 4, single buffered']
    #allocation8 [shape = 's32[1]{0}', space=sflag, size = 0x4, scoped, tag = 'scoped memory for forward.1']
    #allocation9 [shape = 'u8[196608]{0}', space=vmem, size = 0x30000, scoped, tag = 'input window, operand 5, single buffered']
    #allocation10 [shape = 'u8[131072]{0}', space=vmem, size = 0x20000, scoped, tag = 'input window, operand 7, single buffered']
    #allocation11 [shape = 's32[1]{0}', space=sflag, size = 0x4, scoped, tag = 'scoped memory for forward.1']
    #allocation12 [shape = 'u8[262144]{0}', space=vmem, size = 0x40000, scoped, tag = 'input window, operand 9, single buffered']
    %16 = vsyncpa [#allocation3], 0
    %s17 = scalar_lea.sflag [#allocation3], 1
    %18 = vsyncpa %s17, 0
    %19 = vsyncpa [#allocation5], 0
    %20 = vsyncpa [#allocation8], 0
    %21 = vsyncpa [#allocation11], 0
    loop: start=0, step=1, limit=4
    $region2: #{forward.1} parent=1 // loop_pre_header
      _
    $region3: #{forward.1} parent=1 // loop_header
      %s23 = sphi 0, %s27
      %p24 = scmp.ge.s32.totalorder %s23, 4
      %s33 = sphi 0, %s35
      %s36 = sphi 0, %s33
      %s37 = sphi 0, %s36
      %s53 = sphi 0, %s37
      %s57 = sphi 0, %s57
      %s59 = sphi 0, %s57
      %s60 = sphi 0, %s59
      %s74 = sphi 0, %s60
      %s78 = sphi 0, %s78
      %s80 = sphi 0, %s78
      %s81 = sphi 0, %s80
      %s95 = sphi 0, %s81
      %s99 = sphi 0, %s99
      %s101 = sphi 0, %s99
      %s102 = sphi 0, %s101
      %s116 = sphi 0, %s102
      %s120 = sphi 0, %s120
      %s122 = sphi 0, %s120
      %s123 = sphi 0, %s122
      %s137 = sphi 0, %s123
      %s141 = sphi 0, %s141
      %s143 = sphi 0, %s141
      %s144 = sphi 0, %s143
      %s158 = sphi 0, %s144
      %s162 = sphi 0, %s162
      %s164 = sphi 0, %s162
      %s165 = sphi 0, %s164
      %s179 = sphi 0, %s165
      %s183 = sphi 0, %s183
      %s185 = sphi 0, %s183
      %s186 = sphi 0, %s185
      %s200 = sphi 0, %s186
      %s204 = sphi 0, %s204
      %s206 = sphi 0, %s204
      %s207 = sphi 0, %s206
      %s221 = sphi 0, %s207
      %s225 = sphi 0, %s225
      %s227 = sphi 0, %s225
      %s228 = sphi 0, %s227
      %s242 = sphi 0, %s228
      %s246 = sphi 0, %s246
      %s248 = sphi 0, %s246
      %s249 = sphi 0, %s248
      %s263 = sphi 0, %s249
      %s269 = sphi 0, %s271
      %s272 = sphi 0, %s269
      %s273 = sphi 0, %s272
      %s289 = sphi 0, %s273
    $region4: #{forward.1} parent=1 // loop_header_branch
      %26 = sbr.rel (%p24) target = $region8
    $region5: #{forward.1} parent=1 // loop_body
      %s28 = ssub.s32 %s23, 1
      %s29 = ssub.s32 %s23, 2
      %s30 = sadd.s32 %s23, 1
      %s31 = ssub.s32 %s23, %s30
      %p32 = scmp.eq.s32.totalorder %s31, 0
      %s34 = sadd.s32 %s33, 1
      %s35 = scalar_select %p32, %s33, %s34
      %p38 = pneg %p32
      %p39 = scmp.eq.s32.totalorder %s23, 1
      %p40 = por %p38, %p39
      %p41 = scmp.ne.s32.totalorder %s33, %s36
      %p42 = scmp.eq.s32.totalorder %s23, 0
      %p43 = por %p41, %p42
      %p44 = scmp.ne.s32.totalorder %s33, %s36
      %p45 = scmp.eq.s32.totalorder %s28, 1
      %p46 = por %p44, %p45
      %p47 = scmp.ne.s32.totalorder %s36, %s37
      %p48 = scmp.eq.s32.totalorder %s28, 0
      %p49 = por %p47, %p48
      %p50 = scmp.ne.s32.totalorder %s36, %s37
      %p51 = scmp.eq.s32.totalorder %s29, 1
      %p52 = por %p50, %p51
      %p54 = scmp.ne.s32.totalorder %s37, %s53
      %p55 = scmp.eq.s32.totalorder %s29, 0
      %p56 = por %p54, %p55
      %s58 = sadd.s32 %s57, 1
      %p61 = scmp.eq.s32.totalorder %s23, 1
      %p62 = scmp.ne.s32.totalorder %s57, %s59
      %p63 = scmp.eq.s32.totalorder %s23, 0
      %p64 = por %p62, %p63
      %p65 = scmp.ne.s32.totalorder %s57, %s59
      %p66 = scmp.eq.s32.totalorder %s28, 1
      %p67 = por %p65, %p66
      %p68 = scmp.ne.s32.totalorder %s59, %s60
      %p69 = scmp.eq.s32.totalorder %s28, 0
      %p70 = por %p68, %p69
      %p71 = scmp.ne.s32.totalorder %s59, %s60
      %p72 = scmp.eq.s32.totalorder %s29, 1
      %p73 = por %p71, %p72
      %p75 = scmp.ne.s32.totalorder %s60, %s74
      %p76 = scmp.eq.s32.totalorder %s29, 0
      %p77 = por %p75, %p76
      %s79 = sadd.s32 %s78, 1
      %p82 = scmp.eq.s32.totalorder %s23, 1
      %p83 = scmp.ne.s32.totalorder %s78, %s80
      %p84 = scmp.eq.s32.totalorder %s23, 0
      %p85 = por %p83, %p84
      %p86 = scmp.ne.s32.totalorder %s78, %s80
      %p87 = scmp.eq.s32.totalorder %s28, 1
      %p88 = por %p86, %p87
      %p89 = scmp.ne.s32.totalorder %s80, %s81
      %p90 = scmp.eq.s32.totalorder %s28, 0
      %p91 = por %p89, %p90
      %p92 = scmp.ne.s32.totalorder %s80, %s81
      %p93 = scmp.eq.s32.totalorder %s29, 1
      %p94 = por %p92, %p93
      %p96 = scmp.ne.s32.totalorder %s81, %s95
      %p97 = scmp.eq.s32.totalorder %s29, 0
      %p98 = por %p96, %p97
      %s100 = sadd.s32 %s99, 1
      %p103 = scmp.eq.s32.totalorder %s23, 1
      %p104 = scmp.ne.s32.totalorder %s99, %s101
      %p105 = scmp.eq.s32.totalorder %s23, 0
      %p106 = por %p104, %p105
      %p107 = scmp.ne.s32.totalorder %s99, %s101
      %p108 = scmp.eq.s32.totalorder %s28, 1
      %p109 = por %p107, %p108
      %p110 = scmp.ne.s32.totalorder %s101, %s102
      %p111 = scmp.eq.s32.totalorder %s28, 0
      %p112 = por %p110, %p111
      %p113 = scmp.ne.s32.totalorder %s101, %s102
      %p114 = scmp.eq.s32.totalorder %s29, 1
      %p115 = por %p113, %p114
      %p117 = scmp.ne.s32.totalorder %s102, %s116
      %p118 = scmp.eq.s32.totalorder %s29, 0
      %p119 = por %p117, %p118
      %s121 = sadd.s32 %s120, 1
      %p124 = scmp.eq.s32.totalorder %s23, 1
      %p125 = scmp.ne.s32.totalorder %s120, %s122
      %p126 = scmp.eq.s32.totalorder %s23, 0
      %p127 = por %p125, %p126
      %p128 = scmp.ne.s32.totalorder %s120, %s122
      %p129 = scmp.eq.s32.totalorder %s28, 1
      %p130 = por %p128, %p129
      %p131 = scmp.ne.s32.totalorder %s122, %s123
      %p132 = scmp.eq.s32.totalorder %s28, 0
      %p133 = por %p131, %p132
      %p134 = scmp.ne.s32.totalorder %s122, %s123
      %p135 = scmp.eq.s32.totalorder %s29, 1
      %p136 = por %p134, %p135
      %p138 = scmp.ne.s32.totalorder %s123, %s137
      %p139 = scmp.eq.s32.totalorder %s29, 0
      %p140 = por %p138, %p139
      %s142 = sadd.s32 %s141, 1
      %p145 = scmp.eq.s32.totalorder %s23, 1
      %p146 = scmp.ne.s32.totalorder %s141, %s143
      %p147 = scmp.eq.s32.totalorder %s23, 0
      %p148 = por %p146, %p147
      %p149 = scmp.ne.s32.totalorder %s141, %s143
      %p150 = scmp.eq.s32.totalorder %s28, 1
      %p151 = por %p149, %p150
      %p152 = scmp.ne.s32.totalorder %s143, %s144
      %p153 = scmp.eq.s32.totalorder %s28, 0
      %p154 = por %p152, %p153
      %p155 = scmp.ne.s32.totalorder %s143, %s144
      %p156 = scmp.eq.s32.totalorder %s29, 1
      %p157 = por %p155, %p156
      %p159 = scmp.ne.s32.totalorder %s144, %s158
      %p160 = scmp.eq.s32.totalorder %s29, 0
      %p161 = por %p159, %p160
      %s163 = sadd.s32 %s162, 1
      %p166 = scmp.eq.s32.totalorder %s23, 1
      %p167 = scmp.ne.s32.totalorder %s162, %s164
      %p168 = scmp.eq.s32.totalorder %s23, 0
      %p169 = por %p167, %p168
      %p170 = scmp.ne.s32.totalorder %s162, %s164
      %p171 = scmp.eq.s32.totalorder %s28, 1
      %p172 = por %p170, %p171
      %p173 = scmp.ne.s32.totalorder %s164, %s165
      %p174 = scmp.eq.s32.totalorder %s28, 0
      %p175 = por %p173, %p174
      %p176 = scmp.ne.s32.totalorder %s164, %s165
      %p177 = scmp.eq.s32.totalorder %s29, 1
      %p178 = por %p176, %p177
      %p180 = scmp.ne.s32.totalorder %s165, %s179
      %p181 = scmp.eq.s32.totalorder %s29, 0
      %p182 = por %p180, %p181
      %s184 = sadd.s32 %s183, 1
      %p187 = scmp.eq.s32.totalorder %s23, 1
      %p188 = scmp.ne.s32.totalorder %s183, %s185
      %p189 = scmp.eq.s32.totalorder %s23, 0
      %p190 = por %p188, %p189
      %p191 = scmp.ne.s32.totalorder %s183, %s185
      %p192 = scmp.eq.s32.totalorder %s28, 1
      %p193 = por %p191, %p192
      %p194 = scmp.ne.s32.totalorder %s185, %s186
      %p195 = scmp.eq.s32.totalorder %s28, 0
      %p196 = por %p194, %p195
      %p197 = scmp.ne.s32.totalorder %s185, %s186
      %p198 = scmp.eq.s32.totalorder %s29, 1
      %p199 = por %p197, %p198
      %p201 = scmp.ne.s32.totalorder %s186, %s200
      %p202 = scmp.eq.s32.totalorder %s29, 0
      %p203 = por %p201, %p202
      %s205 = sadd.s32 %s204, 1
      %p208 = scmp.eq.s32.totalorder %s23, 1
      %p209 = scmp.ne.s32.totalorder %s204, %s206
      %p210 = scmp.eq.s32.totalorder %s23, 0
      %p211 = por %p209, %p210
      %p212 = scmp.ne.s32.totalorder %s204, %s206
      %p213 = scmp.eq.s32.totalorder %s28, 1
      %p214 = por %p212, %p213
      %p215 = scmp.ne.s32.totalorder %s206, %s207
      %p216 = scmp.eq.s32.totalorder %s28, 0
      %p217 = por %p215, %p216
      %p218 = scmp.ne.s32.totalorder %s206, %s207
      %p219 = scmp.eq.s32.totalorder %s29, 1
      %p220 = por %p218, %p219
      %p222 = scmp.ne.s32.totalorder %s207, %s221
      %p223 = scmp.eq.s32.totalorder %s29, 0
      %p224 = por %p222, %p223
      %s226 = sadd.s32 %s225, 1
      %p229 = scmp.eq.s32.totalorder %s23, 1
      %p230 = scmp.ne.s32.totalorder %s225, %s227
      %p231 = scmp.eq.s32.totalorder %s23, 0
      %p232 = por %p230, %p231
      %p233 = scmp.ne.s32.totalorder %s225, %s227
      %p234 = scmp.eq.s32.totalorder %s28, 1
      %p235 = por %p233, %p234
      %p236 = scmp.ne.s32.totalorder %s227, %s228
      %p237 = scmp.eq.s32.totalorder %s28, 0
      %p238 = por %p236, %p237
      %p239 = scmp.ne.s32.totalorder %s227, %s228
      %p240 = scmp.eq.s32.totalorder %s29, 1
      %p241 = por %p239, %p240
      %p243 = scmp.ne.s32.totalorder %s228, %s242
      %p244 = scmp.eq.s32.totalorder %s29, 0
      %p245 = por %p243, %p244
      %s247 = sadd.s32 %s246, 1
      %p250 = scmp.eq.s32.totalorder %s23, 1
      %p251 = scmp.ne.s32.totalorder %s246, %s248
      %p252 = scmp.eq.s32.totalorder %s23, 0
      %p253 = por %p251, %p252
      %p254 = scmp.ne.s32.totalorder %s246, %s248
      %p255 = scmp.eq.s32.totalorder %s28, 1
      %p256 = por %p254, %p255
      %p257 = scmp.ne.s32.totalorder %s248, %s249
      %p258 = scmp.eq.s32.totalorder %s28, 0
      %p259 = por %p257, %p258
      %p260 = scmp.ne.s32.totalorder %s248, %s249
      %p261 = scmp.eq.s32.totalorder %s29, 1
      %p262 = por %p260, %p261
      %p264 = scmp.ne.s32.totalorder %s249, %s263
      %p265 = scmp.eq.s32.totalorder %s29, 0
      %p266 = por %p264, %p265
      %s267 = ssub.s32 %s23, %s30
      %p268 = scmp.eq.s32.totalorder %s267, 0
      %s270 = sadd.s32 %s269, 1
      %s271 = scalar_select %p268, %s269, %s270
      %p274 = pneg %p268
      %p275 = scmp.eq.s32.totalorder %s23, 1
      %p276 = por %p274, %p275
      %p277 = scmp.ne.s32.totalorder %s269, %s272
      %p278 = scmp.eq.s32.totalorder %s23, 0
      %p279 = por %p277, %p278
      %p280 = scmp.ne.s32.totalorder %s269, %s272
      %p281 = scmp.eq.s32.totalorder %s28, 1
      %p282 = por %p280, %p281
      %p283 = scmp.ne.s32.totalorder %s272, %s273
      %p284 = scmp.eq.s32.totalorder %s28, 0
      %p285 = por %p283, %p284
      %p286 = scmp.ne.s32.totalorder %s272, %s273
      %p287 = scmp.eq.s32.totalorder %s29, 1
      %p288 = por %p286, %p287
      %p290 = scmp.ne.s32.totalorder %s273, %s289
      %p291 = scmp.eq.s32.totalorder %s29, 0
      %p292 = por %p290, %p291
      %p293 = scmp.le.s32.totalorder 1, %s23
      %p294 = scmp.lt.s32.totalorder %s23, 3
      %p295 = pnand %p293, %p294
      %p296 = pneg %p295
      // Predicated region
      $region9: #{forward.1} parent=5 // pred_check
        _
      $region10: #{forward.1} parent=5 // pred_check_branch
        %298 = sbr.rel (%p295) target = $region12
      $region11: #{forward.1} parent=5 // pred_region
        %s299 = ssub.s32 %s23, 1
        // Predicated region
        $region13: #{forward.1} parent=11 // pred_check
          %p300 = pneg %p70
        $region14: #{forward.1} parent=11 // pred_check_branch
          %302 = sbr.rel (%p300) target = $region16
        $region15: #{forward.1} parent=11 // pred_region
          %s304 = ssub.s32 6144, 6144
          %305 = vsyncadd [#allocation5], %s304
          %s306 = sshll.u32 [#allocation4], 4
          %s307 = int_to_ptr.vmem [resolvable:$true] %s306
          %312 = dma.hbm_to_vmem [thread:$0]  %s1, 6144, %s307, [#allocation5], 128, 128, 8
        $region16: #{forward.1} parent=11 // pred_fallthru
          _
        // Predicated region
        $region17: #{forward.1} parent=11 // pred_check
          %p313 = pneg %p91
        $region18: #{forward.1} parent=11 // pred_check_branch
          %315 = sbr.rel (%p313) target = $region20
        $region19: #{forward.1} parent=11 // pred_region
          %s317 = ssub.s32 1536, 1536
          %318 = vsyncadd [#allocation5], %s317
          %s319 = sshll.u32 [#allocation6], 4
          %s320 = int_to_ptr.vmem [resolvable:$true] %s319
          %325 = dma.hbm_to_vmem [thread:$0]  %s2, 1536, %s320, [#allocation5], 256, 256, 16
        $region20: #{forward.1} parent=11 // pred_fallthru
          _
        // Predicated region
        $region21: #{forward.1} parent=11 // pred_check
          %p326 = pneg %p112
        $region22: #{forward.1} parent=11 // pred_check_branch
          %328 = sbr.rel (%p326) target = $region24
        $region23: #{forward.1} parent=11 // pred_region
          _
        $region24: #{forward.1} parent=11 // pred_fallthru
          _
        // Predicated region
        $region25: #{forward.1} parent=11 // pred_check
          %p329 = pneg %p133
        $region26: #{forward.1} parent=11 // pred_check_branch
          %331 = sbr.rel (%p329) target = $region28
        $region27: #{forward.1} parent=11 // pred_region
          %s333 = ssub.s32 3072, 3072
          %334 = vsyncadd [#allocation8], %s333
          %s335 = sshll.u32 [#allocation7], 4
          %s336 = int_to_ptr.vmem [resolvable:$true] %s335
          %341 = dma.hbm_to_vmem [thread:$0]  %s4, 3072, %s336, [#allocation8], 128, 128, 8
        $region28: #{forward.1} parent=11 // pred_fallthru
          _
        // Predicated region
        $region29: #{forward.1} parent=11 // pred_check
          %p342 = pneg %p154
        $region30: #{forward.1} parent=11 // pred_check_branch
          %344 = sbr.rel (%p342) target = $region32
        $region31: #{forward.1} parent=11 // pred_region
          %s346 = ssub.s32 6144, 6144
          %347 = vsyncadd [#allocation8], %s346
          %s348 = sshll.u32 [#allocation9], 4
          %s349 = int_to_ptr.vmem [resolvable:$true] %s348
          %354 = dma.hbm_to_vmem [thread:$0]  %s5, 6144, %s349, [#allocation8], 128, 128, 8
        $region32: #{forward.1} parent=11 // pred_fallthru
          _
        // Predicated region
        $region33: #{forward.1} parent=11 // pred_check
          %p355 = pneg %p175
        $region34: #{forward.1} parent=11 // pred_check_branch
          %357 = sbr.rel (%p355) target = $region36
        $region35: #{forward.1} parent=11 // pred_region
          _
        $region36: #{forward.1} parent=11 // pred_fallthru
          _
        // Predicated region
        $region37: #{forward.1} parent=11 // pred_check
          %p358 = pneg %p196
        $region38: #{forward.1} parent=11 // pred_check_branch
          %360 = sbr.rel (%p358) target = $region40
        $region39: #{forward.1} parent=11 // pred_region
          %s362 = ssub.s32 4096, 4096
          %363 = vsyncadd [#allocation11], %s362
          %s364 = sshll.u32 [#allocation10], 4
          %s365 = int_to_ptr.vmem [resolvable:$true] %s364
          %370 = dma.hbm_to_vmem [thread:$0]  %s7, 4096, %s365, [#allocation11], 512, 512, 32
        $region40: #{forward.1} parent=11 // pred_fallthru
          _
        // Predicated region
        $region41: #{forward.1} parent=11 // pred_check
          %p371 = pneg %p217
        $region42: #{forward.1} parent=11 // pred_check_branch
          %373 = sbr.rel (%p371) target = $region44
        $region43: #{forward.1} parent=11 // pred_region
          _
        $region44: #{forward.1} parent=11 // pred_fallthru
          _
        // Predicated region
        $region45: #{forward.1} parent=11 // pred_check
          %p374 = pneg %p238
        $region46: #{forward.1} parent=11 // pred_check_branch
          %376 = sbr.rel (%p374) target = $region48
        $region47: #{forward.1} parent=11 // pred_region
          %s378 = ssub.s32 8192, 8192
          %379 = vsyncadd [#allocation11], %s378
          %s380 = sshll.u32 [#allocation12], 4
          %s381 = int_to_ptr.vmem [resolvable:$true] %s380
          %386 = dma.hbm_to_vmem [thread:$0]  %s9, 8192, %s381, [#allocation11], 128, 128, 8
        $region48: #{forward.1} parent=11 // pred_fallthru
          _
        // Predicated region
        $region49: #{forward.1} parent=11 // pred_check
          %p387 = pneg %p259
        $region50: #{forward.1} parent=11 // pred_check_branch
          %389 = sbr.rel (%p387) target = $region52
        $region51: #{forward.1} parent=11 // pred_region
          _
        $region52: #{forward.1} parent=11 // pred_fallthru
          _
      $region12: #{forward.1} parent=5 // pred_fallthru
        _
      %p390 = scmp.lt.s32.totalorder %s23, 2
      // Predicated region
      $region53: #{forward.1} parent=5 // pred_check
        %p391 = pneg %p390
      $region54: #{forward.1} parent=5 // pred_check_branch
        %393 = sbr.rel (%p391) target = $region56
      $region55: #{forward.1} parent=5 // pred_region
        // Predicated region
        $region57: #{forward.1} parent=55 // pred_check
          %p394 = pneg %p43
        $region58: #{forward.1} parent=55 // pred_check_branch
          %396 = sbr.rel (%p394) target = $region60
        $region59: #{forward.1} parent=55 // pred_region
          %s397 = sand.u32 %s33, 1
          %s398 = scalar_lea.sflag [#allocation3], %s397
          %s399 = sand.u32 %s33, 1
          %s400 = smul.addr %s399, 128
          %s401 = scalar_lea.vmem [#allocation2], %s400
          %s402 = smul.u32 16, %s23
          %s404 = ssub.s32 2048, 2048
          %405 = vsyncadd %s398, %s404
          %s406 = smul.addr %s402, 128
          %s407 = scalar_lea.hbm %s0, %s406
          %s408 = sshll.u32 %s401, 4
          %s409 = int_to_ptr.vmem [resolvable:$true] %s408
          %414 = dma.hbm_to_vmem [thread:$0]  %s407, 2048, %s409, %s398, 128, 128, 8
        $region60: #{forward.1} parent=55 // pred_fallthru
          _
      $region56: #{forward.1} parent=5 // pred_fallthru
        _
      %p415 = scmp.le.s32.totalorder 1, %s23
      %p416 = scmp.lt.s32.totalorder %s23, 3
      %p417 = pnand %p415, %p416
      %p418 = pneg %p417
      // Predicated region
      $region61: #{forward.1} parent=5 // pred_check
        _
      $region62: #{forward.1} parent=5 // pred_check_branch
        %420 = sbr.rel (%p417) target = $region64
      $region63: #{forward.1} parent=5 // pred_region
        %s421 = ssub.s32 %s23, 1
        %s422 = sand.u32 %s36, 1
        %s423 = scalar_lea.sflag [#allocation3], %s422
        %s424 = sand.u32 %s36, 1
        %s425 = smul.addr %s424, 128
        %s426 = scalar_lea.vmem [#allocation2], %s425
        // Predicated region
        $region65: #{forward.1} parent=63 // pred_check
          %p427 = pneg %p49
        $region66: #{forward.1} parent=63 // pred_check_branch
          %429 = sbr.rel (%p427) target = $region68
        $region67: #{forward.1} parent=63 // pred_region
          %430 = dma.done %s423, 2048
        $region68: #{forward.1} parent=63 // pred_fallthru
          _
        // Predicated region
        $region69: #{forward.1} parent=63 // pred_check
          %p431 = pneg %p70
        $region70: #{forward.1} parent=63 // pred_check_branch
          %433 = sbr.rel (%p431) target = $region72
        $region71: #{forward.1} parent=63 // pred_region
          %434 = dma.done [#allocation5], 6144
        $region72: #{forward.1} parent=63 // pred_fallthru
          _
        // Predicated region
        $region73: #{forward.1} parent=63 // pred_check
          %p435 = pneg %p91
        $region74: #{forward.1} parent=63 // pred_check_branch
          %437 = sbr.rel (%p435) target = $region76
        $region75: #{forward.1} parent=63 // pred_region
          %438 = dma.done [#allocation5], 1536
        $region76: #{forward.1} parent=63 // pred_fallthru
          _
        // Predicated region
        $region77: #{forward.1} parent=63 // pred_check
          %p439 = pneg %p133
        $region78: #{forward.1} parent=63 // pred_check_branch
          %441 = sbr.rel (%p439) target = $region80
        $region79: #{forward.1} parent=63 // pred_region
          %442 = dma.done [#allocation8], 3072
        $region80: #{forward.1} parent=63 // pred_fallthru
          _
        // Predicated region
        $region81: #{forward.1} parent=63 // pred_check
          %p443 = pneg %p154
        $region82: #{forward.1} parent=63 // pred_check_branch
          %445 = sbr.rel (%p443) target = $region84
        $region83: #{forward.1} parent=63 // pred_region
          %446 = dma.done [#allocation8], 6144
        $region84: #{forward.1} parent=63 // pred_fallthru
          _
        // Predicated region
        $region85: #{forward.1} parent=63 // pred_check
          %p447 = pneg %p196
        $region86: #{forward.1} parent=63 // pred_check_branch
          %449 = sbr.rel (%p447) target = $region88
        $region87: #{forward.1} parent=63 // pred_region
          %450 = dma.done [#allocation11], 4096
        $region88: #{forward.1} parent=63 // pred_fallthru
          _
        // Predicated region
        $region89: #{forward.1} parent=63 // pred_check
          %p451 = pneg %p238
        $region90: #{forward.1} parent=63 // pred_check_branch
          %453 = sbr.rel (%p451) target = $region92
        $region91: #{forward.1} parent=63 // pred_region
          %454 = dma.done [#allocation11], 8192
        $region92: #{forward.1} parent=63 // pred_fallthru
          _
        %s455 = sand.u32 %s36, 1
        %s456 = scalar_lea.sflag [#allocation3], %s455
        %s457 = sand.u32 %s36, 1
        %s458 = smul.addr %s457, 128
        %s459 = scalar_lea.vmem [#allocation2], %s458
        %p460 = pneg %p49
        %p461 = pneg %p46
        %p462 = pneg %p70
        %p463 = pneg %p67
        %p464 = pneg %p91
        %p465 = pneg %p88
        %p466 = pneg %p112
        %p467 = pneg %p109
        %p468 = pneg %p133
        %p469 = pneg %p130
        %p470 = pneg %p154
        %p471 = pneg %p151
        %p472 = pneg %p175
        %p473 = pneg %p172
        %p474 = pneg %p196
        %p475 = pneg %p193
        %p476 = pneg %p217
        %p477 = pneg %p214
        %p478 = pneg %p238
        %p479 = pneg %p235
        %p480 = pneg %p259
        %p481 = pneg %p256
        %p482 = pneg %p285
        %p483 = pneg %p282
        %s484 = smul.u32 2, %s28
        %p485 = scmp.lt.s32.totalorder %s484, 3
        %s486 = scalar_select %p485, %s484, 3
        %s487 = smul.addr %s486, 8
        %s488 = scalar_lea.vmem %s11, %s487
        %s489 = smul.u32 16, %s28
        %s490 = smul.u32 2, %s28
        %p491 = scmp.lt.s32.totalorder %s490, 3
        %s492 = scalar_select %p491, %s490, 3
        %s493 = smul.addr %s492, 8
        %s494 = scalar_lea.vmem %s11, %s493
        %s495 = smul.u32 2, %s28
        %v496 = vld [vmem:[%s426] sm:$0xff]
        %v497 = vld [vmem:[%s426 + $0x8] sm:$0xff]
        %v498 = vld [vmem:[%s426 + $0x10] sm:$0xff]
        %v499 = vld [vmem:[%s426 + $0x18] sm:$0xff]
        %v500 = vld [vmem:[%s426 + $0x20] sm:$0xff]
        %v501 = vld [vmem:[%s426 + $0x28] sm:$0xff]
        %v502 = vld [vmem:[%s426 + $0x30] sm:$0xff]
        %v503 = vld [vmem:[%s426 + $0x38] sm:$0xff]
        %v504 = vld [vmem:[%s426 + $0x40] sm:$0xff]
        %v505 = vld [vmem:[%s426 + $0x48] sm:$0xff]
        %v506 = vld [vmem:[%s426 + $0x50] sm:$0xff]
        %v507 = vld [vmem:[%s426 + $0x58] sm:$0xff]
        %v508 = vld [vmem:[%s426 + $0x60] sm:$0xff]
        %v509 = vld [vmem:[%s426 + $0x68] sm:$0xff]
        %v510 = vld [vmem:[%s426 + $0x70] sm:$0xff]
        %v511 = vld [vmem:[%s426 + $0x78] sm:$0xff]
        %v512 = vld [vmem:[#allocation4] sm:$0xff]
        %v513 = vld [vmem:[#allocation4 + $0x8] sm:$0xff]
        %v514 = vld [vmem:[#allocation4 + $0x10] sm:$0xff]
        %v515 = vld [vmem:[#allocation4 + $0x18] sm:$0xff]
        %v516 = vld [vmem:[#allocation4 + $0x20] sm:$0xff]
        %v517 = vld [vmem:[#allocation4 + $0x28] sm:$0xff]
        %v518 = vld [vmem:[#allocation4 + $0x30] sm:$0xff]
        %v519 = vld [vmem:[#allocation4 + $0x38] sm:$0xff]
        %v520 = vld [vmem:[#allocation4 + $0x40] sm:$0xff]
        %v521 = vld [vmem:[#allocation4 + $0x48] sm:$0xff]
        %v522 = vld [vmem:[#allocation4 + $0x50] sm:$0xff]
        %v523 = vld [vmem:[#allocation4 + $0x58] sm:$0xff]
        %v524 = vld [vmem:[#allocation4 + $0x60] sm:$0xff]
        %v525 = vld [vmem:[#allocation4 + $0x68] sm:$0xff]
        %v526 = vld [vmem:[#allocation4 + $0x70] sm:$0xff]
        %v527 = vld [vmem:[#allocation4 + $0x78] sm:$0xff]
        %v528 = vld [vmem:[#allocation4 + $0x80] sm:$0xff]
        %v529 = vld [vmem:[#allocation4 + $0x88] sm:$0xff]
        %v530 = vld [vmem:[#allocation4 + $0x90] sm:$0xff]
        %v531 = vld [vmem:[#allocation4 + $0x98] sm:$0xff]
        %v532 = vld [vmem:[#allocation4 + $0xa0] sm:$0xff]
        %v533 = vld [vmem:[#allocation4 + $0xa8] sm:$0xff]
        %v534 = vld [vmem:[#allocation4 + $0xb0] sm:$0xff]
        %v535 = vld [vmem:[#allocation4 + $0xb8] sm:$0xff]
        %v536 = vld [vmem:[#allocation4 + $0xc0] sm:$0xff]
        %v537 = vld [vmem:[#allocation4 + $0xc8] sm:$0xff]
        %v538 = vld [vmem:[#allocation4 + $0xd0] sm:$0xff]
        %v539 = vld [vmem:[#allocation4 + $0xd8] sm:$0xff]
        %v540 = vld [vmem:[#allocation4 + $0xe0] sm:$0xff]
        %v541 = vld [vmem:[#allocation4 + $0xe8] sm:$0xff]
        %v542 = vld [vmem:[#allocation4 + $0xf0] sm:$0xff]
        %v543 = vld [vmem:[#allocation4 + $0xf8] sm:$0xff]
        %v544 = vld [vmem:[#allocation4 + $0x100] sm:$0xff]
        %v545 = vld [vmem:[#allocation4 + $0x108] sm:$0xff]
        %v546 = vld [vmem:[#allocation4 + $0x110] sm:$0xff]
        %v547 = vld [vmem:[#allocation4 + $0x118] sm:$0xff]
        %v548 = vld [vmem:[#allocation4 + $0x120] sm:$0xff]
        %v549 = vld [vmem:[#allocation4 + $0x128] sm:$0xff]
        %v550 = vld [vmem:[#allocation4 + $0x130] sm:$0xff]
        %v551 = vld [vmem:[#allocation4 + $0x138] sm:$0xff]
        %v552 = vld [vmem:[#allocation4 + $0x140] sm:$0xff]
        %v553 = vld [vmem:[#allocation4 + $0x148] sm:$0xff]
        %v554 = vld [vmem:[#allocation4 + $0x150] sm:$0xff]
        %v555 = vld [vmem:[#allocation4 + $0x158] sm:$0xff]
        %v556 = vld [vmem:[#allocation4 + $0x160] sm:$0xff]
        %v557 = vld [vmem:[#allocation4 + $0x168] sm:$0xff]
        %v558 = vld [vmem:[#allocation4 + $0x170] sm:$0xff]
        %v559 = vld [vmem:[#allocation4 + $0x178] sm:$0xff]
        %560 = vmatprep.subr.mxu0 0.0
        %561 = vmatpush1.msra.mxu0 %v496
        %562 = vmatprep.subr.mxu0 0.0
        %563 = vmatpush1.msra.mxu0 %v497
        %564 = vmatprep.subr.mxu0 0.0
        %565 = vmatpush1.msra.mxu0 %v498
        %566 = vmatprep.subr.mxu0 0.0
        %567 = vmatpush1.msra.mxu0 %v499
        %568 = vmatprep.subr.mxu0 0.0
        %569 = vmatpush1.msra.mxu0 %v500
        %570 = vmatprep.subr.mxu0 0.0
        %571 = vmatpush1.msra.mxu0 %v501
        %572 = vmatprep.subr.mxu0 0.0
        %573 = vmatpush1.msra.mxu0 %v502
        %574 = vmatprep.subr.mxu0 0.0
        %575 = vmatpush1.msra.mxu0 %v503
        %576 = vmatprep.subr.mxu0 0.0
        %577 = vmatpush1.msra.mxu0 %v504
        %578 = vmatprep.subr.mxu0 0.0
        %579 = vmatpush1.msra.mxu0 %v505
        %580 = vmatprep.subr.mxu0 0.0
        %581 = vmatpush1.msra.mxu0 %v506
        %582 = vmatprep.subr.mxu0 0.0
        %583 = vmatpush1.msra.mxu0 %v507
        %584 = vmatprep.subr.mxu0 0.0
        %585 = vmatpush1.msra.mxu0 %v508
        %586 = vmatprep.subr.mxu0 0.0
        %587 = vmatpush1.msra.mxu0 %v509
        %588 = vmatprep.subr.mxu0 0.0
        %589 = vmatpush1.msra.mxu0 %v510
        %590 = vmatprep.subr.mxu0 0.0
        %591 = vmatpush1.msra.mxu0 %v511
        %592 = vmatprep.subr.mxu0 0.0
        %593 = vmatpush1.msra.mxu0 0.0
        %594 = vmatprep.subr.mxu0 0.0
        %595 = vmatpush1.msra.mxu0 0.0
        %596 = vmatprep.subr.mxu0 0.0
        %597 = vmatpush1.msra.mxu0 0.0
        %598 = vmatprep.subr.mxu0 0.0
        %599 = vmatpush1.msra.mxu0 0.0
        %600 = vmatprep.subr.mxu0 0.0
        %601 = vmatpush1.msra.mxu0 0.0
        %602 = vmatprep.subr.mxu0 0.0
        %603 = vmatpush1.msra.mxu0 0.0
        %604 = vmatprep.subr.mxu0 0.0
        %605 = vmatpush1.msra.mxu0 0.0
        %606 = vmatprep.subr.mxu0 0.0
        %607 = vmatpush1.msra.mxu0 0.0
        %608 = vmatprep.subr.mxu0 0.0
        %609 = vmatpush1.msra.mxu0 0.0
        %610 = vmatprep.subr.mxu0 0.0
        %611 = vmatpush1.msra.mxu0 0.0
        %612 = vmatprep.subr.mxu0 0.0
        %613 = vmatpush1.msra.mxu0 0.0
        %614 = vmatprep.subr.mxu0 0.0
        %615 = vmatpush1.msra.mxu0 0.0
        %616 = vmatprep.subr.mxu0 0.0
        %617 = vmatpush1.msra.mxu0 0.0
        %618 = vmatprep.subr.mxu0 0.0
        %619 = vmatpush1.msra.mxu0 0.0
        %620 = vmatprep.subr.mxu0 0.0
        %621 = vmatpush1.msra.mxu0 0.0
        %622 = vmatprep.subr.mxu0 0.0
        %623 = vmatpush1.msra.mxu0 0.0
        %624 = vmatprep.mubr.f32.mxu0 0.0
        %625 = vmatmul.mubr.f32.gmra.mrb[0].mxu0 %v512
        %v626 = vpop.f32.mrb[0].mxu0
        %v627 = vadd.f32 0.0, %v626
        %v628 = vpop.f32.mrb[0].mxu0
        %629 = vmatprep.mubr.f32.mxu0 0.0
        %630 = vmatmul.mubr.f32.gmra.mrb[0].mxu0 %v513
        %v631 = vpop.f32.mrb[0].mxu0
        %v632 = vadd.f32 0.0, %v631
        %v633 = vpop.f32.mrb[0].mxu0
        %634 = vmatprep.mubr.f32.mxu0 0.0
        %635 = vmatmul.mubr.f32.gmra.mrb[0].mxu0 %v514
        %v636 = vpop.f32.mrb[0].mxu0
        %v637 = vadd.f32 0.0, %v636
        %v638 = vpop.f32.mrb[0].mxu0
        %639 = vmatprep.mubr.f32.mxu0 0.0
        %640 = vmatmul.mubr.f32.gmra.mrb[0].mxu0 %v515
        %v641 = vpop.f32.mrb[0].mxu0
        %v642 = vadd.f32 0.0, %v641
        %v643 = vpop.f32.mrb[0].mxu0
        %644 = vmatprep.mubr.f32.mxu0 0.0
        %645 = vmatmul.mubr.f32.gmra.mrb[0].mxu0 %v516
        %v646 = vpop.f32.mrb[0].mxu0
        %v647 = vadd.f32 0.0, %v646
        %v648 = vpop.f32.mrb[0].mxu0
        %649 = vmatprep.mubr.f32.mxu0 0.0
        %650 = vmatmul.mubr.f32.gmra.mrb[0].mxu0 %v517
        %v651 = vpop.f32.mrb[0].mxu0
        %v652 = vadd.f32 0.0, %v651
        %v653 = vpop.f32.mrb[0].mxu0
        %654 = vmatprep.mubr.f32.mxu0 0.0
        %655 = vmatmul.mubr.f32.gmra.mrb[0].mxu0 %v518
        %v656 = vpop.f32.mrb[0].mxu0
        %v657 = vadd.f32 0.0, %v656
        %v658 = vpop.f32.mrb[0].mxu0
        %659 = vmatprep.mubr.f32.mxu0 0.0
        %660 = vmatmul.mubr.f32.gmra.mrb[0].mxu0 %v519
        %v661 = vpop.f32.mrb[0].mxu0
        %v662 = vadd.f32 0.0, %v661
        %v663 = vpop.f32.mrb[0].mxu0
        %664 = vmatprep.mubr.f32.mxu0 0.0
        %665 = vmatmul.mubr.f32.gmra.mrb[0].mxu0 %v520
        %v666 = vpop.f32.mrb[0].mxu0
        %v667 = vadd.f32 0.0, %v666
        %v668 = vpop.f32.mrb[0].mxu0
        %669 = vmatprep.mubr.f32.mxu0 0.0
        %670 = vmatmul.mubr.f32.gmra.mrb[0].mxu0 %v521
        %v671 = vpop.f32.mrb[0].mxu0
        %v672 = vadd.f32 0.0, %v671
        %v673 = vpop.f32.mrb[0].mxu0
        %674 = vmatprep.mubr.f32.mxu0 0.0
        %675 = vmatmul.mubr.f32.gmra.mrb[0].mxu0 %v522
        %v676 = vpop.f32.mrb[0].mxu0
        %v677 = vadd.f32 0.0, %v676
        %v678 = vpop.f32.mrb[0].mxu0
        %679 = vmatprep.mubr.f32.mxu0 0.0
        %680 = vmatmul.mubr.f32.gmra.mrb[0].mxu0 %v523
        %v681 = vpop.f32.mrb[0].mxu0
        %v682 = vadd.f32 0.0, %v681
        %v683 = vpop.f32.mrb[0].mxu0
        %684 = vmatprep.mubr.f32.mxu0 0.0
        %685 = vmatmul.mubr.f32.gmra.mrb[0].mxu0 %v524
        %v686 = vpop.f32.mrb[0].mxu0
        %v687 = vadd.f32 0.0, %v686
        %v688 = vpop.f32.mrb[0].mxu0
        %689 = vmatprep.mubr.f32.mxu0 0.0
        %690 = vmatmul.mubr.f32.gmra.mrb[0].mxu0 %v525
        %v691 = vpop.f32.mrb[0].mxu0
        %v692 = vadd.f32 0.0, %v691
        %v693 = vpop.f32.mrb[0].mxu0
        %694 = vmatprep.mubr.f32.mxu0 0.0
        %695 = vmatmul.mubr.f32.gmra.mrb[0].mxu0 %v526
        %v696 = vpop.f32.mrb[0].mxu0
        %v697 = vadd.f32 0.0, %v696
        %v698 = vpop.f32.mrb[0].mxu0
        %699 = vmatprep.mubr.f32.mxu0 0.0
        %700 = vmatmul.mubr.f32.gmra.mrb[0].mxu0 %v527
        %v701 = vpop.f32.mrb[0].mxu0
        %v702 = vadd.f32 0.0, %v701
        %v703 = vpop.f32.mrb[0].mxu0
        %704 = vmatprep.mubr.f32.mxu0 0.0
        %705 = vmatmul.mubr.f32.gmra.mrb[0].mxu0 %v528
        %v706 = vpop.f32.mrb[0].mxu0
        %v707 = vadd.f32 0.0, %v706
        %v708 = vpop.f32.mrb[0].mxu0
        %709 = vmatprep.mubr.f32.mxu0 0.0
        %710 = vmatmul.mubr.f32.gmra.mrb[0].mxu0 %v529
        %v711 = vpop.f32.mrb[0].mxu0
        %v712 = vadd.f32 0.0, %v711
        %v713 = vpop.f32.mrb[0].mxu0
        %714 = vmatprep.mubr.f32.mxu0 0.0
        %715 = vmatmul.mubr.f32.gmra.mrb[0].mxu0 %v530
        %v716 = vpop.f32.mrb[0].mxu0
        %v717 = vadd.f32 0.0, %v716
        %v718 = vpop.f32.mrb[0].mxu0
        %719 = vmatprep.mubr.f32.mxu0 0.0
        %720 = vmatmul.mubr.f32.gmra.mrb[0].mxu0 %v531
        %v721 = vpop.f32.mrb[0].mxu0
        %v722 = vadd.f32 0.0, %v721
        %v723 = vpop.f32.mrb[0].mxu0
        %724 = vmatprep.mubr.f32.mxu0 0.0
        %725 = vmatmul.mubr.f32.gmra.mrb[0].mxu0 %v532
        %v726 = vpop.f32.mrb[0].mxu0
        %v727 = vadd.f32 0.0, %v726
        %v728 = vpop.f32.mrb[0].mxu0
        %729 = vmatprep.mubr.f32.mxu0 0.0
        %730 = vmatmul.mubr.f32.gmra.mrb[0].mxu0 %v533
        %v731 = vpop.f32.mrb[0].mxu0
        %v732 = vadd.f32 0.0, %v731
        %v733 = vpop.f32.mrb[0].mxu0
        %734 = vmatprep.mubr.f32.mxu0 0.0
        %735 = vmatmul.mubr.f32.gmra.mrb[0].mxu0 %v534
        %v736 = vpop.f32.mrb[0].mxu0
        %v737 = vadd.f32 0.0, %v736
        %v738 = vpop.f32.mrb[0].mxu0
        %739 = vmatprep.mubr.f32.mxu0 0.0
        %740 = vmatmul.mubr.f32.gmra.mrb[0].mxu0 %v535
        %v741 = vpop.f32.mrb[0].mxu0
        %v742 = vadd.f32 0.0, %v741
        %v743 = vpop.f32.mrb[0].mxu0
        %744 = vmatprep.mubr.f32.mxu0 0.0
        %745 = vmatmul.mubr.f32.gmra.mrb[0].mxu0 %v536
        %v746 = vpop.f32.mrb[0].mxu0
        %v747 = vadd.f32 0.0, %v746
        %v748 = vpop.f32.mrb[0].mxu0
        %749 = vmatprep.mubr.f32.mxu0 0.0
        %750 = vmatmul.mubr.f32.gmra.mrb[0].mxu0 %v537
        %v751 = vpop.f32.mrb[0].mxu0
        %v752 = vadd.f32 0.0, %v751
        %v753 = vpop.f32.mrb[0].mxu0
        %754 = vmatprep.mubr.f32.mxu0 0.0
        %755 = vmatmul.mubr.f32.gmra.mrb[0].mxu0 %v538
        %v756 = vpop.f32.mrb[0].mxu0
        %v757 = vadd.f32 0.0, %v756
        %v758 = vpop.f32.mrb[0].mxu0
        %759 = vmatprep.mubr.f32.mxu0 0.0
        %760 = vmatmul.mubr.f32.gmra.mrb[0].mxu0 %v539
        %v761 = vpop.f32.mrb[0].mxu0
        %v762 = vadd.f32 0.0, %v761
        %v763 = vpop.f32.mrb[0].mxu0
        %764 = vmatprep.mubr.f32.mxu0 0.0
        %765 = vmatmul.mubr.f32.gmra.mrb[0].mxu0 %v540
        %v766 = vpop.f32.mrb[0].mxu0
        %v767 = vadd.f32 0.0, %v766
        %v768 = vpop.f32.mrb[0].mxu0
        %769 = vmatprep.mubr.f32.mxu0 0.0
        %770 = vmatmul.mubr.f32.gmra.mrb[0].mxu0 %v541
        %v771 = vpop.f32.mrb[0].mxu0
        %v772 = vadd.f32 0.0, %v771
        %v773 = vpop.f32.mrb[0].mxu0
        %774 = vmatprep.mubr.f32.mxu0 0.0
        %775 = vmatmul.mubr.f32.gmra.mrb[0].mxu0 %v542
        %v776 = vpop.f32.mrb[0].mxu0
        %v777 = vadd.f32 0.0, %v776
        %v778 = vpop.f32.mrb[0].mxu0
        %779 = vmatprep.mubr.f32.mxu0 0.0
        %780 = vmatmul.mubr.f32.gmra.mrb[0].mxu0 %v543
        %v781 = vpop.f32.mrb[0].mxu0
        %v782 = vadd.f32 0.0, %v781
        %v783 = vpop.f32.mrb[0].mxu0
        %784 = vmatprep.mubr.f32.mxu0 0.0
        %785 = vmatmul.mubr.f32.gmra.mrb[0].mxu0 %v544
        %v786 = vpop.f32.mrb[0].mxu0
        %v787 = vadd.f32 0.0, %v786
        %v788 = vpop.f32.mrb[0].mxu0
        %789 = vmatprep.mubr.f32.mxu0 0.0
        %790 = vmatmul.mubr.f32.gmra.mrb[0].mxu0 %v545
        %v791 = vpop.f32.mrb[0].mxu0
        %v792 = vadd.f32 0.0, %v791
        %v793 = vpop.f32.mrb[0].mxu0
        %794 = vmatprep.mubr.f32.mxu0 0.0
        %795 = vmatmul.mubr.f32.gmra.mrb[0].mxu0 %v546
        %v796 = vpop.f32.mrb[0].mxu0
        %v797 = vadd.f32 0.0, %v796
        %v798 = vpop.f32.mrb[0].mxu0
        %799 = vmatprep.mubr.f32.mxu0 0.0
        %800 = vmatmul.mubr.f32.gmra.mrb[0].mxu0 %v547
        %v801 = vpop.f32.mrb[0].mxu0
        %v802 = vadd.f32 0.0, %v801
        %v803 = vpop.f32.mrb[0].mxu0
        %804 = vmatprep.mubr.f32.mxu0 0.0
        %805 = vmatmul.mubr.f32.gmra.mrb[0].mxu0 %v548
        %v806 = vpop.f32.mrb[0].mxu0
        %v807 = vadd.f32 0.0, %v806
        %v808 = vpop.f32.mrb[0].mxu0
        %809 = vmatprep.mubr.f32.mxu0 0.0
        %810 = vmatmul.mubr.f32.gmra.mrb[0].mxu0 %v549
        %v811 = vpop.f32.mrb[0].mxu0
        %v812 = vadd.f32 0.0, %v811
        %v813 = vpop.f32.mrb[0].mxu0
        %814 = vmatprep.mubr.f32.mxu0 0.0
        %815 = vmatmul.mubr.f32.gmra.mrb[0].mxu0 %v550
        %v816 = vpop.f32.mrb[0].mxu0
        %v817 = vadd.f32 0.0, %v816
        %v818 = vpop.f32.mrb[0].mxu0
        %819 = vmatprep.mubr.f32.mxu0 0.0
        %820 = vmatmul.mubr.f32.gmra.mrb[0].mxu0 %v551
        %v821 = vpop.f32.mrb[0].mxu0
        %v822 = vadd.f32 0.0, %v821
        %v823 = vpop.f32.mrb[0].mxu0
        %824 = vmatprep.mubr.f32.mxu0 0.0
        %825 = vmatmul.mubr.f32.gmra.mrb[0].mxu0 %v552
        %v826 = vpop.f32.mrb[0].mxu0
        %v827 = vadd.f32 0.0, %v826
        %v828 = vpop.f32.mrb[0].mxu0
        %829 = vmatprep.mubr.f32.mxu0 0.0
        %830 = vmatmul.mubr.f32.gmra.mrb[0].mxu0 %v553
        %v831 = vpop.f32.mrb[0].mxu0
        %v832 = vadd.f32 0.0, %v831
        %v833 = vpop.f32.mrb[0].mxu0
        %834 = vmatprep.mubr.f32.mxu0 0.0
        %835 = vmatmul.mubr.f32.gmra.mrb[0].mxu0 %v554
        %v836 = vpop.f32.mrb[0].mxu0
        %v837 = vadd.f32 0.0, %v836
        %v838 = vpop.f32.mrb[0].mxu0
        %839 = vmatprep.mubr.f32.mxu0 0.0
        %840 = vmatmul.mubr.f32.gmra.mrb[0].mxu0 %v555
        %v841 = vpop.f32.mrb[0].mxu0
        %v842 = vadd.f32 0.0, %v841
        %v843 = vpop.f32.mrb[0].mxu0
        %844 = vmatprep.mubr.f32.mxu0 0.0
        %845 = vmatmul.mubr.f32.gmra.mrb[0].mxu0 %v556
        %v846 = vpop.f32.mrb[0].mxu0
        %v847 = vadd.f32 0.0, %v846
        %v848 = vpop.f32.mrb[0].mxu0
        %849 = vmatprep.mubr.f32.mxu0 0.0
        %850 = vmatmul.mubr.f32.gmra.mrb[0].mxu0 %v557
        %v851 = vpop.f32.mrb[0].mxu0
        %v852 = vadd.f32 0.0, %v851
        %v853 = vpop.f32.mrb[0].mxu0
        %854 = vmatprep.mubr.f32.mxu0 0.0
        %855 = vmatmul.mubr.f32.gmra.mrb[0].mxu0 %v558
        %v856 = vpop.f32.mrb[0].mxu0
        %v857 = vadd.f32 0.0, %v856
        %v858 = vpop.f32.mrb[0].mxu0
        %859 = vmatprep.mubr.f32.mxu0 0.0
        %860 = vmatmul.mubr.f32.gmra.mrb[0].mxu0 %v559
        %v861 = vpop.f32.mrb[0].mxu0
        %v862 = vadd.f32 0.0, %v861
        %v863 = vpop.f32.mrb[0].mxu0
        %864 = vdwg.mxu0
        %v865 = vld [vmem:[#allocation6] sm:$0xff]
        %v866 = vld [vmem:[#allocation6 + $0x8] sm:$0xff]
        %v867 = vld [vmem:[#allocation6 + $0x10] sm:$0xff]
        %v868 = vld [vmem:[#allocation6 + $0x18] sm:$0xff]
        %s869 = scalar_lea.vmem [#allocation6], 32
        %v870 = vld [vmem:[%s869] sm:$0xff]
        %v871 = vld [vmem:[%s869 + $0x8] sm:$0xff]
        %v872 = vld [vmem:[%s869 + $0x10] sm:$0xff]
        %v873 = vld [vmem:[%s869 + $0x18] sm:$0xff]
        %vm874 = vcmask 130048
        %v876 = vsel %vm874, %v707, 0
        %v879 = vsel %vm874, %v712, 0
        %v882 = vsel %vm874, %v717, 0
        %v885 = vsel %vm874, %v722, 0
        %v888 = vsel %vm874, %v727, 0
        %v891 = vsel %vm874, %v732, 0
        %v894 = vsel %vm874, %v737, 0
        %v897 = vsel %vm874, %v742, 0
        %v900 = vsel %vm874, %v747, 0
        %v903 = vsel %vm874, %v752, 0
        %v906 = vsel %vm874, %v757, 0
        %v909 = vsel %vm874, %v762, 0
        %v912 = vsel %vm874, %v767, 0
        %v915 = vsel %vm874, %v772, 0
        %v918 = vsel %vm874, %v777, 0
        %v921 = vsel %vm874, %v782, 0
        %923 = vmatprep.subr.mxu0 %v871
        %924 = vmatpush1.msra.mxu0 %v870
        %925 = vmatprep.subr.mxu0 %v873
        %926 = vmatpush1.msra.mxu0 %v872
        %927 = vmatprep.subr.mxu0 0.0
        %928 = vmatpush1.msra.mxu0 0.0
        %929 = vmatprep.subr.mxu0 0.0
        %930 = vmatpush1.msra.mxu0 0.0
        %931 = vmatprep.subr.mxu0 0.0
        %932 = vmatpush1.msra.mxu0 0.0
        %933 = vmatprep.subr.mxu0 0.0
        %934 = vmatpush1.msra.mxu0 0.0
        %935 = vmatprep.subr.mxu0 0.0
        %936 = vmatpush1.msra.mxu0 0.0
        %937 = vmatprep.subr.mxu0 0.0
        %938 = vmatpush1.msra.mxu0 0.0
        %939 = vmatprep.subr.mxu0 0.0
        %940 = vmatpush1.msra.mxu0 0.0
        %941 = vmatprep.subr.mxu0 0.0
        %942 = vmatpush1.msra.mxu0 0.0
        %943 = vmatprep.subr.mxu0 0.0
        %944 = vmatpush1.msra.mxu0 0.0
        %945 = vmatprep.subr.mxu0 0.0
        %946 = vmatpush1.msra.mxu0 0.0
        %947 = vmatprep.subr.mxu0 0.0
        %948 = vmatpush1.msra.mxu0 0.0
        %949 = vmatprep.subr.mxu0 0.0
        %950 = vmatpush1.msra.mxu0 0.0
        %951 = vmatprep.subr.mxu0 0.0
        %952 = vmatpush1.msra.mxu0 0.0
        %953 = vmatprep.subr.mxu0 0.0
        %954 = vmatpush1.msra.mxu0 0.0
        %955 = vmatprep.subr.mxu0 0.0
        %956 = vmatpush1.msra.mxu0 0.0
        %957 = vmatprep.subr.mxu0 0.0
        %958 = vmatpush1.msra.mxu0 0.0
        %959 = vmatprep.subr.mxu0 0.0
        %960 = vmatpush1.msra.mxu0 0.0
        %961 = vmatprep.subr.mxu0 0.0
        %962 = vmatpush1.msra.mxu0 0.0
        %963 = vmatprep.subr.mxu0 0.0
        %964 = vmatpush1.msra.mxu0 0.0
        %965 = vmatprep.subr.mxu0 0.0
        %966 = vmatpush1.msra.mxu0 0.0
        %967 = vmatprep.subr.mxu0 0.0
        %968 = vmatpush1.msra.mxu0 0.0
        %969 = vmatprep.subr.mxu0 0.0
        %970 = vmatpush1.msra.mxu0 0.0
        %971 = vmatprep.subr.mxu0 0.0
        %972 = vmatpush1.msra.mxu0 0.0
        %973 = vmatprep.subr.mxu0 0.0
        %974 = vmatpush1.msra.mxu0 0.0
        %975 = vmatprep.subr.mxu0 0.0
        %976 = vmatpush1.msra.mxu0 0.0
        %977 = vmatprep.subr.mxu0 0.0
        %978 = vmatpush1.msra.mxu0 0.0
        %979 = vmatprep.subr.mxu0 0.0
        %980 = vmatpush1.msra.mxu0 0.0
        %981 = vmatprep.subr.mxu0 0.0
        %982 = vmatpush1.msra.mxu0 0.0
        %983 = vmatprep.subr.mxu0 0.0
        %984 = vmatpush1.msra.mxu0 0.0
        %985 = vmatprep.subr.mxu0 0.0
        %986 = vmatpush1.msra.mxu0 0.0
        %987 = vmatprep.mubr.f32.mxu0 0.0
        %988 = vmatmul.mubr.f32.gmra.mrb[0].mxu0 %v876
        %v989 = vpop.f32.mrb[0].mxu0
        %v990 = vadd.f32 0.0, %v989
        %v991 = vpop.f32.mrb[0].mxu0
        %v992 = vadd.f32 0.0, %v991
        %993 = vmatprep.mubr.f32.mxu0 0.0
        %994 = vmatmul.mubr.f32.gmra.mrb[0].mxu0 %v879
        %v995 = vpop.f32.mrb[0].mxu0
        %v996 = vadd.f32 0.0, %v995
        %v997 = vpop.f32.mrb[0].mxu0
        %v998 = vadd.f32 0.0, %v997
        %999 = vmatprep.mubr.f32.mxu0 0.0
        %1000 = vmatmul.mubr.f32.gmra.mrb[0].mxu0 %v882
        %v1001 = vpop.f32.mrb[0].mxu0
        %v1002 = vadd.f32 0.0, %v1001
        %v1003 = vpop.f32.mrb[0].mxu0
        %v1004 = vadd.f32 0.0, %v1003
        %1005 = vmatprep.mubr.f32.mxu0 0.0
        %1006 = vmatmul.mubr.f32.gmra.mrb[0].mxu0 %v885
        %v1007 = vpop.f32.mrb[0].mxu0
        %v1008 = vadd.f32 0.0, %v1007
        %v1009 = vpop.f32.mrb[0].mxu0
        %v1010 = vadd.f32 0.0, %v1009
        %1011 = vmatprep.mubr.f32.mxu0 0.0
        %1012 = vmatmul.mubr.f32.gmra.mrb[0].mxu0 %v888
        %v1013 = vpop.f32.mrb[0].mxu0
        %v1014 = vadd.f32 0.0, %v1013
        %v1015 = vpop.f32.mrb[0].mxu0
        %v1016 = vadd.f32 0.0, %v1015
        %1017 = vmatprep.mubr.f32.mxu0 0.0
        %1018 = vmatmul.mubr.f32.gmra.mrb[0].mxu0 %v891
        %v1019 = vpop.f32.mrb[0].mxu0
        %v1020 = vadd.f32 0.0, %v1019
        %v1021 = vpop.f32.mrb[0].mxu0
        %v1022 = vadd.f32 0.0, %v1021
        %1023 = vmatprep.mubr.f32.mxu0 0.0
        %1024 = vmatmul.mubr.f32.gmra.mrb[0].mxu0 %v894
        %v1025 = vpop.f32.mrb[0].mxu0
        %v1026 = vadd.f32 0.0, %v1025
        %v1027 = vpop.f32.mrb[0].mxu0
        %v1028 = vadd.f32 0.0, %v1027
        %1029 = vmatprep.mubr.f32.mxu0 0.0
        %1030 = vmatmul.mubr.f32.gmra.mrb[0].mxu0 %v897
        %v1031 = vpop.f32.mrb[0].mxu0
        %v1032 = vadd.f32 0.0, %v1031
        %v1033 = vpop.f32.mrb[0].mxu0
        %v1034 = vadd.f32 0.0, %v1033
        %1035 = vmatprep.mubr.f32.mxu0 0.0
        %1036 = vmatmul.mubr.f32.gmra.mrb[0].mxu0 %v900
        %v1037 = vpop.f32.mrb[0].mxu0
        %v1038 = vadd.f32 0.0, %v1037
        %v1039 = vpop.f32.mrb[0].mxu0
        %v1040 = vadd.f32 0.0, %v1039
        %1041 = vmatprep.mubr.f32.mxu0 0.0
        %1042 = vmatmul.mubr.f32.gmra.mrb[0].mxu0 %v903
        %v1043 = vpop.f32.mrb[0].mxu0
        %v1044 = vadd.f32 0.0, %v1043
        %v1045 = vpop.f32.mrb[0].mxu0
        %v1046 = vadd.f32 0.0, %v1045
        %1047 = vmatprep.mubr.f32.mxu0 0.0
        %1048 = vmatmul.mubr.f32.gmra.mrb[0].mxu0 %v906
        %v1049 = vpop.f32.mrb[0].mxu0
        %v1050 = vadd.f32 0.0, %v1049
        %v1051 = vpop.f32.mrb[0].mxu0
        %v1052 = vadd.f32 0.0, %v1051
        %1053 = vmatprep.mubr.f32.mxu0 0.0
        %1054 = vmatmul.mubr.f32.gmra.mrb[0].mxu0 %v909
        %v1055 = vpop.f32.mrb[0].mxu0
        %v1056 = vadd.f32 0.0, %v1055
        %v1057 = vpop.f32.mrb[0].mxu0
        %v1058 = vadd.f32 0.0, %v1057
        %1059 = vmatprep.mubr.f32.mxu0 0.0
        %1060 = vmatmul.mubr.f32.gmra.mrb[0].mxu0 %v912
        %v1061 = vpop.f32.mrb[0].mxu0
        %v1062 = vadd.f32 0.0, %v1061
        %v1063 = vpop.f32.mrb[0].mxu0
        %v1064 = vadd.f32 0.0, %v1063
        %1065 = vmatprep.mubr.f32.mxu0 0.0
        %1066 = vmatmul.mubr.f32.gmra.mrb[0].mxu0 %v915
        %v1067 = vpop.f32.mrb[0].mxu0
        %v1068 = vadd.f32 0.0, %v1067
        %v1069 = vpop.f32.mrb[0].mxu0
        %v1070 = vadd.f32 0.0, %v1069
        %1071 = vmatprep.mubr.f32.mxu0 0.0
        %1072 = vmatmul.mubr.f32.gmra.mrb[0].mxu0 %v918
        %v1073 = vpop.f32.mrb[0].mxu0
        %v1074 = vadd.f32 0.0, %v1073
        %v1075 = vpop.f32.mrb[0].mxu0
        %v1076 = vadd.f32 0.0, %v1075
        %1077 = vmatprep.mubr.f32.mxu0 0.0
        %1078 = vmatmul.mubr.f32.gmra.mrb[0].mxu0 %v921
        %v1079 = vpop.f32.mrb[0].mxu0
        %v1080 = vadd.f32 0.0, %v1079
        %v1081 = vpop.f32.mrb[0].mxu0
        %v1082 = vadd.f32 0.0, %v1081
        %1083 = vdwg.mxu0
        %v1085 = vsel %vm874, %v627, 0
        %v1088 = vsel %vm874, %v632, 0
        %v1091 = vsel %vm874, %v637, 0
        %v1094 = vsel %vm874, %v642, 0
        %v1097 = vsel %vm874, %v647, 0
        %v1100 = vsel %vm874, %v652, 0
        %v1103 = vsel %vm874, %v657, 0
        %v1106 = vsel %vm874, %v662, 0
        %v1109 = vsel %vm874, %v667, 0
        %v1112 = vsel %vm874, %v672, 0
        %v1115 = vsel %vm874, %v677, 0
        %v1118 = vsel %vm874, %v682, 0
        %v1121 = vsel %vm874, %v687, 0
        %v1124 = vsel %vm874, %v692, 0
        %v1127 = vsel %vm874, %v697, 0
        %v1130 = vsel %vm874, %v702, 0
        %1132 = vmatprep.subr.mxu0 %v866
        %1133 = vmatpush1.msra.mxu0 %v865
        %1134 = vmatprep.subr.mxu0 %v868
        %1135 = vmatpush1.msra.mxu0 %v867
        %1136 = vmatprep.subr.mxu0 0.0
        %1137 = vmatpush1.msra.mxu0 0.0
        %1138 = vmatprep.subr.mxu0 0.0
        %1139 = vmatpush1.msra.mxu0 0.0
        %1140 = vmatprep.subr.mxu0 0.0
        %1141 = vmatpush1.msra.mxu0 0.0
        %1142 = vmatprep.subr.mxu0 0.0
        %1143 = vmatpush1.msra.mxu0 0.0
        %1144 = vmatprep.subr.mxu0 0.0
        %1145 = vmatpush1.msra.mxu0 0.0
        %1146 = vmatprep.subr.mxu0 0.0
        %1147 = vmatpush1.msra.mxu0 0.0
        %1148 = vmatprep.subr.mxu0 0.0
        %1149 = vmatpush1.msra.mxu0 0.0
        %1150 = vmatprep.subr.mxu0 0.0
        %1151 = vmatpush1.msra.mxu0 0.0
        %1152 = vmatprep.subr.mxu0 0.0
        %1153 = vmatpush1.msra.mxu0 0.0
        %1154 = vmatprep.subr.mxu0 0.0
        %1155 = vmatpush1.msra.mxu0 0.0
        %1156 = vmatprep.subr.mxu0 0.0
        %1157 = vmatpush1.msra.mxu0 0.0
        %1158 = vmatprep.subr.mxu0 0.0
        %1159 = vmatpush1.msra.mxu0 0.0
        %1160 = vmatprep.subr.mxu0 0.0
        %1161 = vmatpush1.msra.mxu0 0.0
        %1162 = vmatprep.subr.mxu0 0.0
        %1163 = vmatpush1.msra.mxu0 0.0
        %1164 = vmatprep.subr.mxu0 0.0
        %1165 = vmatpush1.msra.mxu0 0.0
        %1166 = vmatprep.subr.mxu0 0.0
        %1167 = vmatpush1.msra.mxu0 0.0
        %1168 = vmatprep.subr.mxu0 0.0
        %1169 = vmatpush1.msra.mxu0 0.0
        %1170 = vmatprep.subr.mxu0 0.0
        %1171 = vmatpush1.msra.mxu0 0.0
        %1172 = vmatprep.subr.mxu0 0.0
        %1173 = vmatpush1.msra.mxu0 0.0
        %1174 = vmatprep.subr.mxu0 0.0
        %1175 = vmatpush1.msra.mxu0 0.0
        %1176 = vmatprep.subr.mxu0 0.0
        %1177 = vmatpush1.msra.mxu0 0.0
        %1178 = vmatprep.subr.mxu0 0.0
        %1179 = vmatpush1.msra.mxu0 0.0
        %1180 = vmatprep.subr.mxu0 0.0
        %1181 = vmatpush1.msra.mxu0 0.0
        %1182 = vmatprep.subr.mxu0 0.0
        %1183 = vmatpush1.msra.mxu0 0.0
        %1184 = vmatprep.subr.mxu0 0.0
        %1185 = vmatpush1.msra.mxu0 0.0
        %1186 = vmatprep.subr.mxu0 0.0
        %1187 = vmatpush1.msra.mxu0 0.0
        %1188 = vmatprep.subr.mxu0 0.0
        %1189 = vmatpush1.msra.mxu0 0.0
        %1190 = vmatprep.subr.mxu0 0.0
        %1191 = vmatpush1.msra.mxu0 0.0
        %1192 = vmatprep.subr.mxu0 0.0
        %1193 = vmatpush1.msra.mxu0 0.0
        %1194 = vmatprep.subr.mxu0 0.0
        %1195 = vmatpush1.msra.mxu0 0.0
        %1196 = vmatprep.mubr.f32.mxu0 0.0
        %1197 = vmatmul.mubr.f32.gmra.mrb[0].mxu0 %v1085
        %v1198 = vpop.f32.mrb[0].mxu0
        %v1199 = vadd.f32 %v990, %v1198
        %v1200 = vpop.f32.mrb[0].mxu0
        %v1201 = vadd.f32 %v992, %v1200
        %1202 = vmatprep.mubr.f32.mxu0 0.0
        %1203 = vmatmul.mubr.f32.gmra.mrb[0].mxu0 %v1088
        %v1204 = vpop.f32.mrb[0].mxu0
        %v1205 = vadd.f32 %v996, %v1204
        %v1206 = vpop.f32.mrb[0].mxu0
        %v1207 = vadd.f32 %v998, %v1206
        %1208 = vmatprep.mubr.f32.mxu0 0.0
        %1209 = vmatmul.mubr.f32.gmra.mrb[0].mxu0 %v1091
        %v1210 = vpop.f32.mrb[0].mxu0
        %v1211 = vadd.f32 %v1002, %v1210
        %v1212 = vpop.f32.mrb[0].mxu0
        %v1213 = vadd.f32 %v1004, %v1212
        %1214 = vmatprep.mubr.f32.mxu0 0.0
        %1215 = vmatmul.mubr.f32.gmra.mrb[0].mxu0 %v1094
        %v1216 = vpop.f32.mrb[0].mxu0
        %v1217 = vadd.f32 %v1008, %v1216
        %v1218 = vpop.f32.mrb[0].mxu0
        %v1219 = vadd.f32 %v1010, %v1218
        %1220 = vmatprep.mubr.f32.mxu0 0.0
        %1221 = vmatmul.mubr.f32.gmra.mrb[0].mxu0 %v1097
        %v1222 = vpop.f32.mrb[0].mxu0
        %v1223 = vadd.f32 %v1014, %v1222
        %v1224 = vpop.f32.mrb[0].mxu0
        %v1225 = vadd.f32 %v1016, %v1224
        %1226 = vmatprep.mubr.f32.mxu0 0.0
        %1227 = vmatmul.mubr.f32.gmra.mrb[0].mxu0 %v1100
        %v1228 = vpop.f32.mrb[0].mxu0
        %v1229 = vadd.f32 %v1020, %v1228
        %v1230 = vpop.f32.mrb[0].mxu0
        %v1231 = vadd.f32 %v1022, %v1230
        %1232 = vmatprep.mubr.f32.mxu0 0.0
        %1233 = vmatmul.mubr.f32.gmra.mrb[0].mxu0 %v1103
        %v1234 = vpop.f32.mrb[0].mxu0
        %v1235 = vadd.f32 %v1026, %v1234
        %v1236 = vpop.f32.mrb[0].mxu0
        %v1237 = vadd.f32 %v1028, %v1236
        %1238 = vmatprep.mubr.f32.mxu0 0.0
        %1239 = vmatmul.mubr.f32.gmra.mrb[0].mxu0 %v1106
        %v1240 = vpop.f32.mrb[0].mxu0
        %v1241 = vadd.f32 %v1032, %v1240
        %v1242 = vpop.f32.mrb[0].mxu0
        %v1243 = vadd.f32 %v1034, %v1242
        %1244 = vmatprep.mubr.f32.mxu0 0.0
        %1245 = vmatmul.mubr.f32.gmra.mrb[0].mxu0 %v1109
        %v1246 = vpop.f32.mrb[0].mxu0
        %v1247 = vadd.f32 %v1038, %v1246
        %v1248 = vpop.f32.mrb[0].mxu0
        %v1249 = vadd.f32 %v1040, %v1248
        %1250 = vmatprep.mubr.f32.mxu0 0.0
        %1251 = vmatmul.mubr.f32.gmra.mrb[0].mxu0 %v1112
        %v1252 = vpop.f32.mrb[0].mxu0
        %v1253 = vadd.f32 %v1044, %v1252
        %v1254 = vpop.f32.mrb[0].mxu0
        %v1255 = vadd.f32 %v1046, %v1254
        %1256 = vmatprep.mubr.f32.mxu0 0.0
        %1257 = vmatmul.mubr.f32.gmra.mrb[0].mxu0 %v1115
        %v1258 = vpop.f32.mrb[0].mxu0
        %v1259 = vadd.f32 %v1050, %v1258
        %v1260 = vpop.f32.mrb[0].mxu0
        %v1261 = vadd.f32 %v1052, %v1260
        %1262 = vmatprep.mubr.f32.mxu0 0.0
        %1263 = vmatmul.mubr.f32.gmra.mrb[0].mxu0 %v1118
        %v1264 = vpop.f32.mrb[0].mxu0
        %v1265 = vadd.f32 %v1056, %v1264
        %v1266 = vpop.f32.mrb[0].mxu0
        %v1267 = vadd.f32 %v1058, %v1266
        %1268 = vmatprep.mubr.f32.mxu0 0.0
        %1269 = vmatmul.mubr.f32.gmra.mrb[0].mxu0 %v1121
        %v1270 = vpop.f32.mrb[0].mxu0
        %v1271 = vadd.f32 %v1062, %v1270
        %v1272 = vpop.f32.mrb[0].mxu0
        %v1273 = vadd.f32 %v1064, %v1272
        %1274 = vmatprep.mubr.f32.mxu0 0.0
        %1275 = vmatmul.mubr.f32.gmra.mrb[0].mxu0 %v1124
        %v1276 = vpop.f32.mrb[0].mxu0
        %v1277 = vadd.f32 %v1068, %v1276
        %v1278 = vpop.f32.mrb[0].mxu0
        %v1279 = vadd.f32 %v1070, %v1278
        %1280 = vmatprep.mubr.f32.mxu0 0.0
        %1281 = vmatmul.mubr.f32.gmra.mrb[0].mxu0 %v1127
        %v1282 = vpop.f32.mrb[0].mxu0
        %v1283 = vadd.f32 %v1074, %v1282
        %v1284 = vpop.f32.mrb[0].mxu0
        %v1285 = vadd.f32 %v1076, %v1284
        %1286 = vmatprep.mubr.f32.mxu0 0.0
        %1287 = vmatmul.mubr.f32.gmra.mrb[0].mxu0 %v1130
        %v1288 = vpop.f32.mrb[0].mxu0
        %v1289 = vadd.f32 %v1080, %v1288
        %v1290 = vpop.f32.mrb[0].mxu0
        %v1291 = vadd.f32 %v1082, %v1290
        %1292 = vdwg.mxu0
        %s1293 = scalar_lea.vmem [#allocation6], 64
        %v1294 = vld [vmem:[%s1293] sm:$0xff]
        %v1295 = vld [vmem:[%s1293 + $0x8] sm:$0xff]
        %v1296 = vld [vmem:[%s1293 + $0x10] sm:$0xff]
        %v1297 = vld [vmem:[%s1293 + $0x18] sm:$0xff]
        %v1299 = vsel %vm874, %v787, 0
        %v1302 = vsel %vm874, %v792, 0
        %v1305 = vsel %vm874, %v797, 0
        %v1308 = vsel %vm874, %v802, 0
        %v1311 = vsel %vm874, %v807, 0
        %v1314 = vsel %vm874, %v812, 0
        %v1317 = vsel %vm874, %v817, 0
        %v1320 = vsel %vm874, %v822, 0
        %v1323 = vsel %vm874, %v827, 0
        %v1326 = vsel %vm874, %v832, 0
        %v1329 = vsel %vm874, %v837, 0
        %v1332 = vsel %vm874, %v842, 0
        %v1335 = vsel %vm874, %v847, 0
        %v1338 = vsel %vm874, %v852, 0
        %v1341 = vsel %vm874, %v857, 0
        %v1344 = vsel %vm874, %v862, 0
        %1346 = vmatprep.subr.mxu0 %v1295
        %1347 = vmatpush1.msra.mxu0 %v1294
        %1348 = vmatprep.subr.mxu0 %v1297
        %1349 = vmatpush1.msra.mxu0 %v1296
        %1350 = vmatprep.subr.mxu0 0.0
        %1351 = vmatpush1.msra.mxu0 0.0
        %1352 = vmatprep.subr.mxu0 0.0
        %1353 = vmatpush1.msra.mxu0 0.0
        %1354 = vmatprep.subr.mxu0 0.0
        %1355 = vmatpush1.msra.mxu0 0.0
        %1356 = vmatprep.subr.mxu0 0.0
        %1357 = vmatpush1.msra.mxu0 0.0
        %1358 = vmatprep.subr.mxu0 0.0
        %1359 = vmatpush1.msra.mxu0 0.0
        %1360 = vmatprep.subr.mxu0 0.0
        %1361 = vmatpush1.msra.mxu0 0.0
        %1362 = vmatprep.subr.mxu0 0.0
        %1363 = vmatpush1.msra.mxu0 0.0
        %1364 = vmatprep.subr.mxu0 0.0
        %1365 = vmatpush1.msra.mxu0 0.0
        %1366 = vmatprep.subr.mxu0 0.0
        %1367 = vmatpush1.msra.mxu0 0.0
        %1368 = vmatprep.subr.mxu0 0.0
        %1369 = vmatpush1.msra.mxu0 0.0
        %1370 = vmatprep.subr.mxu0 0.0
        %1371 = vmatpush1.msra.mxu0 0.0
        %1372 = vmatprep.subr.mxu0 0.0
        %1373 = vmatpush1.msra.mxu0 0.0
        %1374 = vmatprep.subr.mxu0 0.0
        %1375 = vmatpush1.msra.mxu0 0.0
        %1376 = vmatprep.subr.mxu0 0.0
        %1377 = vmatpush1.msra.mxu0 0.0
        %1378 = vmatprep.subr.mxu0 0.0
        %1379 = vmatpush1.msra.mxu0 0.0
        %1380 = vmatprep.subr.mxu0 0.0
        %1381 = vmatpush1.msra.mxu0 0.0
        %1382 = vmatprep.subr.mxu0 0.0
        %1383 = vmatpush1.msra.mxu0 0.0
        %1384 = vmatprep.subr.mxu0 0.0
        %1385 = vmatpush1.msra.mxu0 0.0
        %1386 = vmatprep.subr.mxu0 0.0
        %1387 = vmatpush1.msra.mxu0 0.0
        %1388 = vmatprep.subr.mxu0 0.0
        %1389 = vmatpush1.msra.mxu0 0.0
        %1390 = vmatprep.subr.mxu0 0.0
        %1391 = vmatpush1.msra.mxu0 0.0
        %1392 = vmatprep.subr.mxu0 0.0
        %1393 = vmatpush1.msra.mxu0 0.0
        %1394 = vmatprep.subr.mxu0 0.0
        %1395 = vmatpush1.msra.mxu0 0.0
        %1396 = vmatprep.subr.mxu0 0.0
        %1397 = vmatpush1.msra.mxu0 0.0
        %1398 = vmatprep.subr.mxu0 0.0
        %1399 = vmatpush1.msra.mxu0 0.0
        %1400 = vmatprep.subr.mxu0 0.0
        %1401 = vmatpush1.msra.mxu0 0.0
        %1402 = vmatprep.subr.mxu0 0.0
        %1403 = vmatpush1.msra.mxu0 0.0
        %1404 = vmatprep.subr.mxu0 0.0
        %1405 = vmatpush1.msra.mxu0 0.0
        %1406 = vmatprep.subr.mxu0 0.0
        %1407 = vmatpush1.msra.mxu0 0.0
        %1408 = vmatprep.subr.mxu0 0.0
        %1409 = vmatpush1.msra.mxu0 0.0
        %1410 = vmatprep.mubr.f32.mxu0 0.0
        %1411 = vmatmul.mubr.f32.gmra.mrb[0].mxu0 %v1299
        %v1412 = vpop.f32.mrb[0].mxu0
        %v1413 = vadd.f32 0.0, %v1412
        %v1414 = vpop.f32.mrb[0].mxu0
        %v1415 = vadd.f32 0.0, %v1414
        %1416 = vmatprep.mubr.f32.mxu0 0.0
        %1417 = vmatmul.mubr.f32.gmra.mrb[0].mxu0 %v1302
        %v1418 = vpop.f32.mrb[0].mxu0
        %v1419 = vadd.f32 0.0, %v1418
        %v1420 = vpop.f32.mrb[0].mxu0
        %v1421 = vadd.f32 0.0, %v1420
        %1422 = vmatprep.mubr.f32.mxu0 0.0
        %1423 = vmatmul.mubr.f32.gmra.mrb[0].mxu0 %v1305
        %v1424 = vpop.f32.mrb[0].mxu0
        %v1425 = vadd.f32 0.0, %v1424
        %v1426 = vpop.f32.mrb[0].mxu0
        %v1427 = vadd.f32 0.0, %v1426
        %1428 = vmatprep.mubr.f32.mxu0 0.0
        %1429 = vmatmul.mubr.f32.gmra.mrb[0].mxu0 %v1308
        %v1430 = vpop.f32.mrb[0].mxu0
        %v1431 = vadd.f32 0.0, %v1430
        %v1432 = vpop.f32.mrb[0].mxu0
        %v1433 = vadd.f32 0.0, %v1432
        %1434 = vmatprep.mubr.f32.mxu0 0.0
        %1435 = vmatmul.mubr.f32.gmra.mrb[0].mxu0 %v1311
        %v1436 = vpop.f32.mrb[0].mxu0
        %v1437 = vadd.f32 0.0, %v1436
        %v1438 = vpop.f32.mrb[0].mxu0
        %v1439 = vadd.f32 0.0, %v1438
        %1440 = vmatprep.mubr.f32.mxu0 0.0
        %1441 = vmatmul.mubr.f32.gmra.mrb[0].mxu0 %v1314
        %v1442 = vpop.f32.mrb[0].mxu0
        %v1443 = vadd.f32 0.0, %v1442
        %v1444 = vpop.f32.mrb[0].mxu0
        %v1445 = vadd.f32 0.0, %v1444
        %1446 = vmatprep.mubr.f32.mxu0 0.0
        %1447 = vmatmul.mubr.f32.gmra.mrb[0].mxu0 %v1317
        %v1448 = vpop.f32.mrb[0].mxu0
        %v1449 = vadd.f32 0.0, %v1448
        %v1450 = vpop.f32.mrb[0].mxu0
        %v1451 = vadd.f32 0.0, %v1450
        %1452 = vmatprep.mubr.f32.mxu0 0.0
        %1453 = vmatmul.mubr.f32.gmra.mrb[0].mxu0 %v1320
        %v1454 = vpop.f32.mrb[0].mxu0
        %v1455 = vadd.f32 0.0, %v1454
        %v1456 = vpop.f32.mrb[0].mxu0
        %v1457 = vadd.f32 0.0, %v1456
        %1458 = vmatprep.mubr.f32.mxu0 0.0
        %1459 = vmatmul.mubr.f32.gmra.mrb[0].mxu0 %v1323
        %v1460 = vpop.f32.mrb[0].mxu0
        %v1461 = vadd.f32 0.0, %v1460
        %v1462 = vpop.f32.mrb[0].mxu0
        %v1463 = vadd.f32 0.0, %v1462
        %1464 = vmatprep.mubr.f32.mxu0 0.0
        %1465 = vmatmul.mubr.f32.gmra.mrb[0].mxu0 %v1326
        %v1466 = vpop.f32.mrb[0].mxu0
        %v1467 = vadd.f32 0.0, %v1466
        %v1468 = vpop.f32.mrb[0].mxu0
        %v1469 = vadd.f32 0.0, %v1468
        %1470 = vmatprep.mubr.f32.mxu0 0.0
        %1471 = vmatmul.mubr.f32.gmra.mrb[0].mxu0 %v1329
        %v1472 = vpop.f32.mrb[0].mxu0
        %v1473 = vadd.f32 0.0, %v1472
        %v1474 = vpop.f32.mrb[0].mxu0
        %v1475 = vadd.f32 0.0, %v1474
        %1476 = vmatprep.mubr.f32.mxu0 0.0
        %1477 = vmatmul.mubr.f32.gmra.mrb[0].mxu0 %v1332
        %v1478 = vpop.f32.mrb[0].mxu0
        %v1479 = vadd.f32 0.0, %v1478
        %v1480 = vpop.f32.mrb[0].mxu0
        %v1481 = vadd.f32 0.0, %v1480
        %1482 = vmatprep.mubr.f32.mxu0 0.0
        %1483 = vmatmul.mubr.f32.gmra.mrb[0].mxu0 %v1335
        %v1484 = vpop.f32.mrb[0].mxu0
        %v1485 = vadd.f32 0.0, %v1484
        %v1486 = vpop.f32.mrb[0].mxu0
        %v1487 = vadd.f32 0.0, %v1486
        %1488 = vmatprep.mubr.f32.mxu0 0.0
        %1489 = vmatmul.mubr.f32.gmra.mrb[0].mxu0 %v1338
        %v1490 = vpop.f32.mrb[0].mxu0
        %v1491 = vadd.f32 0.0, %v1490
        %v1492 = vpop.f32.mrb[0].mxu0
        %v1493 = vadd.f32 0.0, %v1492
        %1494 = vmatprep.mubr.f32.mxu0 0.0
        %1495 = vmatmul.mubr.f32.gmra.mrb[0].mxu0 %v1341
        %v1496 = vpop.f32.mrb[0].mxu0
        %v1497 = vadd.f32 0.0, %v1496
        %v1498 = vpop.f32.mrb[0].mxu0
        %v1499 = vadd.f32 0.0, %v1498
        %1500 = vmatprep.mubr.f32.mxu0 0.0
        %1501 = vmatmul.mubr.f32.gmra.mrb[0].mxu0 %v1344
        %v1502 = vpop.f32.mrb[0].mxu0
        %v1503 = vadd.f32 0.0, %v1502
        %v1504 = vpop.f32.mrb[0].mxu0
        %v1505 = vadd.f32 0.0, %v1504
        %1506 = vdwg.mxu0
        %v1507 = vadd.f32 %v1199, %v1413
        %v1508 = vadd.f32 %v1201, %v1415
        %v1509 = vadd.f32 %v1205, %v1419
        %v1510 = vadd.f32 %v1207, %v1421
        %v1511 = vadd.f32 %v1211, %v1425
        %v1512 = vadd.f32 %v1213, %v1427
        %v1513 = vadd.f32 %v1217, %v1431
        %v1514 = vadd.f32 %v1219, %v1433
        %v1515 = vadd.f32 %v1223, %v1437
        %v1516 = vadd.f32 %v1225, %v1439
        %v1517 = vadd.f32 %v1229, %v1443
        %v1518 = vadd.f32 %v1231, %v1445
        %v1519 = vadd.f32 %v1235, %v1449
        %v1520 = vadd.f32 %v1237, %v1451
        %v1521 = vadd.f32 %v1241, %v1455
        %v1522 = vadd.f32 %v1243, %v1457
        %v1523 = vadd.f32 %v1247, %v1461
        %v1524 = vadd.f32 %v1249, %v1463
        %v1525 = vadd.f32 %v1253, %v1467
        %v1526 = vadd.f32 %v1255, %v1469
        %v1527 = vadd.f32 %v1259, %v1473
        %v1528 = vadd.f32 %v1261, %v1475
        %v1529 = vadd.f32 %v1265, %v1479
        %v1530 = vadd.f32 %v1267, %v1481
        %v1531 = vadd.f32 %v1271, %v1485
        %v1532 = vadd.f32 %v1273, %v1487
        %v1533 = vadd.f32 %v1277, %v1491
        %v1534 = vadd.f32 %v1279, %v1493
        %v1535 = vadd.f32 %v1283, %v1497
        %v1536 = vadd.f32 %v1285, %v1499
        %v1537 = vadd.f32 %v1289, %v1503
        %v1538 = vadd.f32 %v1291, %v1505
        %v1539 = vld [vmem:[%s3] sm:$0x3]
        %v1541 = vlaneseq
        %v1542 = vshrl.u32 %v1541, 7
        %v1543 = vsub.s32 0, %v1542
        %v1544 = vrot.slane %v1539, %v1543
        %v1545 = vlaneseq
        %v1546 = vshrl.u32 %v1545, 7
        %v1547 = vsub.s32 1, %v1546
        %v1548 = vrot.slane %v1539, %v1547
        %v1551 = vadd.f32 %v1507, %v1544
        %v1552 = vadd.f32 %v1508, %v1548
        %v1553 = vadd.f32 %v1509, %v1544
        %v1554 = vadd.f32 %v1510, %v1548
        %v1555 = vadd.f32 %v1511, %v1544
        %v1556 = vadd.f32 %v1512, %v1548
        %v1557 = vadd.f32 %v1513, %v1544
        %v1558 = vadd.f32 %v1514, %v1548
        %v1559 = vadd.f32 %v1515, %v1544
        %v1560 = vadd.f32 %v1516, %v1548
        %v1561 = vadd.f32 %v1517, %v1544
        %v1562 = vadd.f32 %v1518, %v1548
        %v1563 = vadd.f32 %v1519, %v1544
        %v1564 = vadd.f32 %v1520, %v1548
        %v1565 = vadd.f32 %v1521, %v1544
        %v1566 = vadd.f32 %v1522, %v1548
        %v1567 = vadd.f32 %v1523, %v1544
        %v1568 = vadd.f32 %v1524, %v1548
        %v1569 = vadd.f32 %v1525, %v1544
        %v1570 = vadd.f32 %v1526, %v1548
        %v1571 = vadd.f32 %v1527, %v1544
        %v1572 = vadd.f32 %v1528, %v1548
        %v1573 = vadd.f32 %v1529, %v1544
        %v1574 = vadd.f32 %v1530, %v1548
        %v1575 = vadd.f32 %v1531, %v1544
        %v1576 = vadd.f32 %v1532, %v1548
        %v1577 = vadd.f32 %v1533, %v1544
        %v1578 = vadd.f32 %v1534, %v1548
        %v1579 = vadd.f32 %v1535, %v1544
        %v1580 = vadd.f32 %v1536, %v1548
        %v1581 = vadd.f32 %v1537, %v1544
        %v1582 = vadd.f32 %v1538, %v1548
        %v1583 = vmax.f32 %v1551, 0.0
        %v1584 = vmax.f32 %v1552, 0.0
        %v1585 = vmax.f32 %v1553, 0.0
        %v1586 = vmax.f32 %v1554, 0.0
        %v1587 = vmax.f32 %v1555, 0.0
        %v1588 = vmax.f32 %v1556, 0.0
        %v1589 = vmax.f32 %v1557, 0.0
        %v1590 = vmax.f32 %v1558, 0.0
        %v1591 = vmax.f32 %v1559, 0.0
        %v1592 = vmax.f32 %v1560, 0.0
        %v1593 = vmax.f32 %v1561, 0.0
        %v1594 = vmax.f32 %v1562, 0.0
        %v1595 = vmax.f32 %v1563, 0.0
        %v1596 = vmax.f32 %v1564, 0.0
        %v1597 = vmax.f32 %v1565, 0.0
        %v1598 = vmax.f32 %v1566, 0.0
        %v1599 = vmax.f32 %v1567, 0.0
        %v1600 = vmax.f32 %v1568, 0.0
        %v1601 = vmax.f32 %v1569, 0.0
        %v1602 = vmax.f32 %v1570, 0.0
        %v1603 = vmax.f32 %v1571, 0.0
        %v1604 = vmax.f32 %v1572, 0.0
        %v1605 = vmax.f32 %v1573, 0.0
        %v1606 = vmax.f32 %v1574, 0.0
        %v1607 = vmax.f32 %v1575, 0.0
        %v1608 = vmax.f32 %v1576, 0.0
        %v1609 = vmax.f32 %v1577, 0.0
        %v1610 = vmax.f32 %v1578, 0.0
        %v1611 = vmax.f32 %v1579, 0.0
        %v1612 = vmax.f32 %v1580, 0.0
        %v1613 = vmax.f32 %v1581, 0.0
        %v1614 = vmax.f32 %v1582, 0.0
        %v1615 = vmax.f32 %v1583, %v1599
        %v1616 = vmax.f32 %v1584, %v1600
        %v1617 = vmax.f32 %v1585, %v1601
        %v1618 = vmax.f32 %v1586, %v1602
        %v1619 = vmax.f32 %v1587, %v1603
        %v1620 = vmax.f32 %v1588, %v1604
        %v1621 = vmax.f32 %v1589, %v1605
        %v1622 = vmax.f32 %v1590, %v1606
        %v1623 = vmax.f32 %v1591, %v1607
        %v1624 = vmax.f32 %v1592, %v1608
        %v1625 = vmax.f32 %v1593, %v1609
        %v1626 = vmax.f32 %v1594, %v1610
        %v1627 = vmax.f32 %v1595, %v1611
        %v1628 = vmax.f32 %v1596, %v1612
        %v1629 = vmax.f32 %v1597, %v1613
        %v1630 = vmax.f32 %v1598, %v1614
        %v1631 = vmax.f32 %v1615, %v1616
        %v1632 = vmax.f32 %v1617, %v1618
        %v1633 = vmax.f32 %v1619, %v1620
        %v1634 = vmax.f32 %v1621, %v1622
        %v1635 = vmax.f32 %v1623, %v1624
        %v1636 = vmax.f32 %v1625, %v1626
        %v1637 = vmax.f32 %v1627, %v1628
        %v1638 = vmax.f32 %v1629, %v1630
        %v1639 = vld [vmem:[#allocation7] sm:$0xff]
        %v1640 = vld [vmem:[#allocation7 + $0x8] sm:$0xff]
        %v1641 = vld [vmem:[#allocation7 + $0x10] sm:$0xff]
        %v1642 = vld [vmem:[#allocation7 + $0x18] sm:$0xff]
        %v1643 = vld [vmem:[#allocation7 + $0x20] sm:$0xff]
        %v1644 = vld [vmem:[#allocation7 + $0x28] sm:$0xff]
        %v1645 = vld [vmem:[#allocation7 + $0x30] sm:$0xff]
        %v1646 = vld [vmem:[#allocation7 + $0x38] sm:$0xff]
        %v1647 = vld [vmem:[#allocation7 + $0x40] sm:$0xff]
        %v1648 = vld [vmem:[#allocation7 + $0x48] sm:$0xff]
        %v1649 = vld [vmem:[#allocation7 + $0x50] sm:$0xff]
        %v1650 = vld [vmem:[#allocation7 + $0x58] sm:$0xff]
        %v1651 = vld [vmem:[#allocation7 + $0x60] sm:$0xff]
        %v1652 = vld [vmem:[#allocation7 + $0x68] sm:$0xff]
        %v1653 = vld [vmem:[#allocation7 + $0x70] sm:$0xff]
        %v1654 = vld [vmem:[#allocation7 + $0x78] sm:$0xff]
        %v1655 = vld [vmem:[#allocation7 + $0x80] sm:$0xff]
        %v1656 = vld [vmem:[#allocation7 + $0x88] sm:$0xff]
        %v1657 = vld [vmem:[#allocation7 + $0x90] sm:$0xff]
        %v1658 = vld [vmem:[#allocation7 + $0x98] sm:$0xff]
        %v1659 = vld [vmem:[#allocation7 + $0xa0] sm:$0xff]
        %v1660 = vld [vmem:[#allocation7 + $0xa8] sm:$0xff]
        %v1661 = vld [vmem:[#allocation7 + $0xb0] sm:$0xff]
        %v1662 = vld [vmem:[#allocation7 + $0xb8] sm:$0xff]
        %vm1663 = vcmask 523264
        %v1665 = vsel %vm1663, %v1639, 0
        %v1668 = vsel %vm1663, %v1640, 0
        %v1671 = vsel %vm1663, %v1641, 0
        %v1674 = vsel %vm1663, %v1642, 0
        %v1677 = vsel %vm1663, %v1643, 0
        %v1680 = vsel %vm1663, %v1644, 0
        %v1683 = vsel %vm1663, %v1645, 0
        %v1686 = vsel %vm1663, %v1646, 0
        %v1689 = vsel %vm1663, %v1647, 0
        %v1692 = vsel %vm1663, %v1648, 0
        %v1695 = vsel %vm1663, %v1649, 0
        %v1698 = vsel %vm1663, %v1650, 0
        %v1701 = vsel %vm1663, %v1651, 0
        %v1704 = vsel %vm1663, %v1652, 0
        %v1707 = vsel %vm1663, %v1653, 0
        %v1710 = vsel %vm1663, %v1654, 0
        %v1713 = vsel %vm1663, %v1655, 0
        %v1716 = vsel %vm1663, %v1656, 0
        %v1719 = vsel %vm1663, %v1657, 0
        %v1722 = vsel %vm1663, %v1658, 0
        %v1725 = vsel %vm1663, %v1659, 0
        %v1728 = vsel %vm1663, %v1660, 0
        %v1731 = vsel %vm1663, %v1661, 0
        %v1734 = vsel %vm1663, %v1662, 0
        %1736 = vmatprep.subr.mxu0 0.0
        %1737 = vmatpush1.msra.mxu0 %v1631
        %1738 = vmatprep.subr.mxu0 0.0
        %1739 = vmatpush1.msra.mxu0 %v1632
        %1740 = vmatprep.subr.mxu0 0.0
        %1741 = vmatpush1.msra.mxu0 %v1633
        %1742 = vmatprep.subr.mxu0 0.0
        %1743 = vmatpush1.msra.mxu0 %v1634
        %1744 = vmatprep.subr.mxu0 0.0
        %1745 = vmatpush1.msra.mxu0 %v1635
        %1746 = vmatprep.subr.mxu0 0.0
        %1747 = vmatpush1.msra.mxu0 %v1636
        %1748 = vmatprep.subr.mxu0 0.0
        %1749 = vmatpush1.msra.mxu0 %v1637
        %1750 = vmatprep.subr.mxu0 0.0
        %1751 = vmatpush1.msra.mxu0 %v1638
        %1752 = vmatprep.subr.mxu0 0.0
        %1753 = vmatpush1.msra.mxu0 0.0
        %1754 = vmatprep.subr.mxu0 0.0
        %1755 = vmatpush1.msra.mxu0 0.0
        %1756 = vmatprep.subr.mxu0 0.0
        %1757 = vmatpush1.msra.mxu0 0.0
        %1758 = vmatprep.subr.mxu0 0.0
        %1759 = vmatpush1.msra.mxu0 0.0
        %1760 = vmatprep.subr.mxu0 0.0
        %1761 = vmatpush1.msra.mxu0 0.0
        %1762 = vmatprep.subr.mxu0 0.0
        %1763 = vmatpush1.msra.mxu0 0.0
        %1764 = vmatprep.subr.mxu0 0.0
        %1765 = vmatpush1.msra.mxu0 0.0
        %1766 = vmatprep.subr.mxu0 0.0
        %1767 = vmatpush1.msra.mxu0 0.0
        %1768 = vmatprep.subr.mxu0 0.0
        %1769 = vmatpush1.msra.mxu0 0.0
        %1770 = vmatprep.subr.mxu0 0.0
        %1771 = vmatpush1.msra.mxu0 0.0
        %1772 = vmatprep.subr.mxu0 0.0
        %1773 = vmatpush1.msra.mxu0 0.0
        %1774 = vmatprep.subr.mxu0 0.0
        %1775 = vmatpush1.msra.mxu0 0.0
        %1776 = vmatprep.subr.mxu0 0.0
        %1777 = vmatpush1.msra.mxu0 0.0
        %1778 = vmatprep.subr.mxu0 0.0
        %1779 = vmatpush1.msra.mxu0 0.0
        %1780 = vmatprep.subr.mxu0 0.0
        %1781 = vmatpush1.msra.mxu0 0.0
        %1782 = vmatprep.subr.mxu0 0.0
        %1783 = vmatpush1.msra.mxu0 0.0
        %1784 = vmatprep.subr.mxu0 0.0
        %1785 = vmatpush1.msra.mxu0 0.0
        %1786 = vmatprep.subr.mxu0 0.0
        %1787 = vmatpush1.msra.mxu0 0.0
        %1788 = vmatprep.subr.mxu0 0.0
        %1789 = vmatpush1.msra.mxu0 0.0
        %1790 = vmatprep.subr.mxu0 0.0
        %1791 = vmatpush1.msra.mxu0 0.0
        %1792 = vmatprep.subr.mxu0 0.0
        %1793 = vmatpush1.msra.mxu0 0.0
        %1794 = vmatprep.subr.mxu0 0.0
        %1795 = vmatpush1.msra.mxu0 0.0
        %1796 = vmatprep.subr.mxu0 0.0
        %1797 = vmatpush1.msra.mxu0 0.0
        %1798 = vmatprep.subr.mxu0 0.0
        %1799 = vmatpush1.msra.mxu0 0.0
        %1800 = vmatprep.mubr.f32.mxu0 0.0
        %1801 = vmatmul.mubr.f32.gmra.mrb[0].mxu0 %v1665
        %v1802 = vpop.f32.mrb[0].mxu0
        %v1803 = vadd.f32 0.0, %v1802
        %v1804 = vpop.f32.mrb[0].mxu0
        %1805 = vmatprep.mubr.f32.mxu0 0.0
        %1806 = vmatmul.mubr.f32.gmra.mrb[0].mxu0 %v1668
        %v1807 = vpop.f32.mrb[0].mxu0
        %v1808 = vadd.f32 0.0, %v1807
        %v1809 = vpop.f32.mrb[0].mxu0
        %1810 = vmatprep.mubr.f32.mxu0 0.0
        %1811 = vmatmul.mubr.f32.gmra.mrb[0].mxu0 %v1671
        %v1812 = vpop.f32.mrb[0].mxu0
        %v1813 = vadd.f32 0.0, %v1812
        %v1814 = vpop.f32.mrb[0].mxu0
        %1815 = vmatprep.mubr.f32.mxu0 0.0
        %1816 = vmatmul.mubr.f32.gmra.mrb[0].mxu0 %v1674
        %v1817 = vpop.f32.mrb[0].mxu0
        %v1818 = vadd.f32 0.0, %v1817
        %v1819 = vpop.f32.mrb[0].mxu0
        %1820 = vmatprep.mubr.f32.mxu0 0.0
        %1821 = vmatmul.mubr.f32.gmra.mrb[0].mxu0 %v1677
        %v1822 = vpop.f32.mrb[0].mxu0
        %v1823 = vadd.f32 0.0, %v1822
        %v1824 = vpop.f32.mrb[0].mxu0
        %1825 = vmatprep.mubr.f32.mxu0 0.0
        %1826 = vmatmul.mubr.f32.gmra.mrb[0].mxu0 %v1680
        %v1827 = vpop.f32.mrb[0].mxu0
        %v1828 = vadd.f32 0.0, %v1827
        %v1829 = vpop.f32.mrb[0].mxu0
        %1830 = vmatprep.mubr.f32.mxu0 0.0
        %1831 = vmatmul.mubr.f32.gmra.mrb[0].mxu0 %v1683
        %v1832 = vpop.f32.mrb[0].mxu0
        %v1833 = vadd.f32 0.0, %v1832
        %v1834 = vpop.f32.mrb[0].mxu0
        %1835 = vmatprep.mubr.f32.mxu0 0.0
        %1836 = vmatmul.mubr.f32.gmra.mrb[0].mxu0 %v1686
        %v1837 = vpop.f32.mrb[0].mxu0
        %v1838 = vadd.f32 0.0, %v1837
        %v1839 = vpop.f32.mrb[0].mxu0
        %1840 = vmatprep.mubr.f32.mxu0 0.0
        %1841 = vmatmul.mubr.f32.gmra.mrb[0].mxu0 %v1689
        %v1842 = vpop.f32.mrb[0].mxu0
        %v1843 = vadd.f32 0.0, %v1842
        %v1844 = vpop.f32.mrb[0].mxu0
        %1845 = vmatprep.mubr.f32.mxu0 0.0
        %1846 = vmatmul.mubr.f32.gmra.mrb[0].mxu0 %v1692
        %v1847 = vpop.f32.mrb[0].mxu0
        %v1848 = vadd.f32 0.0, %v1847
        %v1849 = vpop.f32.mrb[0].mxu0
        %1850 = vmatprep.mubr.f32.mxu0 0.0
        %1851 = vmatmul.mubr.f32.gmra.mrb[0].mxu0 %v1695
        %v1852 = vpop.f32.mrb[0].mxu0
        %v1853 = vadd.f32 0.0, %v1852
        %v1854 = vpop.f32.mrb[0].mxu0
        %1855 = vmatprep.mubr.f32.mxu0 0.0
        %1856 = vmatmul.mubr.f32.gmra.mrb[0].mxu0 %v1698
        %v1857 = vpop.f32.mrb[0].mxu0
        %v1858 = vadd.f32 0.0, %v1857
        %v1859 = vpop.f32.mrb[0].mxu0
        %1860 = vmatprep.mubr.f32.mxu0 0.0
        %1861 = vmatmul.mubr.f32.gmra.mrb[0].mxu0 %v1701
        %v1862 = vpop.f32.mrb[0].mxu0
        %v1863 = vadd.f32 0.0, %v1862
        %v1864 = vpop.f32.mrb[0].mxu0
        %1865 = vmatprep.mubr.f32.mxu0 0.0
        %1866 = vmatmul.mubr.f32.gmra.mrb[0].mxu0 %v1704
        %v1867 = vpop.f32.mrb[0].mxu0
        %v1868 = vadd.f32 0.0, %v1867
        %v1869 = vpop.f32.mrb[0].mxu0
        %1870 = vmatprep.mubr.f32.mxu0 0.0
        %1871 = vmatmul.mubr.f32.gmra.mrb[0].mxu0 %v1707
        %v1872 = vpop.f32.mrb[0].mxu0
        %v1873 = vadd.f32 0.0, %v1872
        %v1874 = vpop.f32.mrb[0].mxu0
        %1875 = vmatprep.mubr.f32.mxu0 0.0
        %1876 = vmatmul.mubr.f32.gmra.mrb[0].mxu0 %v1710
        %v1877 = vpop.f32.mrb[0].mxu0
        %v1878 = vadd.f32 0.0, %v1877
        %v1879 = vpop.f32.mrb[0].mxu0
        %1880 = vmatprep.mubr.f32.mxu0 0.0
        %1881 = vmatmul.mubr.f32.gmra.mrb[0].mxu0 %v1713
        %v1882 = vpop.f32.mrb[0].mxu0
        %v1883 = vadd.f32 0.0, %v1882
        %v1884 = vpop.f32.mrb[0].mxu0
        %1885 = vmatprep.mubr.f32.mxu0 0.0
        %1886 = vmatmul.mubr.f32.gmra.mrb[0].mxu0 %v1716
        %v1887 = vpop.f32.mrb[0].mxu0
        %v1888 = vadd.f32 0.0, %v1887
        %v1889 = vpop.f32.mrb[0].mxu0
        %1890 = vmatprep.mubr.f32.mxu0 0.0
        %1891 = vmatmul.mubr.f32.gmra.mrb[0].mxu0 %v1719
        %v1892 = vpop.f32.mrb[0].mxu0
        %v1893 = vadd.f32 0.0, %v1892
        %v1894 = vpop.f32.mrb[0].mxu0
        %1895 = vmatprep.mubr.f32.mxu0 0.0
        %1896 = vmatmul.mubr.f32.gmra.mrb[0].mxu0 %v1722
        %v1897 = vpop.f32.mrb[0].mxu0
        %v1898 = vadd.f32 0.0, %v1897
        %v1899 = vpop.f32.mrb[0].mxu0
        %1900 = vmatprep.mubr.f32.mxu0 0.0
        %1901 = vmatmul.mubr.f32.gmra.mrb[0].mxu0 %v1725
        %v1902 = vpop.f32.mrb[0].mxu0
        %v1903 = vadd.f32 0.0, %v1902
        %v1904 = vpop.f32.mrb[0].mxu0
        %1905 = vmatprep.mubr.f32.mxu0 0.0
        %1906 = vmatmul.mubr.f32.gmra.mrb[0].mxu0 %v1728
        %v1907 = vpop.f32.mrb[0].mxu0
        %v1908 = vadd.f32 0.0, %v1907
        %v1909 = vpop.f32.mrb[0].mxu0
        %1910 = vmatprep.mubr.f32.mxu0 0.0
        %1911 = vmatmul.mubr.f32.gmra.mrb[0].mxu0 %v1731
        %v1912 = vpop.f32.mrb[0].mxu0
        %v1913 = vadd.f32 0.0, %v1912
        %v1914 = vpop.f32.mrb[0].mxu0
        %1915 = vmatprep.mubr.f32.mxu0 0.0
        %1916 = vmatmul.mubr.f32.gmra.mrb[0].mxu0 %v1734
        %v1917 = vpop.f32.mrb[0].mxu0
        %v1918 = vadd.f32 0.0, %v1917
        %v1919 = vpop.f32.mrb[0].mxu0
        %1920 = vdwg.mxu0
        %v1921 = vld [vmem:[#allocation9] sm:$0xff]
        %v1922 = vld [vmem:[#allocation9 + $0x8] sm:$0xff]
        %v1923 = vld [vmem:[#allocation9 + $0x10] sm:$0xff]
        %v1924 = vld [vmem:[#allocation9 + $0x18] sm:$0xff]
        %v1925 = vld [vmem:[#allocation9 + $0x20] sm:$0xff]
        %v1926 = vld [vmem:[#allocation9 + $0x28] sm:$0xff]
        %v1927 = vld [vmem:[#allocation9 + $0x30] sm:$0xff]
        %v1928 = vld [vmem:[#allocation9 + $0x38] sm:$0xff]
        %v1929 = vld [vmem:[#allocation9 + $0x40] sm:$0xff]
        %v1930 = vld [vmem:[#allocation9 + $0x48] sm:$0xff]
        %v1931 = vld [vmem:[#allocation9 + $0x50] sm:$0xff]
        %v1932 = vld [vmem:[#allocation9 + $0x58] sm:$0xff]
        %v1933 = vld [vmem:[#allocation9 + $0x60] sm:$0xff]
        %v1934 = vld [vmem:[#allocation9 + $0x68] sm:$0xff]
        %v1935 = vld [vmem:[#allocation9 + $0x70] sm:$0xff]
        %v1936 = vld [vmem:[#allocation9 + $0x78] sm:$0xff]
        %s1937 = scalar_lea.vmem [#allocation9], 128
        %v1938 = vld [vmem:[%s1937] sm:$0xff]
        %v1939 = vld [vmem:[%s1937 + $0x8] sm:$0xff]
        %v1940 = vld [vmem:[%s1937 + $0x10] sm:$0xff]
        %v1941 = vld [vmem:[%s1937 + $0x18] sm:$0xff]
        %v1942 = vld [vmem:[%s1937 + $0x20] sm:$0xff]
        %v1943 = vld [vmem:[%s1937 + $0x28] sm:$0xff]
        %v1944 = vld [vmem:[%s1937 + $0x30] sm:$0xff]
        %v1945 = vld [vmem:[%s1937 + $0x38] sm:$0xff]
        %v1946 = vld [vmem:[%s1937 + $0x40] sm:$0xff]
        %v1947 = vld [vmem:[%s1937 + $0x48] sm:$0xff]
        %v1948 = vld [vmem:[%s1937 + $0x50] sm:$0xff]
        %v1949 = vld [vmem:[%s1937 + $0x58] sm:$0xff]
        %v1950 = vld [vmem:[%s1937 + $0x60] sm:$0xff]
        %v1951 = vld [vmem:[%s1937 + $0x68] sm:$0xff]
        %v1952 = vld [vmem:[%s1937 + $0x70] sm:$0xff]
        %v1953 = vld [vmem:[%s1937 + $0x78] sm:$0xff]
        %1954 = vmatprep.subr.mxu0 0.0
        %1955 = vmatpush1.msra.mxu0 %v1938
        %1956 = vmatprep.subr.mxu0 0.0
        %1957 = vmatpush1.msra.mxu0 %v1939
        %1958 = vmatprep.subr.mxu0 0.0
        %1959 = vmatpush1.msra.mxu0 %v1940
        %1960 = vmatprep.subr.mxu0 0.0
        %1961 = vmatpush1.msra.mxu0 %v1941
        %1962 = vmatprep.subr.mxu0 0.0
        %1963 = vmatpush1.msra.mxu0 %v1942
        %1964 = vmatprep.subr.mxu0 0.0
        %1965 = vmatpush1.msra.mxu0 %v1943
        %1966 = vmatprep.subr.mxu0 0.0
        %1967 = vmatpush1.msra.mxu0 %v1944
        %1968 = vmatprep.subr.mxu0 0.0
        %1969 = vmatpush1.msra.mxu0 %v1945
        %1970 = vmatprep.subr.mxu0 0.0
        %1971 = vmatpush1.msra.mxu0 %v1946
        %1972 = vmatprep.subr.mxu0 0.0
        %1973 = vmatpush1.msra.mxu0 %v1947
        %1974 = vmatprep.subr.mxu0 0.0
        %1975 = vmatpush1.msra.mxu0 %v1948
        %1976 = vmatprep.subr.mxu0 0.0
        %1977 = vmatpush1.msra.mxu0 %v1949
        %1978 = vmatprep.subr.mxu0 0.0
        %1979 = vmatpush1.msra.mxu0 %v1950
        %1980 = vmatprep.subr.mxu0 0.0
        %1981 = vmatpush1.msra.mxu0 %v1951
        %1982 = vmatprep.subr.mxu0 0.0
        %1983 = vmatpush1.msra.mxu0 %v1952
        %1984 = vmatprep.subr.mxu0 0.0
        %1985 = vmatpush1.msra.mxu0 %v1953
        %1986 = vmatprep.subr.mxu0 0.0
        %1987 = vmatpush1.msra.mxu0 0.0
        %1988 = vmatprep.subr.mxu0 0.0
        %1989 = vmatpush1.msra.mxu0 0.0
        %1990 = vmatprep.subr.mxu0 0.0
        %1991 = vmatpush1.msra.mxu0 0.0
        %1992 = vmatprep.subr.mxu0 0.0
        %1993 = vmatpush1.msra.mxu0 0.0
        %1994 = vmatprep.subr.mxu0 0.0
        %1995 = vmatpush1.msra.mxu0 0.0
        %1996 = vmatprep.subr.mxu0 0.0
        %1997 = vmatpush1.msra.mxu0 0.0
        %1998 = vmatprep.subr.mxu0 0.0
        %1999 = vmatpush1.msra.mxu0 0.0
        %2000 = vmatprep.subr.mxu0 0.0
        %2001 = vmatpush1.msra.mxu0 0.0
        %2002 = vmatprep.subr.mxu0 0.0
        %2003 = vmatpush1.msra.mxu0 0.0
        %2004 = vmatprep.subr.mxu0 0.0
        %2005 = vmatpush1.msra.mxu0 0.0
        %2006 = vmatprep.subr.mxu0 0.0
        %2007 = vmatpush1.msra.mxu0 0.0
        %2008 = vmatprep.subr.mxu0 0.0
        %2009 = vmatpush1.msra.mxu0 0.0
        %2010 = vmatprep.subr.mxu0 0.0
        %2011 = vmatpush1.msra.mxu0 0.0
        %2012 = vmatprep.subr.mxu0 0.0
        %2013 = vmatpush1.msra.mxu0 0.0
        %2014 = vmatprep.subr.mxu0 0.0
        %2015 = vmatpush1.msra.mxu0 0.0
        %2016 = vmatprep.subr.mxu0 0.0
        %2017 = vmatpush1.msra.mxu0 0.0
        %2018 = vmatprep.mubr.f32.mxu0 0.0
        %2019 = vmatmul.mubr.f32.gmra.mrb[0].mxu0 %v1843
        %v2020 = vpop.f32.mrb[0].mxu0
        %v2021 = vadd.f32 0.0, %v2020
        %v2022 = vpop.f32.mrb[0].mxu0
        %2023 = vmatprep.mubr.f32.mxu0 0.0
        %2024 = vmatmul.mubr.f32.gmra.mrb[0].mxu0 %v1848
        %v2025 = vpop.f32.mrb[0].mxu0
        %v2026 = vadd.f32 0.0, %v2025
        %v2027 = vpop.f32.mrb[0].mxu0
        %2028 = vmatprep.mubr.f32.mxu0 0.0
        %2029 = vmatmul.mubr.f32.gmra.mrb[0].mxu0 %v1853
        %v2030 = vpop.f32.mrb[0].mxu0
        %v2031 = vadd.f32 0.0, %v2030
        %v2032 = vpop.f32.mrb[0].mxu0
        %2033 = vmatprep.mubr.f32.mxu0 0.0
        %2034 = vmatmul.mubr.f32.gmra.mrb[0].mxu0 %v1858
        %v2035 = vpop.f32.mrb[0].mxu0
        %v2036 = vadd.f32 0.0, %v2035
        %v2037 = vpop.f32.mrb[0].mxu0
        %2038 = vmatprep.mubr.f32.mxu0 0.0
        %2039 = vmatmul.mubr.f32.gmra.mrb[0].mxu0 %v1863
        %v2040 = vpop.f32.mrb[0].mxu0
        %v2041 = vadd.f32 0.0, %v2040
        %v2042 = vpop.f32.mrb[0].mxu0
        %2043 = vmatprep.mubr.f32.mxu0 0.0
        %2044 = vmatmul.mubr.f32.gmra.mrb[0].mxu0 %v1868
        %v2045 = vpop.f32.mrb[0].mxu0
        %v2046 = vadd.f32 0.0, %v2045
        %v2047 = vpop.f32.mrb[0].mxu0
        %2048 = vmatprep.mubr.f32.mxu0 0.0
        %2049 = vmatmul.mubr.f32.gmra.mrb[0].mxu0 %v1873
        %v2050 = vpop.f32.mrb[0].mxu0
        %v2051 = vadd.f32 0.0, %v2050
        %v2052 = vpop.f32.mrb[0].mxu0
        %2053 = vmatprep.mubr.f32.mxu0 0.0
        %2054 = vmatmul.mubr.f32.gmra.mrb[0].mxu0 %v1878
        %v2055 = vpop.f32.mrb[0].mxu0
        %v2056 = vadd.f32 0.0, %v2055
        %v2057 = vpop.f32.mrb[0].mxu0
        %2058 = vdwg.mxu0
        %2059 = vmatprep.subr.mxu0 0.0
        %2060 = vmatpush1.msra.mxu0 %v1921
        %2061 = vmatprep.subr.mxu0 0.0
        %2062 = vmatpush1.msra.mxu0 %v1922
        %2063 = vmatprep.subr.mxu0 0.0
        %2064 = vmatpush1.msra.mxu0 %v1923
        %2065 = vmatprep.subr.mxu0 0.0
        %2066 = vmatpush1.msra.mxu0 %v1924
        %2067 = vmatprep.subr.mxu0 0.0
        %2068 = vmatpush1.msra.mxu0 %v1925
        %2069 = vmatprep.subr.mxu0 0.0
        %2070 = vmatpush1.msra.mxu0 %v1926
        %2071 = vmatprep.subr.mxu0 0.0
        %2072 = vmatpush1.msra.mxu0 %v1927
        %2073 = vmatprep.subr.mxu0 0.0
        %2074 = vmatpush1.msra.mxu0 %v1928
        %2075 = vmatprep.subr.mxu0 0.0
        %2076 = vmatpush1.msra.mxu0 %v1929
        %2077 = vmatprep.subr.mxu0 0.0
        %2078 = vmatpush1.msra.mxu0 %v1930
        %2079 = vmatprep.subr.mxu0 0.0
        %2080 = vmatpush1.msra.mxu0 %v1931
        %2081 = vmatprep.subr.mxu0 0.0
        %2082 = vmatpush1.msra.mxu0 %v1932
        %2083 = vmatprep.subr.mxu0 0.0
        %2084 = vmatpush1.msra.mxu0 %v1933
        %2085 = vmatprep.subr.mxu0 0.0
        %2086 = vmatpush1.msra.mxu0 %v1934
        %2087 = vmatprep.subr.mxu0 0.0
        %2088 = vmatpush1.msra.mxu0 %v1935
        %2089 = vmatprep.subr.mxu0 0.0
        %2090 = vmatpush1.msra.mxu0 %v1936
        %2091 = vmatprep.subr.mxu0 0.0
        %2092 = vmatpush1.msra.mxu0 0.0
        %2093 = vmatprep.subr.mxu0 0.0
        %2094 = vmatpush1.msra.mxu0 0.0
        %2095 = vmatprep.subr.mxu0 0.0
        %2096 = vmatpush1.msra.mxu0 0.0
        %2097 = vmatprep.subr.mxu0 0.0
        %2098 = vmatpush1.msra.mxu0 0.0
        %2099 = vmatprep.subr.mxu0 0.0
        %2100 = vmatpush1.msra.mxu0 0.0
        %2101 = vmatprep.subr.mxu0 0.0
        %2102 = vmatpush1.msra.mxu0 0.0
        %2103 = vmatprep.subr.mxu0 0.0
        %2104 = vmatpush1.msra.mxu0 0.0
        %2105 = vmatprep.subr.mxu0 0.0
        %2106 = vmatpush1.msra.mxu0 0.0
        %2107 = vmatprep.subr.mxu0 0.0
        %2108 = vmatpush1.msra.mxu0 0.0
        %2109 = vmatprep.subr.mxu0 0.0
        %2110 = vmatpush1.msra.mxu0 0.0
        %2111 = vmatprep.subr.mxu0 0.0
        %2112 = vmatpush1.msra.mxu0 0.0
        %2113 = vmatprep.subr.mxu0 0.0
        %2114 = vmatpush1.msra.mxu0 0.0
        %2115 = vmatprep.subr.mxu0 0.0
        %2116 = vmatpush1.msra.mxu0 0.0
        %2117 = vmatprep.subr.mxu0 0.0
        %2118 = vmatpush1.msra.mxu0 0.0
        %2119 = vmatprep.subr.mxu0 0.0
        %2120 = vmatpush1.msra.mxu0 0.0
        %2121 = vmatprep.subr.mxu0 0.0
        %2122 = vmatpush1.msra.mxu0 0.0
        %2123 = vmatprep.mubr.f32.mxu0 0.0
        %2124 = vmatmul.mubr.f32.gmra.mrb[0].mxu0 %v1803
        %v2125 = vpop.f32.mrb[0].mxu0
        %v2126 = vadd.f32 %v2021, %v2125
        %v2127 = vpop.f32.mrb[0].mxu0
        %2128 = vmatprep.mubr.f32.mxu0 0.0
        %2129 = vmatmul.mubr.f32.gmra.mrb[0].mxu0 %v1808
        %v2130 = vpop.f32.mrb[0].mxu0
        %v2131 = vadd.f32 %v2026, %v2130
        %v2132 = vpop.f32.mrb[0].mxu0
        %2133 = vmatprep.mubr.f32.mxu0 0.0
        %2134 = vmatmul.mubr.f32.gmra.mrb[0].mxu0 %v1813
        %v2135 = vpop.f32.mrb[0].mxu0
        %v2136 = vadd.f32 %v2031, %v2135
        %v2137 = vpop.f32.mrb[0].mxu0
        %2138 = vmatprep.mubr.f32.mxu0 0.0
        %2139 = vmatmul.mubr.f32.gmra.mrb[0].mxu0 %v1818
        %v2140 = vpop.f32.mrb[0].mxu0
        %v2141 = vadd.f32 %v2036, %v2140
        %v2142 = vpop.f32.mrb[0].mxu0
        %2143 = vmatprep.mubr.f32.mxu0 0.0
        %2144 = vmatmul.mubr.f32.gmra.mrb[0].mxu0 %v1823
        %v2145 = vpop.f32.mrb[0].mxu0
        %v2146 = vadd.f32 %v2041, %v2145
        %v2147 = vpop.f32.mrb[0].mxu0
        %2148 = vmatprep.mubr.f32.mxu0 0.0
        %2149 = vmatmul.mubr.f32.gmra.mrb[0].mxu0 %v1828
        %v2150 = vpop.f32.mrb[0].mxu0
        %v2151 = vadd.f32 %v2046, %v2150
        %v2152 = vpop.f32.mrb[0].mxu0
        %2153 = vmatprep.mubr.f32.mxu0 0.0
        %2154 = vmatmul.mubr.f32.gmra.mrb[0].mxu0 %v1833
        %v2155 = vpop.f32.mrb[0].mxu0
        %v2156 = vadd.f32 %v2051, %v2155
        %v2157 = vpop.f32.mrb[0].mxu0
        %2158 = vmatprep.mubr.f32.mxu0 0.0
        %2159 = vmatmul.mubr.f32.gmra.mrb[0].mxu0 %v1838
        %v2160 = vpop.f32.mrb[0].mxu0
        %v2161 = vadd.f32 %v2056, %v2160
        %v2162 = vpop.f32.mrb[0].mxu0
        %2163 = vdwg.mxu0
        %s2164 = scalar_lea.vmem [#allocation9], 256
        %v2165 = vld [vmem:[%s2164] sm:$0xff]
        %v2166 = vld [vmem:[%s2164 + $0x8] sm:$0xff]
        %v2167 = vld [vmem:[%s2164 + $0x10] sm:$0xff]
        %v2168 = vld [vmem:[%s2164 + $0x18] sm:$0xff]
        %v2169 = vld [vmem:[%s2164 + $0x20] sm:$0xff]
        %v2170 = vld [vmem:[%s2164 + $0x28] sm:$0xff]
        %v2171 = vld [vmem:[%s2164 + $0x30] sm:$0xff]
        %v2172 = vld [vmem:[%s2164 + $0x38] sm:$0xff]
        %v2173 = vld [vmem:[%s2164 + $0x40] sm:$0xff]
        %v2174 = vld [vmem:[%s2164 + $0x48] sm:$0xff]
        %v2175 = vld [vmem:[%s2164 + $0x50] sm:$0xff]
        %v2176 = vld [vmem:[%s2164 + $0x58] sm:$0xff]
        %v2177 = vld [vmem:[%s2164 + $0x60] sm:$0xff]
        %v2178 = vld [vmem:[%s2164 + $0x68] sm:$0xff]
        %v2179 = vld [vmem:[%s2164 + $0x70] sm:$0xff]
        %v2180 = vld [vmem:[%s2164 + $0x78] sm:$0xff]
        %2181 = vmatprep.subr.mxu0 0.0
        %2182 = vmatpush1.msra.mxu0 %v2165
        %2183 = vmatprep.subr.mxu0 0.0
        %2184 = vmatpush1.msra.mxu0 %v2166
        %2185 = vmatprep.subr.mxu0 0.0
        %2186 = vmatpush1.msra.mxu0 %v2167
        %2187 = vmatprep.subr.mxu0 0.0
        %2188 = vmatpush1.msra.mxu0 %v2168
        %2189 = vmatprep.subr.mxu0 0.0
        %2190 = vmatpush1.msra.mxu0 %v2169
        %2191 = vmatprep.subr.mxu0 0.0
        %2192 = vmatpush1.msra.mxu0 %v2170
        %2193 = vmatprep.subr.mxu0 0.0
        %2194 = vmatpush1.msra.mxu0 %v2171
        %2195 = vmatprep.subr.mxu0 0.0
        %2196 = vmatpush1.msra.mxu0 %v2172
        %2197 = vmatprep.subr.mxu0 0.0
        %2198 = vmatpush1.msra.mxu0 %v2173
        %2199 = vmatprep.subr.mxu0 0.0
        %2200 = vmatpush1.msra.mxu0 %v2174
        %2201 = vmatprep.subr.mxu0 0.0
        %2202 = vmatpush1.msra.mxu0 %v2175
        %2203 = vmatprep.subr.mxu0 0.0
        %2204 = vmatpush1.msra.mxu0 %v2176
        %2205 = vmatprep.subr.mxu0 0.0
        %2206 = vmatpush1.msra.mxu0 %v2177
        %2207 = vmatprep.subr.mxu0 0.0
        %2208 = vmatpush1.msra.mxu0 %v2178
        %2209 = vmatprep.subr.mxu0 0.0
        %2210 = vmatpush1.msra.mxu0 %v2179
        %2211 = vmatprep.subr.mxu0 0.0
        %2212 = vmatpush1.msra.mxu0 %v2180
        %2213 = vmatprep.subr.mxu0 0.0
        %2214 = vmatpush1.msra.mxu0 0.0
        %2215 = vmatprep.subr.mxu0 0.0
        %2216 = vmatpush1.msra.mxu0 0.0
        %2217 = vmatprep.subr.mxu0 0.0
        %2218 = vmatpush1.msra.mxu0 0.0
        %2219 = vmatprep.subr.mxu0 0.0
        %2220 = vmatpush1.msra.mxu0 0.0
        %2221 = vmatprep.subr.mxu0 0.0
        %2222 = vmatpush1.msra.mxu0 0.0
        %2223 = vmatprep.subr.mxu0 0.0
        %2224 = vmatpush1.msra.mxu0 0.0
        %2225 = vmatprep.subr.mxu0 0.0
        %2226 = vmatpush1.msra.mxu0 0.0
        %2227 = vmatprep.subr.mxu0 0.0
        %2228 = vmatpush1.msra.mxu0 0.0
        %2229 = vmatprep.subr.mxu0 0.0
        %2230 = vmatpush1.msra.mxu0 0.0
        %2231 = vmatprep.subr.mxu0 0.0
        %2232 = vmatpush1.msra.mxu0 0.0
        %2233 = vmatprep.subr.mxu0 0.0
        %2234 = vmatpush1.msra.mxu0 0.0
        %2235 = vmatprep.subr.mxu0 0.0
        %2236 = vmatpush1.msra.mxu0 0.0
        %2237 = vmatprep.subr.mxu0 0.0
        %2238 = vmatpush1.msra.mxu0 0.0
        %2239 = vmatprep.subr.mxu0 0.0
        %2240 = vmatpush1.msra.mxu0 0.0
        %2241 = vmatprep.subr.mxu0 0.0
        %2242 = vmatpush1.msra.mxu0 0.0
        %2243 = vmatprep.subr.mxu0 0.0
        %2244 = vmatpush1.msra.mxu0 0.0
        %2245 = vmatprep.mubr.f32.mxu0 0.0
        %2246 = vmatmul.mubr.f32.gmra.mrb[0].mxu0 %v1883
        %v2247 = vpop.f32.mrb[0].mxu0
        %v2248 = vadd.f32 0.0, %v2247
        %v2249 = vpop.f32.mrb[0].mxu0
        %2250 = vmatprep.mubr.f32.mxu0 0.0
        %2251 = vmatmul.mubr.f32.gmra.mrb[0].mxu0 %v1888
        %v2252 = vpop.f32.mrb[0].mxu0
        %v2253 = vadd.f32 0.0, %v2252
        %v2254 = vpop.f32.mrb[0].mxu0
        %2255 = vmatprep.mubr.f32.mxu0 0.0
        %2256 = vmatmul.mubr.f32.gmra.mrb[0].mxu0 %v1893
        %v2257 = vpop.f32.mrb[0].mxu0
        %v2258 = vadd.f32 0.0, %v2257
        %v2259 = vpop.f32.mrb[0].mxu0
        %2260 = vmatprep.mubr.f32.mxu0 0.0
        %2261 = vmatmul.mubr.f32.gmra.mrb[0].mxu0 %v1898
        %v2262 = vpop.f32.mrb[0].mxu0
        %v2263 = vadd.f32 0.0, %v2262
        %v2264 = vpop.f32.mrb[0].mxu0
        %2265 = vmatprep.mubr.f32.mxu0 0.0
        %2266 = vmatmul.mubr.f32.gmra.mrb[0].mxu0 %v1903
        %v2267 = vpop.f32.mrb[0].mxu0
        %v2268 = vadd.f32 0.0, %v2267
        %v2269 = vpop.f32.mrb[0].mxu0
        %2270 = vmatprep.mubr.f32.mxu0 0.0
        %2271 = vmatmul.mubr.f32.gmra.mrb[0].mxu0 %v1908
        %v2272 = vpop.f32.mrb[0].mxu0
        %v2273 = vadd.f32 0.0, %v2272
        %v2274 = vpop.f32.mrb[0].mxu0
        %2275 = vmatprep.mubr.f32.mxu0 0.0
        %2276 = vmatmul.mubr.f32.gmra.mrb[0].mxu0 %v1913
        %v2277 = vpop.f32.mrb[0].mxu0
        %v2278 = vadd.f32 0.0, %v2277
        %v2279 = vpop.f32.mrb[0].mxu0
        %2280 = vmatprep.mubr.f32.mxu0 0.0
        %2281 = vmatmul.mubr.f32.gmra.mrb[0].mxu0 %v1918
        %v2282 = vpop.f32.mrb[0].mxu0
        %v2283 = vadd.f32 0.0, %v2282
        %v2284 = vpop.f32.mrb[0].mxu0
        %2285 = vdwg.mxu0
        %v2286 = vadd.f32 %v2126, %v2248
        %v2287 = vadd.f32 %v2131, %v2253
        %v2288 = vadd.f32 %v2136, %v2258
        %v2289 = vadd.f32 %v2141, %v2263
        %v2290 = vadd.f32 %v2146, %v2268
        %v2291 = vadd.f32 %v2151, %v2273
        %v2292 = vadd.f32 %v2156, %v2278
        %v2293 = vadd.f32 %v2161, %v2283
        %v2294 = vld [vmem:[%s6] sm:$0x1]
        %v2296 = vlaneseq
        %v2297 = vshrl.u32 %v2296, 7
        %v2298 = vsub.s32 0, %v2297
        %v2299 = vrot.slane %v2294, %v2298
        %v2301 = vadd.f32 %v2286, %v2299
        %v2302 = vadd.f32 %v2287, %v2299
        %v2303 = vadd.f32 %v2288, %v2299
        %v2304 = vadd.f32 %v2289, %v2299
        %v2305 = vadd.f32 %v2290, %v2299
        %v2306 = vadd.f32 %v2291, %v2299
        %v2307 = vadd.f32 %v2292, %v2299
        %v2308 = vadd.f32 %v2293, %v2299
        %v2309 = vmax.f32 %v2301, 0.0
        %v2310 = vmax.f32 %v2302, 0.0
        %v2311 = vmax.f32 %v2303, 0.0
        %v2312 = vmax.f32 %v2304, 0.0
        %v2313 = vmax.f32 %v2305, 0.0
        %v2314 = vmax.f32 %v2306, 0.0
        %v2315 = vmax.f32 %v2307, 0.0
        %v2316 = vmax.f32 %v2308, 0.0
        %v2317 = vmax.f32 %v2309, %v2313
        %v2318 = vmax.f32 %v2310, %v2314
        %v2319 = vmax.f32 %v2311, %v2315
        %v2320 = vmax.f32 %v2312, %v2316
        %2325 = vrot.lane.b32.xlu0 %v2317, 96
        %v2326 = vpop.permute.xlu0 %2325
        %2327 = vrot.lane.b32.xlu0 %v2318, 96
        %v2328 = vpop.permute.xlu0 %2327
        %2329 = vrot.lane.b32.xlu0 %v2319, 96
        %v2330 = vpop.permute.xlu0 %2329
        %2331 = vrot.lane.b32.xlu0 %v2320, 96
        %v2332 = vpop.permute.xlu0 %2331
        %v2337 = vmax.f32 %v2317, %v2326
        %v2338 = vmax.f32 %v2318, %v2328
        %v2339 = vmax.f32 %v2319, %v2330
        %v2340 = vmax.f32 %v2320, %v2332
        %v2341 = vld [vmem:[#allocation10] sm:$0xff]
        %v2342 = vld [vmem:[#allocation10 + $0x8] sm:$0xff]
        %v2343 = vld [vmem:[#allocation10 + $0x10] sm:$0xff]
        %v2344 = vld [vmem:[#allocation10 + $0x18] sm:$0xff]
        %v2345 = vld [vmem:[#allocation10 + $0x20] sm:$0xff]
        %v2346 = vld [vmem:[#allocation10 + $0x28] sm:$0xff]
        %v2347 = vld [vmem:[#allocation10 + $0x30] sm:$0xff]
        %v2348 = vld [vmem:[#allocation10 + $0x38] sm:$0xff]
        %v2349 = vld [vmem:[#allocation10 + $0x40] sm:$0xff]
        %v2350 = vld [vmem:[#allocation10 + $0x48] sm:$0xff]
        %v2351 = vld [vmem:[#allocation10 + $0x50] sm:$0xff]
        %v2352 = vld [vmem:[#allocation10 + $0x58] sm:$0xff]
        %v2353 = vld [vmem:[#allocation10 + $0x60] sm:$0xff]
        %v2354 = vld [vmem:[#allocation10 + $0x68] sm:$0xff]
        %v2355 = vld [vmem:[#allocation10 + $0x70] sm:$0xff]
        %v2356 = vld [vmem:[#allocation10 + $0x78] sm:$0xff]
        %s2357 = scalar_lea.vmem [#allocation10], 128
        %v2358 = vld [vmem:[%s2357] sm:$0xff]
        %v2359 = vld [vmem:[%s2357 + $0x8] sm:$0xff]
        %v2360 = vld [vmem:[%s2357 + $0x10] sm:$0xff]
        %v2361 = vld [vmem:[%s2357 + $0x18] sm:$0xff]
        %v2362 = vld [vmem:[%s2357 + $0x20] sm:$0xff]
        %v2363 = vld [vmem:[%s2357 + $0x28] sm:$0xff]
        %v2364 = vld [vmem:[%s2357 + $0x30] sm:$0xff]
        %v2365 = vld [vmem:[%s2357 + $0x38] sm:$0xff]
        %v2366 = vld [vmem:[%s2357 + $0x40] sm:$0xff]
        %v2367 = vld [vmem:[%s2357 + $0x48] sm:$0xff]
        %v2368 = vld [vmem:[%s2357 + $0x50] sm:$0xff]
        %v2369 = vld [vmem:[%s2357 + $0x58] sm:$0xff]
        %v2370 = vld [vmem:[%s2357 + $0x60] sm:$0xff]
        %v2371 = vld [vmem:[%s2357 + $0x68] sm:$0xff]
        %v2372 = vld [vmem:[%s2357 + $0x70] sm:$0xff]
        %v2373 = vld [vmem:[%s2357 + $0x78] sm:$0xff]
        %vm2374 = vcmask 261120
        %v2376 = vsel %vm2374, %v2339, 0
        %v2379 = vsel %vm2374, %v2340, 0
        %2381 = vmatprep.subr.mxu0 %v2359
        %2382 = vmatpush1.msra.mxu0 %v2358
        %2383 = vmatprep.subr.mxu0 %v2363
        %2384 = vmatpush1.msra.mxu0 %v2362
        %2385 = vmatprep.subr.mxu0 %v2367
        %2386 = vmatpush1.msra.mxu0 %v2366
        %2387 = vmatprep.subr.mxu0 %v2371
        %2388 = vmatpush1.msra.mxu0 %v2370
        %2389 = vmatprep.subr.mxu0 0.0
        %2390 = vmatpush1.msra.mxu0 0.0
        %2391 = vmatprep.subr.mxu0 0.0
        %2392 = vmatpush1.msra.mxu0 0.0
        %2393 = vmatprep.subr.mxu0 0.0
        %2394 = vmatpush1.msra.mxu0 0.0
        %2395 = vmatprep.subr.mxu0 0.0
        %2396 = vmatpush1.msra.mxu0 0.0
        %2397 = vmatprep.subr.mxu0 0.0
        %2398 = vmatpush1.msra.mxu0 0.0
        %2399 = vmatprep.subr.mxu0 0.0
        %2400 = vmatpush1.msra.mxu0 0.0
        %2401 = vmatprep.subr.mxu0 0.0
        %2402 = vmatpush1.msra.mxu0 0.0
        %2403 = vmatprep.subr.mxu0 0.0
        %2404 = vmatpush1.msra.mxu0 0.0
        %2405 = vmatprep.subr.mxu0 0.0
        %2406 = vmatpush1.msra.mxu0 0.0
        %2407 = vmatprep.subr.mxu0 0.0
        %2408 = vmatpush1.msra.mxu0 0.0
        %2409 = vmatprep.subr.mxu0 0.0
        %2410 = vmatpush1.msra.mxu0 0.0
        %2411 = vmatprep.subr.mxu0 0.0
        %2412 = vmatpush1.msra.mxu0 0.0
        %2413 = vmatprep.subr.mxu0 0.0
        %2414 = vmatpush1.msra.mxu0 0.0
        %2415 = vmatprep.subr.mxu0 0.0
        %2416 = vmatpush1.msra.mxu0 0.0
        %2417 = vmatprep.subr.mxu0 0.0
        %2418 = vmatpush1.msra.mxu0 0.0
        %2419 = vmatprep.subr.mxu0 0.0
        %2420 = vmatpush1.msra.mxu0 0.0
        %2421 = vmatprep.subr.mxu0 0.0
        %2422 = vmatpush1.msra.mxu0 0.0
        %2423 = vmatprep.subr.mxu0 0.0
        %2424 = vmatpush1.msra.mxu0 0.0
        %2425 = vmatprep.subr.mxu0 0.0
        %2426 = vmatpush1.msra.mxu0 0.0
        %2427 = vmatprep.subr.mxu0 0.0
        %2428 = vmatpush1.msra.mxu0 0.0
        %2429 = vmatprep.subr.mxu0 0.0
        %2430 = vmatpush1.msra.mxu0 0.0
        %2431 = vmatprep.subr.mxu0 0.0
        %2432 = vmatpush1.msra.mxu0 0.0
        %2433 = vmatprep.subr.mxu0 0.0
        %2434 = vmatpush1.msra.mxu0 0.0
        %2435 = vmatprep.subr.mxu0 0.0
        %2436 = vmatpush1.msra.mxu0 0.0
        %2437 = vmatprep.subr.mxu0 0.0
        %2438 = vmatpush1.msra.mxu0 0.0
        %2439 = vmatprep.subr.mxu0 0.0
        %2440 = vmatpush1.msra.mxu0 0.0
        %2441 = vmatprep.subr.mxu0 0.0
        %2442 = vmatpush1.msra.mxu0 0.0
        %2443 = vmatprep.subr.mxu0 0.0
        %2444 = vmatpush1.msra.mxu0 0.0
        %2445 = vmatprep.mubr.f32.mxu0 0.0
        %2446 = vmatmul.mubr.f32.gmra.mrb[0].mxu0 %v2376
        %v2447 = vpop.f32.mrb[0].mxu0
        %v2448 = vadd.f32 0.0, %v2447
        %v2449 = vpop.f32.mrb[0].mxu0
        %v2450 = vadd.f32 0.0, %v2449
        %2451 = vmatprep.mubr.f32.mxu0 0.0
        %2452 = vmatmul.mubr.f32.gmra.mrb[0].mxu0 %v2379
        %v2453 = vpop.f32.mrb[0].mxu0
        %v2454 = vadd.f32 0.0, %v2453
        %v2455 = vpop.f32.mrb[0].mxu0
        %v2456 = vadd.f32 0.0, %v2455
        %2457 = vdwg.mxu0
        %2458 = vmatprep.subr.mxu0 %v2361
        %2459 = vmatpush1.msra.mxu0 %v2360
        %2460 = vmatprep.subr.mxu0 %v2365
        %2461 = vmatpush1.msra.mxu0 %v2364
        %2462 = vmatprep.subr.mxu0 %v2369
        %2463 = vmatpush1.msra.mxu0 %v2368
        %2464 = vmatprep.subr.mxu0 %v2373
        %2465 = vmatpush1.msra.mxu0 %v2372
        %2466 = vmatprep.subr.mxu0 0.0
        %2467 = vmatpush1.msra.mxu0 0.0
        %2468 = vmatprep.subr.mxu0 0.0
        %2469 = vmatpush1.msra.mxu0 0.0
        %2470 = vmatprep.subr.mxu0 0.0
        %2471 = vmatpush1.msra.mxu0 0.0
        %2472 = vmatprep.subr.mxu0 0.0
        %2473 = vmatpush1.msra.mxu0 0.0
        %2474 = vmatprep.subr.mxu0 0.0
        %2475 = vmatpush1.msra.mxu0 0.0
        %2476 = vmatprep.subr.mxu0 0.0
        %2477 = vmatpush1.msra.mxu0 0.0
        %2478 = vmatprep.subr.mxu0 0.0
        %2479 = vmatpush1.msra.mxu0 0.0
        %2480 = vmatprep.subr.mxu0 0.0
        %2481 = vmatpush1.msra.mxu0 0.0
        %2482 = vmatprep.subr.mxu0 0.0
        %2483 = vmatpush1.msra.mxu0 0.0
        %2484 = vmatprep.subr.mxu0 0.0
        %2485 = vmatpush1.msra.mxu0 0.0
        %2486 = vmatprep.subr.mxu0 0.0
        %2487 = vmatpush1.msra.mxu0 0.0
        %2488 = vmatprep.subr.mxu0 0.0
        %2489 = vmatpush1.msra.mxu0 0.0
        %2490 = vmatprep.subr.mxu0 0.0
        %2491 = vmatpush1.msra.mxu0 0.0
        %2492 = vmatprep.subr.mxu0 0.0
        %2493 = vmatpush1.msra.mxu0 0.0
        %2494 = vmatprep.subr.mxu0 0.0
        %2495 = vmatpush1.msra.mxu0 0.0
        %2496 = vmatprep.subr.mxu0 0.0
        %2497 = vmatpush1.msra.mxu0 0.0
        %2498 = vmatprep.subr.mxu0 0.0
        %2499 = vmatpush1.msra.mxu0 0.0
        %2500 = vmatprep.subr.mxu0 0.0
        %2501 = vmatpush1.msra.mxu0 0.0
        %2502 = vmatprep.subr.mxu0 0.0
        %2503 = vmatpush1.msra.mxu0 0.0
        %2504 = vmatprep.subr.mxu0 0.0
        %2505 = vmatpush1.msra.mxu0 0.0
        %2506 = vmatprep.subr.mxu0 0.0
        %2507 = vmatpush1.msra.mxu0 0.0
        %2508 = vmatprep.subr.mxu0 0.0
        %2509 = vmatpush1.msra.mxu0 0.0
        %2510 = vmatprep.subr.mxu0 0.0
        %2511 = vmatpush1.msra.mxu0 0.0
        %2512 = vmatprep.subr.mxu0 0.0
        %2513 = vmatpush1.msra.mxu0 0.0
        %2514 = vmatprep.subr.mxu0 0.0
        %2515 = vmatpush1.msra.mxu0 0.0
        %2516 = vmatprep.subr.mxu0 0.0
        %2517 = vmatpush1.msra.mxu0 0.0
        %2518 = vmatprep.subr.mxu0 0.0
        %2519 = vmatpush1.msra.mxu0 0.0
        %2520 = vmatprep.subr.mxu0 0.0
        %2521 = vmatpush1.msra.mxu0 0.0
        %2522 = vmatprep.mubr.f32.mxu0 0.0
        %2523 = vmatmul.mubr.f32.gmra.mrb[0].mxu0 %v2376
        %v2524 = vpop.f32.mrb[0].mxu0
        %v2525 = vadd.f32 0.0, %v2524
        %v2526 = vpop.f32.mrb[0].mxu0
        %v2527 = vadd.f32 0.0, %v2526
        %2528 = vmatprep.mubr.f32.mxu0 0.0
        %2529 = vmatmul.mubr.f32.gmra.mrb[0].mxu0 %v2379
        %v2530 = vpop.f32.mrb[0].mxu0
        %v2531 = vadd.f32 0.0, %v2530
        %v2532 = vpop.f32.mrb[0].mxu0
        %v2533 = vadd.f32 0.0, %v2532
        %2534 = vdwg.mxu0
        %v2536 = vsel %vm2374, %v2337, 0
        %v2539 = vsel %vm2374, %v2338, 0
        %2541 = vmatprep.subr.mxu0 %v2342
        %2542 = vmatpush1.msra.mxu0 %v2341
        %2543 = vmatprep.subr.mxu0 %v2346
        %2544 = vmatpush1.msra.mxu0 %v2345
        %2545 = vmatprep.subr.mxu0 %v2350
        %2546 = vmatpush1.msra.mxu0 %v2349
        %2547 = vmatprep.subr.mxu0 %v2354
        %2548 = vmatpush1.msra.mxu0 %v2353
        %2549 = vmatprep.subr.mxu0 0.0
        %2550 = vmatpush1.msra.mxu0 0.0
        %2551 = vmatprep.subr.mxu0 0.0
        %2552 = vmatpush1.msra.mxu0 0.0
        %2553 = vmatprep.subr.mxu0 0.0
        %2554 = vmatpush1.msra.mxu0 0.0
        %2555 = vmatprep.subr.mxu0 0.0
        %2556 = vmatpush1.msra.mxu0 0.0
        %2557 = vmatprep.subr.mxu0 0.0
        %2558 = vmatpush1.msra.mxu0 0.0
        %2559 = vmatprep.subr.mxu0 0.0
        %2560 = vmatpush1.msra.mxu0 0.0
        %2561 = vmatprep.subr.mxu0 0.0
        %2562 = vmatpush1.msra.mxu0 0.0
        %2563 = vmatprep.subr.mxu0 0.0
        %2564 = vmatpush1.msra.mxu0 0.0
        %2565 = vmatprep.subr.mxu0 0.0
        %2566 = vmatpush1.msra.mxu0 0.0
        %2567 = vmatprep.subr.mxu0 0.0
        %2568 = vmatpush1.msra.mxu0 0.0
        %2569 = vmatprep.subr.mxu0 0.0
        %2570 = vmatpush1.msra.mxu0 0.0
        %2571 = vmatprep.subr.mxu0 0.0
        %2572 = vmatpush1.msra.mxu0 0.0
        %2573 = vmatprep.subr.mxu0 0.0
        %2574 = vmatpush1.msra.mxu0 0.0
        %2575 = vmatprep.subr.mxu0 0.0
        %2576 = vmatpush1.msra.mxu0 0.0
        %2577 = vmatprep.subr.mxu0 0.0
        %2578 = vmatpush1.msra.mxu0 0.0
        %2579 = vmatprep.subr.mxu0 0.0
        %2580 = vmatpush1.msra.mxu0 0.0
        %2581 = vmatprep.subr.mxu0 0.0
        %2582 = vmatpush1.msra.mxu0 0.0
        %2583 = vmatprep.subr.mxu0 0.0
        %2584 = vmatpush1.msra.mxu0 0.0
        %2585 = vmatprep.subr.mxu0 0.0
        %2586 = vmatpush1.msra.mxu0 0.0
        %2587 = vmatprep.subr.mxu0 0.0
        %2588 = vmatpush1.msra.mxu0 0.0
        %2589 = vmatprep.subr.mxu0 0.0
        %2590 = vmatpush1.msra.mxu0 0.0
        %2591 = vmatprep.subr.mxu0 0.0
        %2592 = vmatpush1.msra.mxu0 0.0
        %2593 = vmatprep.subr.mxu0 0.0
        %2594 = vmatpush1.msra.mxu0 0.0
        %2595 = vmatprep.subr.mxu0 0.0
        %2596 = vmatpush1.msra.mxu0 0.0
        %2597 = vmatprep.subr.mxu0 0.0
        %2598 = vmatpush1.msra.mxu0 0.0
        %2599 = vmatprep.subr.mxu0 0.0
        %2600 = vmatpush1.msra.mxu0 0.0
        %2601 = vmatprep.subr.mxu0 0.0
        %2602 = vmatpush1.msra.mxu0 0.0
        %2603 = vmatprep.subr.mxu0 0.0
        %2604 = vmatpush1.msra.mxu0 0.0
        %2605 = vmatprep.mubr.f32.mxu0 0.0
        %2606 = vmatmul.mubr.f32.gmra.mrb[0].mxu0 %v2536
        %v2607 = vpop.f32.mrb[0].mxu0
        %v2608 = vadd.f32 %v2448, %v2607
        %v2609 = vpop.f32.mrb[0].mxu0
        %v2610 = vadd.f32 %v2450, %v2609
        %2611 = vmatprep.mubr.f32.mxu0 0.0
        %2612 = vmatmul.mubr.f32.gmra.mrb[0].mxu0 %v2539
        %v2613 = vpop.f32.mrb[0].mxu0
        %v2614 = vadd.f32 %v2454, %v2613
        %v2615 = vpop.f32.mrb[0].mxu0
        %v2616 = vadd.f32 %v2456, %v2615
        %2617 = vdwg.mxu0
        %2618 = vmatprep.subr.mxu0 %v2344
        %2619 = vmatpush1.msra.mxu0 %v2343
        %2620 = vmatprep.subr.mxu0 %v2348
        %2621 = vmatpush1.msra.mxu0 %v2347
        %2622 = vmatprep.subr.mxu0 %v2352
        %2623 = vmatpush1.msra.mxu0 %v2351
        %2624 = vmatprep.subr.mxu0 %v2356
        %2625 = vmatpush1.msra.mxu0 %v2355
        %2626 = vmatprep.subr.mxu0 0.0
        %2627 = vmatpush1.msra.mxu0 0.0
        %2628 = vmatprep.subr.mxu0 0.0
        %2629 = vmatpush1.msra.mxu0 0.0
        %2630 = vmatprep.subr.mxu0 0.0
        %2631 = vmatpush1.msra.mxu0 0.0
        %2632 = vmatprep.subr.mxu0 0.0
        %2633 = vmatpush1.msra.mxu0 0.0
        %2634 = vmatprep.subr.mxu0 0.0
        %2635 = vmatpush1.msra.mxu0 0.0
        %2636 = vmatprep.subr.mxu0 0.0
        %2637 = vmatpush1.msra.mxu0 0.0
        %2638 = vmatprep.subr.mxu0 0.0
        %2639 = vmatpush1.msra.mxu0 0.0
        %2640 = vmatprep.subr.mxu0 0.0
        %2641 = vmatpush1.msra.mxu0 0.0
        %2642 = vmatprep.subr.mxu0 0.0
        %2643 = vmatpush1.msra.mxu0 0.0
        %2644 = vmatprep.subr.mxu0 0.0
        %2645 = vmatpush1.msra.mxu0 0.0
        %2646 = vmatprep.subr.mxu0 0.0
        %2647 = vmatpush1.msra.mxu0 0.0
        %2648 = vmatprep.subr.mxu0 0.0
        %2649 = vmatpush1.msra.mxu0 0.0
        %2650 = vmatprep.subr.mxu0 0.0
        %2651 = vmatpush1.msra.mxu0 0.0
        %2652 = vmatprep.subr.mxu0 0.0
        %2653 = vmatpush1.msra.mxu0 0.0
        %2654 = vmatprep.subr.mxu0 0.0
        %2655 = vmatpush1.msra.mxu0 0.0
        %2656 = vmatprep.subr.mxu0 0.0
        %2657 = vmatpush1.msra.mxu0 0.0
        %2658 = vmatprep.subr.mxu0 0.0
        %2659 = vmatpush1.msra.mxu0 0.0
        %2660 = vmatprep.subr.mxu0 0.0
        %2661 = vmatpush1.msra.mxu0 0.0
        %2662 = vmatprep.subr.mxu0 0.0
        %2663 = vmatpush1.msra.mxu0 0.0
        %2664 = vmatprep.subr.mxu0 0.0
        %2665 = vmatpush1.msra.mxu0 0.0
        %2666 = vmatprep.subr.mxu0 0.0
        %2667 = vmatpush1.msra.mxu0 0.0
        %2668 = vmatprep.subr.mxu0 0.0
        %2669 = vmatpush1.msra.mxu0 0.0
        %2670 = vmatprep.subr.mxu0 0.0
        %2671 = vmatpush1.msra.mxu0 0.0
        %2672 = vmatprep.subr.mxu0 0.0
        %2673 = vmatpush1.msra.mxu0 0.0
        %2674 = vmatprep.subr.mxu0 0.0
        %2675 = vmatpush1.msra.mxu0 0.0
        %2676 = vmatprep.subr.mxu0 0.0
        %2677 = vmatpush1.msra.mxu0 0.0
        %2678 = vmatprep.subr.mxu0 0.0
        %2679 = vmatpush1.msra.mxu0 0.0
        %2680 = vmatprep.subr.mxu0 0.0
        %2681 = vmatpush1.msra.mxu0 0.0
        %2682 = vmatprep.mubr.f32.mxu0 0.0
        %2683 = vmatmul.mubr.f32.gmra.mrb[0].mxu0 %v2536
        %v2684 = vpop.f32.mrb[0].mxu0
        %v2685 = vadd.f32 %v2525, %v2684
        %v2686 = vpop.f32.mrb[0].mxu0
        %v2687 = vadd.f32 %v2527, %v2686
        %2688 = vmatprep.mubr.f32.mxu0 0.0
        %2689 = vmatmul.mubr.f32.gmra.mrb[0].mxu0 %v2539
        %v2690 = vpop.f32.mrb[0].mxu0
        %v2691 = vadd.f32 %v2531, %v2690
        %v2692 = vpop.f32.mrb[0].mxu0
        %v2693 = vadd.f32 %v2533, %v2692
        %2694 = vdwg.mxu0
        %v2695 = vld [vmem:[%s8] sm:$0xf]
        %v2697 = vlaneseq
        %v2698 = vshrl.u32 %v2697, 7
        %v2699 = vsub.s32 0, %v2698
        %v2700 = vrot.slane %v2695, %v2699
        %v2701 = vlaneseq
        %v2702 = vshrl.u32 %v2701, 7
        %v2703 = vsub.s32 1, %v2702
        %v2704 = vrot.slane %v2695, %v2703
        %v2705 = vlaneseq
        %v2706 = vshrl.u32 %v2705, 7
        %v2707 = vsub.s32 2, %v2706
        %v2708 = vrot.slane %v2695, %v2707
        %v2709 = vlaneseq
        %v2710 = vshrl.u32 %v2709, 7
        %v2711 = vsub.s32 3, %v2710
        %v2712 = vrot.slane %v2695, %v2711
        %v2717 = vadd.f32 %v2608, %v2700
        %v2718 = vadd.f32 %v2610, %v2704
        %v2719 = vadd.f32 %v2685, %v2708
        %v2720 = vadd.f32 %v2687, %v2712
        %v2721 = vadd.f32 %v2614, %v2700
        %v2722 = vadd.f32 %v2616, %v2704
        %v2723 = vadd.f32 %v2691, %v2708
        %v2724 = vadd.f32 %v2693, %v2712
        %v2725 = vmax.f32 %v2717, 0.0
        %v2726 = vmax.f32 %v2718, 0.0
        %v2727 = vmax.f32 %v2719, 0.0
        %v2728 = vmax.f32 %v2720, 0.0
        %v2729 = vmax.f32 %v2721, 0.0
        %v2730 = vmax.f32 %v2722, 0.0
        %v2731 = vmax.f32 %v2723, 0.0
        %v2732 = vmax.f32 %v2724, 0.0
        %v2733 = vld [vmem:[#allocation12] sm:$0xff]
        %v2734 = vld [vmem:[#allocation12 + $0x8] sm:$0xff]
        %v2735 = vld [vmem:[#allocation12 + $0x10] sm:$0xff]
        %v2736 = vld [vmem:[#allocation12 + $0x18] sm:$0xff]
        %v2737 = vld [vmem:[#allocation12 + $0x20] sm:$0xff]
        %v2738 = vld [vmem:[#allocation12 + $0x28] sm:$0xff]
        %v2739 = vld [vmem:[#allocation12 + $0x30] sm:$0xff]
        %v2740 = vld [vmem:[#allocation12 + $0x38] sm:$0xff]
        %v2741 = vld [vmem:[#allocation12 + $0x40] sm:$0xff]
        %v2742 = vld [vmem:[#allocation12 + $0x48] sm:$0xff]
        %v2743 = vld [vmem:[#allocation12 + $0x50] sm:$0xff]
        %v2744 = vld [vmem:[#allocation12 + $0x58] sm:$0xff]
        %v2745 = vld [vmem:[#allocation12 + $0x60] sm:$0xff]
        %v2746 = vld [vmem:[#allocation12 + $0x68] sm:$0xff]
        %v2747 = vld [vmem:[#allocation12 + $0x70] sm:$0xff]
        %v2748 = vld [vmem:[#allocation12 + $0x78] sm:$0xff]
        %v2749 = vld [vmem:[#allocation12 + $0x80] sm:$0xff]
        %v2750 = vld [vmem:[#allocation12 + $0x88] sm:$0xff]
        %v2751 = vld [vmem:[#allocation12 + $0x90] sm:$0xff]
        %v2752 = vld [vmem:[#allocation12 + $0x98] sm:$0xff]
        %v2753 = vld [vmem:[#allocation12 + $0xa0] sm:$0xff]
        %v2754 = vld [vmem:[#allocation12 + $0xa8] sm:$0xff]
        %v2755 = vld [vmem:[#allocation12 + $0xb0] sm:$0xff]
        %v2756 = vld [vmem:[#allocation12 + $0xb8] sm:$0xff]
        %v2757 = vld [vmem:[#allocation12 + $0xc0] sm:$0xff]
        %v2758 = vld [vmem:[#allocation12 + $0xc8] sm:$0xff]
        %v2759 = vld [vmem:[#allocation12 + $0xd0] sm:$0xff]
        %v2760 = vld [vmem:[#allocation12 + $0xd8] sm:$0xff]
        %v2761 = vld [vmem:[#allocation12 + $0xe0] sm:$0xff]
        %v2762 = vld [vmem:[#allocation12 + $0xe8] sm:$0xff]
        %v2763 = vld [vmem:[#allocation12 + $0xf0] sm:$0xff]
        %v2764 = vld [vmem:[#allocation12 + $0xf8] sm:$0xff]
        %v2765 = vld [vmem:[#allocation12 + $0x100] sm:$0xff]
        %v2766 = vld [vmem:[#allocation12 + $0x108] sm:$0xff]
        %v2767 = vld [vmem:[#allocation12 + $0x110] sm:$0xff]
        %v2768 = vld [vmem:[#allocation12 + $0x118] sm:$0xff]
        %v2769 = vld [vmem:[#allocation12 + $0x120] sm:$0xff]
        %v2770 = vld [vmem:[#allocation12 + $0x128] sm:$0xff]
        %v2771 = vld [vmem:[#allocation12 + $0x130] sm:$0xff]
        %v2772 = vld [vmem:[#allocation12 + $0x138] sm:$0xff]
        %v2773 = vld [vmem:[#allocation12 + $0x140] sm:$0xff]
        %v2774 = vld [vmem:[#allocation12 + $0x148] sm:$0xff]
        %v2775 = vld [vmem:[#allocation12 + $0x150] sm:$0xff]
        %v2776 = vld [vmem:[#allocation12 + $0x158] sm:$0xff]
        %v2777 = vld [vmem:[#allocation12 + $0x160] sm:$0xff]
        %v2778 = vld [vmem:[#allocation12 + $0x168] sm:$0xff]
        %v2779 = vld [vmem:[#allocation12 + $0x170] sm:$0xff]
        %v2780 = vld [vmem:[#allocation12 + $0x178] sm:$0xff]
        %v2781 = vld [vmem:[#allocation12 + $0x180] sm:$0xff]
        %v2782 = vld [vmem:[#allocation12 + $0x188] sm:$0xff]
        %v2783 = vld [vmem:[#allocation12 + $0x190] sm:$0xff]
        %v2784 = vld [vmem:[#allocation12 + $0x198] sm:$0xff]
        %v2785 = vld [vmem:[#allocation12 + $0x1a0] sm:$0xff]
        %v2786 = vld [vmem:[#allocation12 + $0x1a8] sm:$0xff]
        %v2787 = vld [vmem:[#allocation12 + $0x1b0] sm:$0xff]
        %v2788 = vld [vmem:[#allocation12 + $0x1b8] sm:$0xff]
        %v2789 = vld [vmem:[#allocation12 + $0x1c0] sm:$0xff]
        %v2790 = vld [vmem:[#allocation12 + $0x1c8] sm:$0xff]
        %v2791 = vld [vmem:[#allocation12 + $0x1d0] sm:$0xff]
        %v2792 = vld [vmem:[#allocation12 + $0x1d8] sm:$0xff]
        %v2793 = vld [vmem:[#allocation12 + $0x1e0] sm:$0xff]
        %v2794 = vld [vmem:[#allocation12 + $0x1e8] sm:$0xff]
        %v2795 = vld [vmem:[#allocation12 + $0x1f0] sm:$0xff]
        %v2796 = vld [vmem:[#allocation12 + $0x1f8] sm:$0xff]
        %v2797 = vld [vmem:[%s10] sm:$0x1]
        %v2799 = vlaneseq
        %v2800 = vshrl.u32 %v2799, 7
        %v2801 = vsub.s32 0, %v2800
        %v2802 = vrot.slane %v2797, %v2801
        %2804 = vmatprep.subr.mxu0 0.0
        %2805 = vmatpush1.msra.mxu0 %v2733
        %2806 = vmatprep.subr.mxu0 0.0
        %2807 = vmatpush1.msra.mxu0 %v2734
        %2808 = vmatprep.subr.mxu0 0.0
        %2809 = vmatpush1.msra.mxu0 %v2735
        %2810 = vmatprep.subr.mxu0 0.0
        %2811 = vmatpush1.msra.mxu0 %v2736
        %2812 = vmatprep.subr.mxu0 0.0
        %2813 = vmatpush1.msra.mxu0 %v2737
        %2814 = vmatprep.subr.mxu0 0.0
        %2815 = vmatpush1.msra.mxu0 %v2738
        %2816 = vmatprep.subr.mxu0 0.0
        %2817 = vmatpush1.msra.mxu0 %v2739
        %2818 = vmatprep.subr.mxu0 0.0
        %2819 = vmatpush1.msra.mxu0 %v2740
        %2820 = vmatprep.subr.mxu0 0.0
        %2821 = vmatpush1.msra.mxu0 %v2741
        %2822 = vmatprep.subr.mxu0 0.0
        %2823 = vmatpush1.msra.mxu0 %v2742
        %2824 = vmatprep.subr.mxu0 0.0
        %2825 = vmatpush1.msra.mxu0 %v2743
        %2826 = vmatprep.subr.mxu0 0.0
        %2827 = vmatpush1.msra.mxu0 %v2744
        %2828 = vmatprep.subr.mxu0 0.0
        %2829 = vmatpush1.msra.mxu0 %v2745
        %2830 = vmatprep.subr.mxu0 0.0
        %2831 = vmatpush1.msra.mxu0 %v2746
        %2832 = vmatprep.subr.mxu0 0.0
        %2833 = vmatpush1.msra.mxu0 %v2747
        %2834 = vmatprep.subr.mxu0 0.0
        %2835 = vmatpush1.msra.mxu0 %v2748
        %2836 = vmatprep.subr.mxu0 0.0
        %2837 = vmatpush1.msra.mxu0 %v2749
        %2838 = vmatprep.subr.mxu0 0.0
        %2839 = vmatpush1.msra.mxu0 %v2750
        %2840 = vmatprep.subr.mxu0 0.0
        %2841 = vmatpush1.msra.mxu0 %v2751
        %2842 = vmatprep.subr.mxu0 0.0
        %2843 = vmatpush1.msra.mxu0 %v2752
        %2844 = vmatprep.subr.mxu0 0.0
        %2845 = vmatpush1.msra.mxu0 %v2753
        %2846 = vmatprep.subr.mxu0 0.0
        %2847 = vmatpush1.msra.mxu0 %v2754
        %2848 = vmatprep.subr.mxu0 0.0
        %2849 = vmatpush1.msra.mxu0 %v2755
        %2850 = vmatprep.subr.mxu0 0.0
        %2851 = vmatpush1.msra.mxu0 %v2756
        %2852 = vmatprep.subr.mxu0 0.0
        %2853 = vmatpush1.msra.mxu0 %v2757
        %2854 = vmatprep.subr.mxu0 0.0
        %2855 = vmatpush1.msra.mxu0 %v2758
        %2856 = vmatprep.subr.mxu0 0.0
        %2857 = vmatpush1.msra.mxu0 %v2759
        %2858 = vmatprep.subr.mxu0 0.0
        %2859 = vmatpush1.msra.mxu0 %v2760
        %2860 = vmatprep.subr.mxu0 0.0
        %2861 = vmatpush1.msra.mxu0 %v2761
        %2862 = vmatprep.subr.mxu0 0.0
        %2863 = vmatpush1.msra.mxu0 %v2762
        %2864 = vmatprep.subr.mxu0 0.0
        %2865 = vmatpush1.msra.mxu0 %v2763
        %2866 = vmatprep.subr.mxu0 0.0
        %2867 = vmatpush1.msra.mxu0 %v2764
        %2868 = vmatprep.mubr.f32.mxu0 %v2726
        %2869 = vmatmul.mubr.f32.gmra.mrb[0].mxu0 %v2725
        %v2870 = vpop.f32.mrb[0].mxu0
        %v2871 = vadd.f32 %v2802, %v2870
        %v2872 = vpop.f32.mrb[0].mxu0
        %2873 = vmatprep.mubr.f32.mxu0 %v2730
        %2874 = vmatmul.mubr.f32.gmra.mrb[0].mxu0 %v2729
        %v2875 = vpop.f32.mrb[0].mxu0
        %v2876 = vadd.f32 %v2802, %v2875
        %v2877 = vpop.f32.mrb[0].mxu0
        %2878 = vdwg.mxu0
        %2879 = vmatprep.subr.mxu0 0.0
        %2880 = vmatpush1.msra.mxu0 %v2765
        %2881 = vmatprep.subr.mxu0 0.0
        %2882 = vmatpush1.msra.mxu0 %v2766
        %2883 = vmatprep.subr.mxu0 0.0
        %2884 = vmatpush1.msra.mxu0 %v2767
        %2885 = vmatprep.subr.mxu0 0.0
        %2886 = vmatpush1.msra.mxu0 %v2768
        %2887 = vmatprep.subr.mxu0 0.0
        %2888 = vmatpush1.msra.mxu0 %v2769
        %2889 = vmatprep.subr.mxu0 0.0
        %2890 = vmatpush1.msra.mxu0 %v2770
        %2891 = vmatprep.subr.mxu0 0.0
        %2892 = vmatpush1.msra.mxu0 %v2771
        %2893 = vmatprep.subr.mxu0 0.0
        %2894 = vmatpush1.msra.mxu0 %v2772
        %2895 = vmatprep.subr.mxu0 0.0
        %2896 = vmatpush1.msra.mxu0 %v2773
        %2897 = vmatprep.subr.mxu0 0.0
        %2898 = vmatpush1.msra.mxu0 %v2774
        %2899 = vmatprep.subr.mxu0 0.0
        %2900 = vmatpush1.msra.mxu0 %v2775
        %2901 = vmatprep.subr.mxu0 0.0
        %2902 = vmatpush1.msra.mxu0 %v2776
        %2903 = vmatprep.subr.mxu0 0.0
        %2904 = vmatpush1.msra.mxu0 %v2777
        %2905 = vmatprep.subr.mxu0 0.0
        %2906 = vmatpush1.msra.mxu0 %v2778
        %2907 = vmatprep.subr.mxu0 0.0
        %2908 = vmatpush1.msra.mxu0 %v2779
        %2909 = vmatprep.subr.mxu0 0.0
        %2910 = vmatpush1.msra.mxu0 %v2780
        %2911 = vmatprep.subr.mxu0 0.0
        %2912 = vmatpush1.msra.mxu0 %v2781
        %2913 = vmatprep.subr.mxu0 0.0
        %2914 = vmatpush1.msra.mxu0 %v2782
        %2915 = vmatprep.subr.mxu0 0.0
        %2916 = vmatpush1.msra.mxu0 %v2783
        %2917 = vmatprep.subr.mxu0 0.0
        %2918 = vmatpush1.msra.mxu0 %v2784
        %2919 = vmatprep.subr.mxu0 0.0
        %2920 = vmatpush1.msra.mxu0 %v2785
        %2921 = vmatprep.subr.mxu0 0.0
        %2922 = vmatpush1.msra.mxu0 %v2786
        %2923 = vmatprep.subr.mxu0 0.0
        %2924 = vmatpush1.msra.mxu0 %v2787
        %2925 = vmatprep.subr.mxu0 0.0
        %2926 = vmatpush1.msra.mxu0 %v2788
        %2927 = vmatprep.subr.mxu0 0.0
        %2928 = vmatpush1.msra.mxu0 %v2789
        %2929 = vmatprep.subr.mxu0 0.0
        %2930 = vmatpush1.msra.mxu0 %v2790
        %2931 = vmatprep.subr.mxu0 0.0
        %2932 = vmatpush1.msra.mxu0 %v2791
        %2933 = vmatprep.subr.mxu0 0.0
        %2934 = vmatpush1.msra.mxu0 %v2792
        %2935 = vmatprep.subr.mxu0 0.0
        %2936 = vmatpush1.msra.mxu0 %v2793
        %2937 = vmatprep.subr.mxu0 0.0
        %2938 = vmatpush1.msra.mxu0 %v2794
        %2939 = vmatprep.subr.mxu0 0.0
        %2940 = vmatpush1.msra.mxu0 %v2795
        %2941 = vmatprep.subr.mxu0 0.0
        %2942 = vmatpush1.msra.mxu0 %v2796
        %2943 = vmatprep.mubr.f32.mxu0 %v2728
        %2944 = vmatmul.mubr.f32.gmra.mrb[0].mxu0 %v2727
        %v2945 = vpop.f32.mrb[0].mxu0
        %v2946 = vadd.f32 %v2871, %v2945
        %v2947 = vpop.f32.mrb[0].mxu0
        %2948 = vmatprep.mubr.f32.mxu0 %v2732
        %2949 = vmatmul.mubr.f32.gmra.mrb[0].mxu0 %v2731
        %v2950 = vpop.f32.mrb[0].mxu0
        %v2951 = vadd.f32 %v2876, %v2950
        %v2952 = vpop.f32.mrb[0].mxu0
        %2953 = vdwg.mxu0
        %v2954 = vxor.u32 %v2946, 2147483648
        %v2955 = vxor.u32 %v2951, 2147483648
        %v2956 = vmul.f32 %v2954, 1.442695
        %v2957 = vpow.pop %v2956
        %v2958 = vmul.f32 %v2955, 1.442695
        %v2959 = vpow.pop %v2958
        %v2960 = vadd.f32 %v2957, 1.0
        %v2961 = vadd.f32 %v2959, 1.0
        %v2962 = vrcp.pop %v2960
        %v2963 = vmul.f32 1.0, %v2962
        %v2964 = vrcp.pop %v2961
        %v2965 = vmul.f32 1.0, %v2964
        %2966 = vst [vmem:[%s494] sm:$0xff] %v2963
        %2967 = vst [vmem:[%s494 + $0x8] sm:$0xff] %v2965
        %s2968 = smul.u32 2, %s28
        %p2969 = scmp.lt.s32.totalorder %s2968, 3
        %s2970 = scalar_select %p2969, %s2968, 3
        %s2971 = smul.addr %s2970, 8
        %s2972 = scalar_lea.vmem %s11, %s2971
        // Predicated region
        $region93: #{forward.1} parent=63 // pred_check
          %p2973 = pneg %p282
        $region94: #{forward.1} parent=63 // pred_check_branch
          %2975 = sbr.rel (%p2973) target = $region96
        $region95: #{forward.1} parent=63 // pred_region
          %s2976 = smul.u32 2, %s28
        $region96: #{forward.1} parent=63 // pred_fallthru
          _
      $region64: #{forward.1} parent=5 // pred_fallthru
        _
      %p2977 = scmp.le.s32.totalorder 2, %s23
      // Predicated region
      $region97: #{forward.1} parent=5 // pred_check
        %p2978 = pneg %p2977
      $region98: #{forward.1} parent=5 // pred_check_branch
        %2980 = sbr.rel (%p2978) target = $region100
      $region99: #{forward.1} parent=5 // pred_region
        %s2981 = ssub.s32 %s23, 2
        // Predicated region
        $region101: #{forward.1} parent=99 // pred_check
          %p2982 = pneg %p288
        $region102: #{forward.1} parent=99 // pred_check_branch
          %2984 = sbr.rel (%p2982) target = $region104
        $region103: #{forward.1} parent=99 // pred_region
          %s2985 = smul.u32 2, %s29
          %p2986 = scmp.lt.s32.totalorder %s2985, 3
          %s2987 = scalar_select %p2986, %s2985, 3
          %s2988 = smul.addr %s2987, 8
          %s2989 = scalar_lea.vmem %s11, %s2988
        $region104: #{forward.1} parent=99 // pred_fallthru
          _
      $region100: #{forward.1} parent=5 // pred_fallthru
        _
    $region6: #{forward.1} parent=1 // loop_footer
      %s27 = sadd.s32 1, %s23
    $region7: #{forward.1} parent=1 // loop_footer_branch
      %22 = sbr.rel target = $region3
    $region8: #{forward.1} parent=1 // loop_exit
      _
    %2990 = vsyncpa [#allocation3], 1
    %s2991 = scalar_lea.sflag [#allocation3], 1
    %2992 = vsyncpa %s2991, 1
    %2993 = vsyncpa [#allocation5], 1
    %2994 = vsyncpa [#allocation8], 1
    %2995 = vsyncpa [#allocation11], 1

</llo_original>
